<compile_context>
chip_gen: v6e
topology: v6e:2x2x1
jax: 0.10.0
libtpu: 0.0.40
codegen_flags: <defaults>
</compile_context>

<pallas_src>
import math

import jax
import jax.numpy as jnp
from jax.experimental import pallas as pl
from jax.experimental.pallas import tpu as pltpu

# Full-precision f32 matmuls everywhere (reference, wrapper folding, and the
# dots traced inside the kernel) so weight-folding / fusion regroupings only
# differ from the reference at f32 rounding level.
jax.config.update("jax_default_matmul_precision", "highest")

# ---------------- model hyper-parameters (small, consistent w/ module) -------
D_MODEL = 32
N_HEAD = 4                          # must divide d_model (unused numerically)
DIM_FF = 64
NUM_EXPERTS = 8
EXPERT_CAP = DIM_FF // NUM_EXPERTS  # 8
LORA_R = 8
LORA_ALPHA = 32
LORA_SCALE = LORA_ALPHA / LORA_R    # 4.0
LN_EPS = 1e-5
NEG_BIG = -1e30                     # finite "minus infinity" causal bias


def _normalize(x):
    """LayerNorm without affine (gamma/beta are folded into the weights)."""
    mu = jnp.mean(x, axis=-1, keepdims=True)
    var = jnp.mean(jnp.square(x - mu), axis=-1, keepdims=True)
    return (x - mu) * jax.lax.rsqrt(var + LN_EPS)


def _erf(x):
    # Abramowitz & Stegun 7.1.26 (|abs err| < 1.5e-7): only exp/abs/select/VPU
    # math, so it lowers on Mosaic without needing an erf primitive rule.
    a1, a2, a3, a4, a5 = (0.254829592, -0.284496736, 1.421413741,
                          -1.453152027, 1.061405429)
    pc = 0.3275911
    ax = jnp.abs(x)
    t = 1.0 / (1.0 + pc * ax)
    poly = ((((a5 * t + a4) * t + a3) * t + a2) * t + a1) * t
    y = 1.0 - poly * jnp.exp(-ax * ax)
    return jnp.where(x >= 0, y, -y)


def _gelu_exact(x):
    return 0.5 * x * (1.0 + _erf(x * (1.0 / math.sqrt(2.0))))


# --------------------------- fused layer kernel -------------------------------
def fused_layer_kernel(x_ref, wqkv_ref, bqkv_ref, wo_ref,
                       wup_ref, bup_ref, wdown_ref,
                       y_ref, kv_ref):
    T, D = x_ref.shape
    E, C = NUM_EXPERTS, EXPERT_CAP

    x = x_ref[...]                                          # (T, D)

    # ---------------- attention sub-layer (LN affine folded) ----------------
    xh = _normalize(x)
    qkv = jnp.dot(xh, wqkv_ref[...],
                  preferred_element_type=jnp.float32) + bqkv_ref[...]   # (T, 3D)
    q = qkv[:, :D]
    k = qkv[:, D:2 * D]
    v = qkv[:, 2 * D:]

    scale = 1.0 / math.sqrt(D)       # single "head": head_dim == d_model
    s = jax.lax.dot_general(q, k, (((1,), (1,)), ((), ())),
                            preferred_element_type=jnp.float32) * scale  # (T, T)
    row = jax.lax.broadcasted_iota(jnp.int32, (T, T), 0)
    col = jax.lax.broadcasted_iota(jnp.int32, (T, T), 1)
    s = s + jnp.where(col <= row, 0.0, NEG_BIG)              # causal bias
    s = s - jnp.max(s, axis=-1, keepdims=True)
    p = jnp.exp(s)
    p = p / jnp.sum(p, axis=-1, keepdims=True)               # exact softmax
    attn = jnp.dot(p, v, preferred_element_type=jnp.float32)            # (T, D)
    x1 = x + jnp.dot(attn, wo_ref[...], preferred_element_type=jnp.float32)

    # ---------------- MoE FFN sub-layer (LN affine + b1 folded) -------------
    xh2 = _normalize(x1)
    up = jnp.dot(xh2, wup_ref[...],
                 preferred_element_type=jnp.float32) + bup_ref[...]     # (T, E+E*C)
    logits = up[:, :E]                                       # gating logits
    h = up[:, E:]                                            # all experts' hidden

    logits = logits - jnp.max(logits, axis=-1, keepdims=True)
    eg = jnp.exp(logits)
    gates = eg / jnp.sum(eg, axis=-1, keepdims=True)          # (T, E)

    # top-2 selection (gates are in [0, 1], so -1 is a safe "minus inf")
    m1 = jnp.max(gates, axis=-1, keepdims=True)
    m2 = jnp.max(jnp.where(gates < m1, gates, -1.0), axis=-1, keepdims=True)
    sel = (gates >= m2).astype(jnp.float32)                   # (T, E) top-2 mask
    wsum = m1 + m2                                            # topk_gates.sum(-1)

    h = _gelu_exact(h)

    # broadcast per-expert selection across that expert's C hidden columns;
    # the (E, E*C) 0/1 matrix is built from iotas (no DMA'd operand).
    colid = jax.lax.broadcasted_iota(jnp.int32, (E, E * C), 1)
    rowc = jax.lax.broadcasted_iota(jnp.int32, (E, E * C), 0) * C
    expand = jnp.logical_and(colid >= rowc, colid < rowc + C).astype(jnp.float32)
    mask_ec = jnp.dot(sel, expand, preferred_element_type=jnp.float32)   # (T, E*C)

    # fused expert-down + per-expert output bias: (T, E*C+E) @ (E*C+E, D)
    hs = jnp.concatenate([h * mask_ec, sel], axis=-1)
    acc = jnp.dot(hs, wdown_ref[...], preferred_element_type=jnp.float32)

    y_ref[...] = x1 + wsum * acc
    kv_ref[...] = qkv[:, D:]          # k and v are adjacent lane ranges


# ------------------------------- wrapper --------------------------------------
def enterprise_transformer_layer(x, p):
    B, T, D = x.shape
    E, C = NUM_EXPERTS, EXPERT_CAP

    # Fold LoRA into the base projections and concatenate Q/K/V (tiny, one-off).
    wq_eff = p['wq'] + LORA_SCALE * (p['aq'] @ p['bq'])
    wk_eff = p['wk'] + LORA_SCALE * (p['ak'] @ p['bk'])
    wv_eff = p['wv'] + LORA_SCALE * (p['av'] @ p['bv'])
    wqkv = jnp.concatenate([wq_eff, wk_eff, wv_eff], axis=1)            # (D, 3D)

    # Fold the attention LayerNorm affine into the QKV projection.
    g1 = p['attn_ln_g'].reshape(D, 1)
    b1 = p['attn_ln_b'].reshape(1, D)
    wqkv_f = g1 * wqkv                                                  # (D, 3D)
    bqkv = b1 @ wqkv                                                    # (1, 3D)

    # Batched expert weights; gate merged into the same "up" matmul, FFN LN
    # affine folded in, expert-up bias merged into the bias row.
    w1c = jnp.transpose(p['w1'], (1, 0, 2)).reshape(D, E * C)           # (D, E*C)
    b1c = p['b1'].reshape(1, E * C)
    wup = jnp.concatenate([p['wg'], w1c], axis=1)                       # (D, E+E*C)
    g2 = p['ffn_ln_g'].reshape(D, 1)
    b2ln = p['ffn_ln_b'].reshape(1, D)
    wup_f = g2 * wup
    bup = b2ln @ wup + jnp.concatenate(
        [jnp.zeros((1, E), jnp.float32), b1c], axis=1)                  # (1, E+E*C)

    # Stacked "down" weight: [w2 ; b2] so one matmul yields output + bias.
    w2c = p['w2'].reshape(E * C, D)
    b2f = p['b2'].reshape(E, D)
    wdown = jnp.concatenate([w2c, b2f], axis=0)                         # (E*C+E, D)

    flops = 2 * B * T * (D * 3 * D + 2 * T * D + D * D
                         + D * (E + E * C) + (E * C + E) * D)
    transcendentals = B * T * (T + E + 2 * E * C)
    bytes_accessed = 4 * (x.size + wqkv_f.size + bqkv.size + p['wo'].size
                          + wup_f.size + bup.size + wdown.size
                          + B * T * D + B * T * 2 * D)

    y, kv = pl.pallas_call(
        fused_layer_kernel,
        grid=(B,),
        in_specs=[
            pl.BlockSpec((None, T, D), lambda b: (b, 0, 0)),       # x (per batch)
            pl.BlockSpec((D, 3 * D), lambda b: (0, 0)),            # wqkv_f
            pl.BlockSpec((1, 3 * D), lambda b: (0, 0)),            # bqkv
            pl.BlockSpec((D, D), lambda b: (0, 0)),                # wo
            pl.BlockSpec((D, E + E * C), lambda b: (0, 0)),        # wup_f
            pl.BlockSpec((1, E + E * C), lambda b: (0, 0)),        # bup
            pl.BlockSpec((E * C + E, D), lambda b: (0, 0)),        # wdown
        ],
        out_specs=[
            pl.BlockSpec((None, T, D), lambda b: (b, 0, 0)),       # y
            pl.BlockSpec((None, T, 2 * D), lambda b: (b, 0, 0)),   # [k | v]
        ],
        out_shape=(jax.ShapeDtypeStruct((B, T, D), jnp.float32),
                   jax.ShapeDtypeStruct((B, T, 2 * D), jnp.float32)),
        compiler_params=pltpu.CompilerParams(
            dimension_semantics=("parallel",),       # megacore shard over batch
            vmem_limit_bytes=32 * 1024 * 1024),
        cost_estimate=pl.CostEstimate(flops=flops,
                                      transcendentals=transcendentals,
                                      bytes_accessed=bytes_accessed),
    )(x, wqkv_f, bqkv, p['wo'], wup_f, bup, wdown)

    k = kv[..., :D].reshape(B, 1, T, D)
    v = kv[..., D:].reshape(B, 1, T, D)
    return y, (k, v)


# --------------------------- pure-JAX reference --------------------------------
def reference_layer(x, p):
    def ln(t, g, b):
        mu = jnp.mean(t, -1, keepdims=True)
        var = jnp.mean(jnp.square(t - mu), -1, keepdims=True)
        return (t - mu) * jax.lax.rsqrt(var + LN_EPS) * g + b

    xn = ln(x, p['attn_ln_g'], p['attn_ln_b'])
    q = xn @ p['wq'] + (xn @ p['aq']) @ p['bq'] * LORA_SCALE
    k = xn @ p['wk'] + (xn @ p['ak']) @ p['bk'] * LORA_SCALE
    v = xn @ p['wv'] + (xn @ p['av']) @ p['bv'] * LORA_SCALE
    T = x.shape[1]
    s = jnp.einsum('btd,bsd->bts', q, k) / math.sqrt(x.shape[-1])
    causal = jnp.tril(jnp.ones((T, T), bool))
    s = jnp.where(causal[None], s, -jnp.inf)
    a = jax.nn.softmax(s, -1)
    ao = jnp.einsum('bts,bsd->btd', a, v) @ p['wo']
    x1 = x + ao

    xn2 = ln(x1, p['ffn_ln_g'], p['ffn_ln_b'])
    gates = jax.nn.softmax(xn2 @ p['wg'], -1)
    m1 = jnp.max(gates, -1, keepdims=True)
    m2 = jnp.max(jnp.where(gates < m1, gates, -jnp.inf), -1, keepdims=True)
    sel = gates >= m2
    wsum = m1 + m2
    acc = jnp.zeros_like(x1)
    for i in range(NUM_EXPERTS):
        h = jax.nn.gelu(xn2 @ p['w1'][i] + p['b1'][i], approximate=False)
        o = h @ p['w2'][i] + p['b2'][i]
        acc = acc + jnp.where(sel[..., i:i + 1], o, 0.0)
    return x1 + wsum * acc, (k[:, None], v[:, None])


# ------------------------------ params / main ----------------------------------
def init_params(key):
    ks = jax.random.split(key, 20)
    n = lambda k, shape, std=0.02: jax.random.normal(k, shape, jnp.float32) * std
    D, R, E, C = D_MODEL, LORA_R, NUM_EXPERTS, EXPERT_CAP
    return {
        'attn_ln_g': jnp.ones((1, D), jnp.float32),
        'attn_ln_b': jnp.zeros((1, D), jnp.float32),
        'ffn_ln_g': jnp.ones((1, D), jnp.float32),
        'ffn_ln_b': jnp.zeros((1, D), jnp.float32),
        'wq': n(ks[0], (D, D), 1.0 / math.sqrt(2.0 * D)),
        'wk': n(ks[1], (D, D), 1.0 / math.sqrt(D)),
        'wv': n(ks[2], (D, D), 1.0 / math.sqrt(D)),
        'wo': n(ks[3], (D, D), 1.0 / math.sqrt(D)),
        'aq': n(ks[4], (D, R)), 'bq': n(ks[5], (R, D)),
        'ak': n(ks[6], (D, R)), 'bk': n(ks[7], (R, D)),
        'av': n(ks[8], (D, R)), 'bv': n(ks[9], (R, D)),
        'wg': n(ks[10], (D, E)),
        'w1': n(ks[11], (E, D, C), 1.0 / math.sqrt(D)),
        'b1': n(ks[12], (E, 1, C)),
        'w2': n(ks[13], (E, C, D), 1.0 / math.sqrt(C)),
        'b2': n(ks[14], (E, 1, D)),
    }


if __name__ == "__main__":
    key = jax.random.PRNGKey(0)
    kx, kp = jax.random.split(key)
    B, T = 2, 8
    x = jax.random.normal(kx, (B, T, D_MODEL), jnp.float32)
    params = init_params(kp)

    y, (k, v) = jax.jit(enterprise_transformer_layer)(x, params)
    jax.block_until_ready((y, k, v))

    y_ref, (k_ref, v_ref) = reference_layer(x, params)
    assert y.shape == (B, T, D_MODEL)
    assert k.shape == (B, 1, T, D_MODEL) and v.shape == (B, 1, T, D_MODEL)
    # Interpret-mode / highest-precision agreement is ~1e-6; tolerance leaves
    # margin for hardware transcendental / MXU f32 rounding differences.
    assert jnp.allclose(y, y_ref, rtol=5e-3, atol=5e-3)
    assert jnp.allclose(k, k_ref, rtol=5e-3, atol=5e-3)
    assert jnp.allclose(v, v_ref, rtol=5e-3, atol=5e-3)
    print("KERNEL_OK")
</pallas_src>

<mosaic_0001>
module attributes {stable_mosaic.version = 11 : i64} {
  func.func @fused_layer_kernel(%arg0: i32, %arg1: memref<1x8x32xf32, #tpu.memory_space<vmem>>, %arg2: memref<32x96xf32, #tpu.memory_space<vmem>>, %arg3: memref<1x96xf32, #tpu.memory_space<vmem>>, %arg4: memref<32x32xf32, #tpu.memory_space<vmem>>, %arg5: memref<32x72xf32, #tpu.memory_space<vmem>>, %arg6: memref<1x72xf32, #tpu.memory_space<vmem>>, %arg7: memref<72x32xf32, #tpu.memory_space<vmem>>, %arg8: memref<1x8x32xf32, #tpu.memory_space<vmem>>, %arg9: memref<1x8x64xf32, #tpu.memory_space<vmem>>) attributes {dimension_semantics = [#tpu.dimension_semantics<parallel>], iteration_bounds = array<i64: 2>, scalar_prefetch = 0 : i64, scratch_operands = 0 : i64, tpu.core_type = #tpu.core_type<tc>, window_params = [{transform_indices = @transform_0, window_bounds = array<i64: 1, 8, 32>}, {pipeline_mode = #tpu.pipeline_mode<synchronous>, transform_indices = @transform_1, window_bounds = array<i64: 32, 96>}, {pipeline_mode = #tpu.pipeline_mode<synchronous>, transform_indices = @transform_2, window_bounds = array<i64: 1, 96>}, {pipeline_mode = #tpu.pipeline_mode<synchronous>, transform_indices = @transform_3, window_bounds = array<i64: 32, 32>}, {pipeline_mode = #tpu.pipeline_mode<synchronous>, transform_indices = @transform_4, window_bounds = array<i64: 32, 72>}, {pipeline_mode = #tpu.pipeline_mode<synchronous>, transform_indices = @transform_5, window_bounds = array<i64: 1, 72>}, {pipeline_mode = #tpu.pipeline_mode<synchronous>, transform_indices = @transform_6, window_bounds = array<i64: 72, 32>}, {transform_indices = @transform_7, window_bounds = array<i64: 1, 8, 32>}, {transform_indices = @transform_8, window_bounds = array<i64: 1, 8, 64>}]} {
    %c0 = arith.constant 0 : index
    %c0_0 = arith.constant 0 : index
    %c0_1 = arith.constant 0 : index
    %0 = vector.load %arg1[%c0, %c0_0, %c0_1] : memref<1x8x32xf32, #tpu.memory_space<vmem>>, vector<1x8x32xf32>
    %1 = vector.shape_cast %0 : vector<1x8x32xf32> to vector<8x32xf32>
    %cst = arith.constant dense<0.000000e+00> : vector<8xf32>
    %2 = vector.multi_reduction <add>, %1, %cst [1] : vector<8x32xf32> to vector<8xf32>
    %3 = vector.shape_cast %2 : vector<8xf32> to vector<8x1xf32>
    %cst_2 = arith.constant 3.200000e+01 : f32
    %4 = vector.broadcast %cst_2 : f32 to vector<8x1xf32>
    %5 = arith.divf %3, %4 : vector<8x1xf32>
    %6 = vector.broadcast %5 : vector<8x1xf32> to vector<8x32xf32>
    %7 = arith.subf %1, %6 : vector<8x32xf32>
    %8 = arith.mulf %7, %7 : vector<8x32xf32>
    %cst_3 = arith.constant dense<0.000000e+00> : vector<8xf32>
    %9 = vector.multi_reduction <add>, %8, %cst_3 [1] : vector<8x32xf32> to vector<8xf32>
    %10 = vector.shape_cast %9 : vector<8xf32> to vector<8x1xf32>
    %cst_4 = arith.constant 3.200000e+01 : f32
    %11 = vector.broadcast %cst_4 : f32 to vector<8x1xf32>
    %12 = arith.divf %10, %11 : vector<8x1xf32>
    %13 = vector.broadcast %5 : vector<8x1xf32> to vector<8x32xf32>
    %14 = arith.subf %1, %13 : vector<8x32xf32>
    %cst_5 = arith.constant 9.99999974E-6 : f32
    %15 = vector.broadcast %cst_5 : f32 to vector<8x1xf32>
    %16 = arith.addf %12, %15 : vector<8x1xf32>
    %17 = math.rsqrt %16 : vector<8x1xf32>
    %18 = vector.broadcast %17 : vector<8x1xf32> to vector<8x32xf32>
    %19 = arith.mulf %14, %18 : vector<8x32xf32>
    %c0_6 = arith.constant 0 : index
    %c0_7 = arith.constant 0 : index
    %20 = vector.load %arg2[%c0_6, %c0_7] : memref<32x96xf32, #tpu.memory_space<vmem>>, vector<32x96xf32>
    %cst_8 = arith.constant dense<0.000000e+00> : vector<8x96xf32>
    %21 = tpu.matmul %19, %20, %cst_8 {dimension_numbers = #tpu.dot_dimension_numbers<[1], [0], [0], [1], [0, 0, 1, 1], [], []>, precision = #tpu.contract_precision<fp32>} : vector<8x32xf32>, vector<32x96xf32>, vector<8x96xf32> -> vector<8x96xf32>
    %c0_9 = arith.constant 0 : index
    %c0_10 = arith.constant 0 : index
    %22 = vector.load %arg3[%c0_9, %c0_10] : memref<1x96xf32, #tpu.memory_space<vmem>>, vector<1x96xf32>
    %23 = vector.broadcast %22 : vector<1x96xf32> to vector<8x96xf32>
    %24 = arith.addf %21, %23 : vector<8x96xf32>
    %25 = vector.extract_strided_slice %24 {offsets = [0, 0], sizes = [8, 32], strides = [1, 1]} : vector<8x96xf32> to vector<8x32xf32>
    %26 = vector.extract_strided_slice %24 {offsets = [0, 32], sizes = [8, 32], strides = [1, 1]} : vector<8x96xf32> to vector<8x32xf32>
    %27 = vector.extract_strided_slice %24 {offsets = [0, 64], sizes = [8, 32], strides = [1, 1]} : vector<8x96xf32> to vector<8x32xf32>
    %cst_11 = arith.constant dense<0.000000e+00> : vector<8x8xf32>
    %28 = tpu.matmul %25, %26, %cst_11 {dimension_numbers = #tpu.dot_dimension_numbers<[1], [1], [0], [0], [0, 0, 1, 0], [], []>, precision = #tpu.contract_precision<fp32>} : vector<8x32xf32>, vector<8x32xf32>, vector<8x8xf32> -> vector<8x8xf32>
    %cst_12 = arith.constant 0.176776692 : f32
    %29 = vector.broadcast %cst_12 : f32 to vector<8x8xf32>
    %30 = arith.mulf %28, %29 : vector<8x8xf32>
    %31 = tpu.iota {dimensions = array<i32: 0>} : vector<8x8xi32>
    %32 = tpu.iota {dimensions = array<i32: 1>} : vector<8x8xi32>
    %33 = arith.cmpi sle, %32, %31 : vector<8x8xi32>
    %cst_13 = arith.constant 0.000000e+00 : f32
    %cst_14 = arith.constant -1.000000e+30 : f32
    %34 = vector.broadcast %cst_13 : f32 to vector<8x8xf32>
    %35 = vector.broadcast %cst_14 : f32 to vector<8x8xf32>
    %36 = arith.select %33, %34, %35 : vector<8x8xi1>, vector<8x8xf32>
    %37 = arith.addf %30, %36 : vector<8x8xf32>
    %cst_15 = arith.constant dense<0xFF800000> : vector<8xf32>
    %38 = vector.multi_reduction <maximumf>, %37, %cst_15 [1] : vector<8x8xf32> to vector<8xf32>
    %39 = vector.shape_cast %38 : vector<8xf32> to vector<8x1xf32>
    %40 = vector.broadcast %39 : vector<8x1xf32> to vector<8x8xf32>
    %41 = arith.subf %37, %40 : vector<8x8xf32>
    %42 = math.exp %41 : vector<8x8xf32>
    %cst_16 = arith.constant dense<0.000000e+00> : vector<8xf32>
    %43 = vector.multi_reduction <add>, %42, %cst_16 [1] : vector<8x8xf32> to vector<8xf32>
    %44 = vector.shape_cast %43 : vector<8xf32> to vector<8x1xf32>
    %45 = vector.broadcast %44 : vector<8x1xf32> to vector<8x8xf32>
    %46 = arith.divf %42, %45 : vector<8x8xf32>
    %cst_17 = arith.constant dense<0.000000e+00> : vector<8x32xf32>
    %47 = tpu.matmul %46, %27, %cst_17 {dimension_numbers = #tpu.dot_dimension_numbers<[1], [0], [0], [1], [0, 0, 1, 1], [], []>, precision = #tpu.contract_precision<fp32>} : vector<8x8xf32>, vector<8x32xf32>, vector<8x32xf32> -> vector<8x32xf32>
    %c0_18 = arith.constant 0 : index
    %c0_19 = arith.constant 0 : index
    %48 = vector.load %arg4[%c0_18, %c0_19] : memref<32x32xf32, #tpu.memory_space<vmem>>, vector<32x32xf32>
    %cst_20 = arith.constant dense<0.000000e+00> : vector<8x32xf32>
    %49 = tpu.matmul %47, %48, %cst_20 {dimension_numbers = #tpu.dot_dimension_numbers<[1], [0], [0], [1], [0, 0, 1, 1], [], []>, precision = #tpu.contract_precision<fp32>} : vector<8x32xf32>, vector<32x32xf32>, vector<8x32xf32> -> vector<8x32xf32>
    %50 = arith.addf %1, %49 : vector<8x32xf32>
    %cst_21 = arith.constant dense<0.000000e+00> : vector<8xf32>
    %51 = vector.multi_reduction <add>, %50, %cst_21 [1] : vector<8x32xf32> to vector<8xf32>
    %52 = vector.shape_cast %51 : vector<8xf32> to vector<8x1xf32>
    %cst_22 = arith.constant 3.200000e+01 : f32
    %53 = vector.broadcast %cst_22 : f32 to vector<8x1xf32>
    %54 = arith.divf %52, %53 : vector<8x1xf32>
    %55 = vector.broadcast %54 : vector<8x1xf32> to vector<8x32xf32>
    %56 = arith.subf %50, %55 : vector<8x32xf32>
    %57 = arith.mulf %56, %56 : vector<8x32xf32>
    %cst_23 = arith.constant dense<0.000000e+00> : vector<8xf32>
    %58 = vector.multi_reduction <add>, %57, %cst_23 [1] : vector<8x32xf32> to vector<8xf32>
    %59 = vector.shape_cast %58 : vector<8xf32> to vector<8x1xf32>
    %cst_24 = arith.constant 3.200000e+01 : f32
    %60 = vector.broadcast %cst_24 : f32 to vector<8x1xf32>
    %61 = arith.divf %59, %60 : vector<8x1xf32>
    %62 = vector.broadcast %54 : vector<8x1xf32> to vector<8x32xf32>
    %63 = arith.subf %50, %62 : vector<8x32xf32>
    %cst_25 = arith.constant 9.99999974E-6 : f32
    %64 = vector.broadcast %cst_25 : f32 to vector<8x1xf32>
    %65 = arith.addf %61, %64 : vector<8x1xf32>
    %66 = math.rsqrt %65 : vector<8x1xf32>
    %67 = vector.broadcast %66 : vector<8x1xf32> to vector<8x32xf32>
    %68 = arith.mulf %63, %67 : vector<8x32xf32>
    %c0_26 = arith.constant 0 : index
    %c0_27 = arith.constant 0 : index
    %69 = vector.load %arg5[%c0_26, %c0_27] : memref<32x72xf32, #tpu.memory_space<vmem>>, vector<32x72xf32>
    %cst_28 = arith.constant dense<0.000000e+00> : vector<8x72xf32>
    %70 = tpu.matmul %68, %69, %cst_28 {dimension_numbers = #tpu.dot_dimension_numbers<[1], [0], [0], [1], [0, 0, 1, 1], [], []>, precision = #tpu.contract_precision<fp32>} : vector<8x32xf32>, vector<32x72xf32>, vector<8x72xf32> -> vector<8x72xf32>
    %c0_29 = arith.constant 0 : index
    %c0_30 = arith.constant 0 : index
    %71 = vector.load %arg6[%c0_29, %c0_30] : memref<1x72xf32, #tpu.memory_space<vmem>>, vector<1x72xf32>
    %72 = vector.broadcast %71 : vector<1x72xf32> to vector<8x72xf32>
    %73 = arith.addf %70, %72 : vector<8x72xf32>
    %74 = vector.extract_strided_slice %73 {offsets = [0, 0], sizes = [8, 8], strides = [1, 1]} : vector<8x72xf32> to vector<8x8xf32>
    %75 = vector.extract_strided_slice %73 {offsets = [0, 8], sizes = [8, 64], strides = [1, 1]} : vector<8x72xf32> to vector<8x64xf32>
    %cst_31 = arith.constant dense<0xFF800000> : vector<8xf32>
    %76 = vector.multi_reduction <maximumf>, %74, %cst_31 [1] : vector<8x8xf32> to vector<8xf32>
    %77 = vector.shape_cast %76 : vector<8xf32> to vector<8x1xf32>
    %78 = vector.broadcast %77 : vector<8x1xf32> to vector<8x8xf32>
    %79 = arith.subf %74, %78 : vector<8x8xf32>
    %80 = math.exp %79 : vector<8x8xf32>
    %cst_32 = arith.constant dense<0.000000e+00> : vector<8xf32>
    %81 = vector.multi_reduction <add>, %80, %cst_32 [1] : vector<8x8xf32> to vector<8xf32>
    %82 = vector.shape_cast %81 : vector<8xf32> to vector<8x1xf32>
    %83 = vector.broadcast %82 : vector<8x1xf32> to vector<8x8xf32>
    %84 = arith.divf %80, %83 : vector<8x8xf32>
    %cst_33 = arith.constant dense<0xFF800000> : vector<8xf32>
    %85 = vector.multi_reduction <maximumf>, %84, %cst_33 [1] : vector<8x8xf32> to vector<8xf32>
    %86 = vector.shape_cast %85 : vector<8xf32> to vector<8x1xf32>
    %87 = vector.broadcast %86 : vector<8x1xf32> to vector<8x8xf32>
    %88 = arith.cmpf olt, %84, %87 : vector<8x8xf32>
    %cst_34 = arith.constant -1.000000e+00 : f32
    %89 = vector.broadcast %cst_34 : f32 to vector<8x8xf32>
    %90 = arith.select %88, %84, %89 : vector<8x8xi1>, vector<8x8xf32>
    %cst_35 = arith.constant dense<0xFF800000> : vector<8xf32>
    %91 = vector.multi_reduction <maximumf>, %90, %cst_35 [1] : vector<8x8xf32> to vector<8xf32>
    %92 = vector.shape_cast %91 : vector<8xf32> to vector<8x1xf32>
    %93 = vector.broadcast %92 : vector<8x1xf32> to vector<8x8xf32>
    %94 = arith.cmpf oge, %84, %93 : vector<8x8xf32>
    %95 = arith.extui %94 : vector<8x8xi1> to vector<8x8xi32>
    %96 = arith.sitofp %95 : vector<8x8xi32> to vector<8x8xf32>
    %97 = arith.addf %86, %92 : vector<8x1xf32>
    %cst_36 = arith.constant 5.000000e-01 : f32
    %98 = vector.broadcast %cst_36 : f32 to vector<8x64xf32>
    %99 = arith.mulf %98, %75 : vector<8x64xf32>
    %cst_37 = arith.constant 0.707106769 : f32
    %100 = vector.broadcast %cst_37 : f32 to vector<8x64xf32>
    %101 = arith.mulf %75, %100 : vector<8x64xf32>
    %102 = math.absf %101 : vector<8x64xf32>
    %cst_38 = arith.constant 0.327591091 : f32
    %103 = vector.broadcast %cst_38 : f32 to vector<8x64xf32>
    %104 = arith.mulf %103, %102 : vector<8x64xf32>
    %cst_39 = arith.constant 1.000000e+00 : f32
    %105 = vector.broadcast %cst_39 : f32 to vector<8x64xf32>
    %106 = arith.addf %105, %104 : vector<8x64xf32>
    %cst_40 = arith.constant 1.000000e+00 : f32
    %107 = vector.broadcast %cst_40 : f32 to vector<8x64xf32>
    %108 = arith.divf %107, %106 : vector<8x64xf32>
    %cst_41 = arith.constant 1.06140542 : f32
    %109 = vector.broadcast %cst_41 : f32 to vector<8x64xf32>
    %110 = arith.mulf %109, %108 : vector<8x64xf32>
    %cst_42 = arith.constant -1.45315206 : f32
    %111 = vector.broadcast %cst_42 : f32 to vector<8x64xf32>
    %112 = arith.addf %110, %111 : vector<8x64xf32>
    %113 = arith.mulf %112, %108 : vector<8x64xf32>
    %cst_43 = arith.constant 1.42141378 : f32
    %114 = vector.broadcast %cst_43 : f32 to vector<8x64xf32>
    %115 = arith.addf %113, %114 : vector<8x64xf32>
    %116 = arith.mulf %115, %108 : vector<8x64xf32>
    %cst_44 = arith.constant -0.284496725 : f32
    %117 = vector.broadcast %cst_44 : f32 to vector<8x64xf32>
    %118 = arith.addf %116, %117 : vector<8x64xf32>
    %119 = arith.mulf %118, %108 : vector<8x64xf32>
    %cst_45 = arith.constant 0.254829586 : f32
    %120 = vector.broadcast %cst_45 : f32 to vector<8x64xf32>
    %121 = arith.addf %119, %120 : vector<8x64xf32>
    %122 = arith.mulf %121, %108 : vector<8x64xf32>
    %cst_46 = arith.constant 0.000000e+00 : f32
    %123 = vector.broadcast %cst_46 : f32 to vector<8x64xf32>
    %124 = arith.subf %123, %102 : vector<8x64xf32>
    %125 = arith.mulf %124, %102 : vector<8x64xf32>
    %126 = math.exp %125 : vector<8x64xf32>
    %127 = arith.mulf %122, %126 : vector<8x64xf32>
    %cst_47 = arith.constant 1.000000e+00 : f32
    %128 = vector.broadcast %cst_47 : f32 to vector<8x64xf32>
    %129 = arith.subf %128, %127 : vector<8x64xf32>
    %cst_48 = arith.constant 0.000000e+00 : f32
    %130 = vector.broadcast %cst_48 : f32 to vector<8x64xf32>
    %131 = arith.cmpf oge, %101, %130 : vector<8x64xf32>
    %cst_49 = arith.constant 0.000000e+00 : f32
    %132 = vector.broadcast %cst_49 : f32 to vector<8x64xf32>
    %133 = arith.subf %132, %129 : vector<8x64xf32>
    %134 = arith.select %131, %129, %133 : vector<8x64xi1>, vector<8x64xf32>
    %cst_50 = arith.constant 1.000000e+00 : f32
    %135 = vector.broadcast %cst_50 : f32 to vector<8x64xf32>
    %136 = arith.addf %135, %134 : vector<8x64xf32>
    %137 = arith.mulf %99, %136 : vector<8x64xf32>
    %138 = tpu.iota {dimensions = array<i32: 1>} : vector<8x64xi32>
    %139 = tpu.iota {dimensions = array<i32: 0>} : vector<8x64xi32>
    %c8_i32 = arith.constant 8 : i32
    %140 = vector.broadcast %c8_i32 : i32 to vector<8x64xi32>
    %141 = arith.muli %139, %140 : vector<8x64xi32>
    %142 = arith.cmpi sge, %138, %141 : vector<8x64xi32>
    %c8_i32_51 = arith.constant 8 : i32
    %143 = vector.broadcast %c8_i32_51 : i32 to vector<8x64xi32>
    %144 = arith.addi %141, %143 : vector<8x64xi32>
    %145 = arith.cmpi slt, %138, %144 : vector<8x64xi32>
    %146 = arith.andi %142, %145 : vector<8x64xi1>
    %147 = arith.extui %146 : vector<8x64xi1> to vector<8x64xi32>
    %148 = arith.sitofp %147 : vector<8x64xi32> to vector<8x64xf32>
    %cst_52 = arith.constant dense<0.000000e+00> : vector<8x64xf32>
    %149 = tpu.matmul %96, %148, %cst_52 {dimension_numbers = #tpu.dot_dimension_numbers<[1], [0], [0], [1], [0, 0, 1, 1], [], []>, precision = #tpu.contract_precision<fp32>} : vector<8x8xf32>, vector<8x64xf32>, vector<8x64xf32> -> vector<8x64xf32>
    %150 = arith.mulf %137, %149 : vector<8x64xf32>
    %151 = tpu.concatenate %150, %96 in 1 : vector<8x64xf32>, vector<8x8xf32> -> vector<8x72xf32>
    %c0_53 = arith.constant 0 : index
    %c0_54 = arith.constant 0 : index
    %152 = vector.load %arg7[%c0_53, %c0_54] : memref<72x32xf32, #tpu.memory_space<vmem>>, vector<72x32xf32>
    %cst_55 = arith.constant dense<0.000000e+00> : vector<8x32xf32>
    %153 = tpu.matmul %151, %152, %cst_55 {dimension_numbers = #tpu.dot_dimension_numbers<[1], [0], [0], [1], [0, 0, 1, 1], [], []>, precision = #tpu.contract_precision<fp32>} : vector<8x72xf32>, vector<72x32xf32>, vector<8x32xf32> -> vector<8x32xf32>
    %154 = vector.broadcast %97 : vector<8x1xf32> to vector<8x32xf32>
    %155 = arith.mulf %154, %153 : vector<8x32xf32>
    %156 = arith.addf %50, %155 : vector<8x32xf32>
    %c0_56 = arith.constant 0 : index
    %c0_57 = arith.constant 0 : index
    %c0_58 = arith.constant 0 : index
    %157 = vector.load %arg8[%c0_56, %c0_57, %c0_58] : memref<1x8x32xf32, #tpu.memory_space<vmem>>, vector<1x8x32xf32>
    %158 = vector.shape_cast %157 : vector<1x8x32xf32> to vector<8x32xf32>
    %159 = vector.shape_cast %156 : vector<8x32xf32> to vector<1x8x32xf32>
    tpu.vector_store %arg8[%c0_56, %c0_57, %c0_58], %159 {strides = array<i32>} : memref<1x8x32xf32, #tpu.memory_space<vmem>>, vector<1x8x32xf32>,
    %160 = vector.extract_strided_slice %24 {offsets = [0, 32], sizes = [8, 64], strides = [1, 1]} : vector<8x96xf32> to vector<8x64xf32>
    %c0_59 = arith.constant 0 : index
    %c0_60 = arith.constant 0 : index
    %c0_61 = arith.constant 0 : index
    %161 = vector.load %arg9[%c0_59, %c0_60, %c0_61] : memref<1x8x64xf32, #tpu.memory_space<vmem>>, vector<1x8x64xf32>
    %162 = vector.shape_cast %161 : vector<1x8x64xf32> to vector<8x64xf32>
    %163 = vector.shape_cast %160 : vector<8x64xf32> to vector<1x8x64xf32>
    tpu.vector_store %arg9[%c0_59, %c0_60, %c0_61], %163 {strides = array<i32>} : memref<1x8x64xf32, #tpu.memory_space<vmem>>, vector<1x8x64xf32>,
    return
  }
  func.func @transform_0(%arg0: i32) -> (i32, i32, i32) {
    %c0_i32 = arith.constant 0 : i32
    %c0_i32_0 = arith.constant 0 : i32
    %c0_i32_1 = arith.constant 0 : i32
    return %arg0, %c0_i32, %c0_i32_0 : i32, i32, i32
  }
  func.func @transform_1(%arg0: i32) -> (i32, i32) {
    %c0_i32 = arith.constant 0 : i32
    %c0_i32_0 = arith.constant 0 : i32
    %c0_i32_1 = arith.constant 0 : i32
    return %c0_i32, %c0_i32_0 : i32, i32
  }
  func.func @transform_2(%arg0: i32) -> (i32, i32) {
    %c0_i32 = arith.constant 0 : i32
    %c0_i32_0 = arith.constant 0 : i32
    %c0_i32_1 = arith.constant 0 : i32
    return %c0_i32, %c0_i32_0 : i32, i32
  }
  func.func @transform_3(%arg0: i32) -> (i32, i32) {
    %c0_i32 = arith.constant 0 : i32
    %c0_i32_0 = arith.constant 0 : i32
    %c0_i32_1 = arith.constant 0 : i32
    return %c0_i32, %c0_i32_0 : i32, i32
  }
  func.func @transform_4(%arg0: i32) -> (i32, i32) {
    %c0_i32 = arith.constant 0 : i32
    %c0_i32_0 = arith.constant 0 : i32
    %c0_i32_1 = arith.constant 0 : i32
    return %c0_i32, %c0_i32_0 : i32, i32
  }
  func.func @transform_5(%arg0: i32) -> (i32, i32) {
    %c0_i32 = arith.constant 0 : i32
    %c0_i32_0 = arith.constant 0 : i32
    %c0_i32_1 = arith.constant 0 : i32
    return %c0_i32, %c0_i32_0 : i32, i32
  }
  func.func @transform_6(%arg0: i32) -> (i32, i32) {
    %c0_i32 = arith.constant 0 : i32
    %c0_i32_0 = arith.constant 0 : i32
    %c0_i32_1 = arith.constant 0 : i32
    return %c0_i32, %c0_i32_0 : i32, i32
  }
  func.func @transform_7(%arg0: i32) -> (i32, i32, i32) {
    %c0_i32 = arith.constant 0 : i32
    %c0_i32_0 = arith.constant 0 : i32
    %c0_i32_1 = arith.constant 0 : i32
    return %arg0, %c0_i32, %c0_i32_0 : i32, i32, i32
  }
  func.func @transform_8(%arg0: i32) -> (i32, i32, i32) {
    %c0_i32 = arith.constant 0 : i32
    %c0_i32_0 = arith.constant 0 : i32
    %c0_i32_1 = arith.constant 0 : i32
    return %arg0, %c0_i32, %c0_i32_0 : i32, i32, i32
  }
}

</mosaic_0001>

<llo_original>
// kernel: enterprise_transformer_layer.1
$region0: #{enterprise_transformer_layer.1}
  #allocation0 [shape = 'u32[]', space=smem, size = 0x4, offset = 0x4, fixed_abs, tag = 'smem constant byte address 0x4 - core index']
  #allocation1 [shape = 'u32[144,128]{1,0:T(1,128)}', space=vmem, size = 0x12000, scoped, tag = 'internal scratch']
  %s0 = inlined_call_operand.vmem [shape: f32[2,8,32], index: 0, kind: input, shape index: {}]
  %s1 = inlined_call_operand.vmem [shape: f32[32,96], index: 1, kind: input, shape index: {}]
  %s2 = inlined_call_operand.vmem [shape: f32[1,96], index: 2, kind: input, shape index: {}]
  %s3 = inlined_call_operand.vmem [shape: f32[32,32], index: 3, kind: input, shape index: {}]
  %s4 = inlined_call_operand.vmem [shape: f32[32,72], index: 4, kind: input, shape index: {}]
  %s5 = inlined_call_operand.vmem [shape: f32[1,72], index: 5, kind: input, shape index: {}]
  %s6 = inlined_call_operand.vmem [shape: f32[72,32], index: 6, kind: input, shape index: {}]
  %s7 = inlined_call_operand.hbm [shape: f32[2,8,32], index: 7, kind: output, shape index: {0}]
  %s8 = inlined_call_operand.vmem [shape: f32[2,8,64], index: 8, kind: output, shape index: {1}]
  %9 = xla_tuple %s7, %s8
  %s10 = sld [smem:[#allocation0]]
  $region69: #{enterprise_transformer_layer.1} parent=0
    _
  %s12 = ssub.s32 1, %s10
  %s13 = scalar_select 0, %s12, %s10
  $region1: #{enterprise_transformer_layer.1} parent=0
    #allocation2 [shape = 'u8[8192]{0}', space=vmem, size = 0x2000, scoped, tag = 'output window, operand 0']
    #allocation3 [shape = 's32[2]{0}', space=sflag, size = 0x8, scoped, tag = 'scoped memory for enterprise_transformer_layer.1']
    %14 = vsyncpa [#allocation3], 0
    %s15 = scalar_lea.sflag [#allocation3], 1
    %16 = vsyncpa %s15, 0
    loop: start=0, step=1, limit=4
    $region2: #{enterprise_transformer_layer.1} parent=1 // loop_pre_header
      _
    $region3: #{enterprise_transformer_layer.1} parent=1 // loop_header
      %s18 = sphi 0, %s22
      %p19 = scmp.ge.s32.totalorder %s18, 4
      %s28 = sphi 0, %s30
      %s31 = sphi 0, %s28
      %s32 = sphi 0, %s31
      %s48 = sphi 0, %s32
      %s52 = sphi 0, %s52
      %s54 = sphi 0, %s52
      %s55 = sphi 0, %s54
      %s69 = sphi 0, %s55
      %s73 = sphi 0, %s73
      %s75 = sphi 0, %s73
      %s76 = sphi 0, %s75
      %s90 = sphi 0, %s76
      %s94 = sphi 0, %s94
      %s96 = sphi 0, %s94
      %s97 = sphi 0, %s96
      %s111 = sphi 0, %s97
      %s115 = sphi 0, %s115
      %s117 = sphi 0, %s115
      %s118 = sphi 0, %s117
      %s132 = sphi 0, %s118
      %s136 = sphi 0, %s136
      %s138 = sphi 0, %s136
      %s139 = sphi 0, %s138
      %s153 = sphi 0, %s139
      %s157 = sphi 0, %s157
      %s159 = sphi 0, %s157
      %s160 = sphi 0, %s159
      %s174 = sphi 0, %s160
      %s180 = sphi 0, %s182
      %s183 = sphi 0, %s180
      %s184 = sphi 0, %s183
      %s200 = sphi 0, %s184
      %s206 = sphi 0, %s208
      %s209 = sphi 0, %s206
      %s210 = sphi 0, %s209
      %s226 = sphi 0, %s210
    $region4: #{enterprise_transformer_layer.1} parent=1 // loop_header_branch
      %21 = sbr.rel (%p19) target = $region8
    $region5: #{enterprise_transformer_layer.1} parent=1 // loop_body
      %s23 = ssub.s32 %s18, 1
      %s24 = ssub.s32 %s18, 2
      %s25 = sadd.s32 %s18, 1
      %s26 = ssub.s32 %s18, %s25
      %p27 = scmp.eq.s32.totalorder %s26, 0
      %s29 = sadd.s32 %s28, 1
      %s30 = scalar_select %p27, %s28, %s29
      %p33 = pneg %p27
      %p34 = scmp.eq.s32.totalorder %s18, 1
      %p35 = por %p33, %p34
      %p36 = scmp.ne.s32.totalorder %s28, %s31
      %p37 = scmp.eq.s32.totalorder %s18, 0
      %p38 = por %p36, %p37
      %p39 = scmp.ne.s32.totalorder %s28, %s31
      %p40 = scmp.eq.s32.totalorder %s23, 1
      %p41 = por %p39, %p40
      %p42 = scmp.ne.s32.totalorder %s31, %s32
      %p43 = scmp.eq.s32.totalorder %s23, 0
      %p44 = por %p42, %p43
      %p45 = scmp.ne.s32.totalorder %s31, %s32
      %p46 = scmp.eq.s32.totalorder %s24, 1
      %p47 = por %p45, %p46
      %p49 = scmp.ne.s32.totalorder %s32, %s48
      %p50 = scmp.eq.s32.totalorder %s24, 0
      %p51 = por %p49, %p50
      %s53 = sadd.s32 %s52, 1
      %p56 = scmp.eq.s32.totalorder %s18, 1
      %p57 = scmp.ne.s32.totalorder %s52, %s54
      %p58 = scmp.eq.s32.totalorder %s18, 0
      %p59 = por %p57, %p58
      %p60 = scmp.ne.s32.totalorder %s52, %s54
      %p61 = scmp.eq.s32.totalorder %s23, 1
      %p62 = por %p60, %p61
      %p63 = scmp.ne.s32.totalorder %s54, %s55
      %p64 = scmp.eq.s32.totalorder %s23, 0
      %p65 = por %p63, %p64
      %p66 = scmp.ne.s32.totalorder %s54, %s55
      %p67 = scmp.eq.s32.totalorder %s24, 1
      %p68 = por %p66, %p67
      %p70 = scmp.ne.s32.totalorder %s55, %s69
      %p71 = scmp.eq.s32.totalorder %s24, 0
      %p72 = por %p70, %p71
      %s74 = sadd.s32 %s73, 1
      %p77 = scmp.eq.s32.totalorder %s18, 1
      %p78 = scmp.ne.s32.totalorder %s73, %s75
      %p79 = scmp.eq.s32.totalorder %s18, 0
      %p80 = por %p78, %p79
      %p81 = scmp.ne.s32.totalorder %s73, %s75
      %p82 = scmp.eq.s32.totalorder %s23, 1
      %p83 = por %p81, %p82
      %p84 = scmp.ne.s32.totalorder %s75, %s76
      %p85 = scmp.eq.s32.totalorder %s23, 0
      %p86 = por %p84, %p85
      %p87 = scmp.ne.s32.totalorder %s75, %s76
      %p88 = scmp.eq.s32.totalorder %s24, 1
      %p89 = por %p87, %p88
      %p91 = scmp.ne.s32.totalorder %s76, %s90
      %p92 = scmp.eq.s32.totalorder %s24, 0
      %p93 = por %p91, %p92
      %s95 = sadd.s32 %s94, 1
      %p98 = scmp.eq.s32.totalorder %s18, 1
      %p99 = scmp.ne.s32.totalorder %s94, %s96
      %p100 = scmp.eq.s32.totalorder %s18, 0
      %p101 = por %p99, %p100
      %p102 = scmp.ne.s32.totalorder %s94, %s96
      %p103 = scmp.eq.s32.totalorder %s23, 1
      %p104 = por %p102, %p103
      %p105 = scmp.ne.s32.totalorder %s96, %s97
      %p106 = scmp.eq.s32.totalorder %s23, 0
      %p107 = por %p105, %p106
      %p108 = scmp.ne.s32.totalorder %s96, %s97
      %p109 = scmp.eq.s32.totalorder %s24, 1
      %p110 = por %p108, %p109
      %p112 = scmp.ne.s32.totalorder %s97, %s111
      %p113 = scmp.eq.s32.totalorder %s24, 0
      %p114 = por %p112, %p113
      %s116 = sadd.s32 %s115, 1
      %p119 = scmp.eq.s32.totalorder %s18, 1
      %p120 = scmp.ne.s32.totalorder %s115, %s117
      %p121 = scmp.eq.s32.totalorder %s18, 0
      %p122 = por %p120, %p121
      %p123 = scmp.ne.s32.totalorder %s115, %s117
      %p124 = scmp.eq.s32.totalorder %s23, 1
      %p125 = por %p123, %p124
      %p126 = scmp.ne.s32.totalorder %s117, %s118
      %p127 = scmp.eq.s32.totalorder %s23, 0
      %p128 = por %p126, %p127
      %p129 = scmp.ne.s32.totalorder %s117, %s118
      %p130 = scmp.eq.s32.totalorder %s24, 1
      %p131 = por %p129, %p130
      %p133 = scmp.ne.s32.totalorder %s118, %s132
      %p134 = scmp.eq.s32.totalorder %s24, 0
      %p135 = por %p133, %p134
      %s137 = sadd.s32 %s136, 1
      %p140 = scmp.eq.s32.totalorder %s18, 1
      %p141 = scmp.ne.s32.totalorder %s136, %s138
      %p142 = scmp.eq.s32.totalorder %s18, 0
      %p143 = por %p141, %p142
      %p144 = scmp.ne.s32.totalorder %s136, %s138
      %p145 = scmp.eq.s32.totalorder %s23, 1
      %p146 = por %p144, %p145
      %p147 = scmp.ne.s32.totalorder %s138, %s139
      %p148 = scmp.eq.s32.totalorder %s23, 0
      %p149 = por %p147, %p148
      %p150 = scmp.ne.s32.totalorder %s138, %s139
      %p151 = scmp.eq.s32.totalorder %s24, 1
      %p152 = por %p150, %p151
      %p154 = scmp.ne.s32.totalorder %s139, %s153
      %p155 = scmp.eq.s32.totalorder %s24, 0
      %p156 = por %p154, %p155
      %s158 = sadd.s32 %s157, 1
      %p161 = scmp.eq.s32.totalorder %s18, 1
      %p162 = scmp.ne.s32.totalorder %s157, %s159
      %p163 = scmp.eq.s32.totalorder %s18, 0
      %p164 = por %p162, %p163
      %p165 = scmp.ne.s32.totalorder %s157, %s159
      %p166 = scmp.eq.s32.totalorder %s23, 1
      %p167 = por %p165, %p166
      %p168 = scmp.ne.s32.totalorder %s159, %s160
      %p169 = scmp.eq.s32.totalorder %s23, 0
      %p170 = por %p168, %p169
      %p171 = scmp.ne.s32.totalorder %s159, %s160
      %p172 = scmp.eq.s32.totalorder %s24, 1
      %p173 = por %p171, %p172
      %p175 = scmp.ne.s32.totalorder %s160, %s174
      %p176 = scmp.eq.s32.totalorder %s24, 0
      %p177 = por %p175, %p176
      %s178 = ssub.s32 %s18, %s25
      %p179 = scmp.eq.s32.totalorder %s178, 0
      %s181 = sadd.s32 %s180, 1
      %s182 = scalar_select %p179, %s180, %s181
      %p185 = pneg %p179
      %p186 = scmp.eq.s32.totalorder %s18, 1
      %p187 = por %p185, %p186
      %p188 = scmp.ne.s32.totalorder %s180, %s183
      %p189 = scmp.eq.s32.totalorder %s18, 0
      %p190 = por %p188, %p189
      %p191 = scmp.ne.s32.totalorder %s180, %s183
      %p192 = scmp.eq.s32.totalorder %s23, 1
      %p193 = por %p191, %p192
      %p194 = scmp.ne.s32.totalorder %s183, %s184
      %p195 = scmp.eq.s32.totalorder %s23, 0
      %p196 = por %p194, %p195
      %p197 = scmp.ne.s32.totalorder %s183, %s184
      %p198 = scmp.eq.s32.totalorder %s24, 1
      %p199 = por %p197, %p198
      %p201 = scmp.ne.s32.totalorder %s184, %s200
      %p202 = scmp.eq.s32.totalorder %s24, 0
      %p203 = por %p201, %p202
      %s204 = ssub.s32 %s18, %s25
      %p205 = scmp.eq.s32.totalorder %s204, 0
      %s207 = sadd.s32 %s206, 1
      %s208 = scalar_select %p205, %s206, %s207
      %p211 = pneg %p205
      %p212 = scmp.eq.s32.totalorder %s18, 1
      %p213 = por %p211, %p212
      %p214 = scmp.ne.s32.totalorder %s206, %s209
      %p215 = scmp.eq.s32.totalorder %s18, 0
      %p216 = por %p214, %p215
      %p217 = scmp.ne.s32.totalorder %s206, %s209
      %p218 = scmp.eq.s32.totalorder %s23, 1
      %p219 = por %p217, %p218
      %p220 = scmp.ne.s32.totalorder %s209, %s210
      %p221 = scmp.eq.s32.totalorder %s23, 0
      %p222 = por %p220, %p221
      %p223 = scmp.ne.s32.totalorder %s209, %s210
      %p224 = scmp.eq.s32.totalorder %s24, 1
      %p225 = por %p223, %p224
      %p227 = scmp.ne.s32.totalorder %s210, %s226
      %p228 = scmp.eq.s32.totalorder %s24, 0
      %p229 = por %p227, %p228
      %p230 = scmp.le.s32.totalorder 1, %s18
      %p231 = scmp.lt.s32.totalorder %s18, 3
      %p232 = pnand %p230, %p231
      %p233 = pneg %p232
      // Predicated region
      $region9: #{enterprise_transformer_layer.1} parent=5 // pred_check
        _
      $region10: #{enterprise_transformer_layer.1} parent=5 // pred_check_branch
        %235 = sbr.rel (%p232) target = $region12
      $region11: #{enterprise_transformer_layer.1} parent=5 // pred_region
        %s236 = ssub.s32 %s18, 1
        // Predicated region
        $region13: #{enterprise_transformer_layer.1} parent=11 // pred_check
          %p237 = pneg %p65
        $region14: #{enterprise_transformer_layer.1} parent=11 // pred_check_branch
          %239 = sbr.rel (%p237) target = $region16
        $region15: #{enterprise_transformer_layer.1} parent=11 // pred_region
          _
        $region16: #{enterprise_transformer_layer.1} parent=11 // pred_fallthru
          _
        // Predicated region
        $region17: #{enterprise_transformer_layer.1} parent=11 // pred_check
          %p240 = pneg %p86
        $region18: #{enterprise_transformer_layer.1} parent=11 // pred_check_branch
          %242 = sbr.rel (%p240) target = $region20
        $region19: #{enterprise_transformer_layer.1} parent=11 // pred_region
          _
        $region20: #{enterprise_transformer_layer.1} parent=11 // pred_fallthru
          _
        // Predicated region
        $region21: #{enterprise_transformer_layer.1} parent=11 // pred_check
          %p243 = pneg %p107
        $region22: #{enterprise_transformer_layer.1} parent=11 // pred_check_branch
          %245 = sbr.rel (%p243) target = $region24
        $region23: #{enterprise_transformer_layer.1} parent=11 // pred_region
          _
        $region24: #{enterprise_transformer_layer.1} parent=11 // pred_fallthru
          _
        // Predicated region
        $region25: #{enterprise_transformer_layer.1} parent=11 // pred_check
          %p246 = pneg %p128
        $region26: #{enterprise_transformer_layer.1} parent=11 // pred_check_branch
          %248 = sbr.rel (%p246) target = $region28
        $region27: #{enterprise_transformer_layer.1} parent=11 // pred_region
          _
        $region28: #{enterprise_transformer_layer.1} parent=11 // pred_fallthru
          _
        // Predicated region
        $region29: #{enterprise_transformer_layer.1} parent=11 // pred_check
          %p249 = pneg %p149
        $region30: #{enterprise_transformer_layer.1} parent=11 // pred_check_branch
          %251 = sbr.rel (%p249) target = $region32
        $region31: #{enterprise_transformer_layer.1} parent=11 // pred_region
          _
        $region32: #{enterprise_transformer_layer.1} parent=11 // pred_fallthru
          _
        // Predicated region
        $region33: #{enterprise_transformer_layer.1} parent=11 // pred_check
          %p252 = pneg %p170
        $region34: #{enterprise_transformer_layer.1} parent=11 // pred_check_branch
          %254 = sbr.rel (%p252) target = $region36
        $region35: #{enterprise_transformer_layer.1} parent=11 // pred_region
          _
        $region36: #{enterprise_transformer_layer.1} parent=11 // pred_fallthru
          _
      $region12: #{enterprise_transformer_layer.1} parent=5 // pred_fallthru
        _
      %p255 = scmp.lt.s32.totalorder %s18, 2
      // Predicated region
      $region37: #{enterprise_transformer_layer.1} parent=5 // pred_check
        %p256 = pneg %p255
      $region38: #{enterprise_transformer_layer.1} parent=5 // pred_check_branch
        %258 = sbr.rel (%p256) target = $region40
      $region39: #{enterprise_transformer_layer.1} parent=5 // pred_region
        // Predicated region
        $region41: #{enterprise_transformer_layer.1} parent=39 // pred_check
          %p259 = pneg %p38
        $region42: #{enterprise_transformer_layer.1} parent=39 // pred_check_branch
          %261 = sbr.rel (%p259) target = $region44
        $region43: #{enterprise_transformer_layer.1} parent=39 // pred_region
          %p262 = scmp.lt.s32.totalorder %s18, 1
          %s263 = scalar_select %p262, %s18, 1
          %s264 = smul.addr %s263, 8
          %s265 = scalar_lea.vmem %s0, %s264
        $region44: #{enterprise_transformer_layer.1} parent=39 // pred_fallthru
          _
      $region40: #{enterprise_transformer_layer.1} parent=5 // pred_fallthru
        _
      %p266 = scmp.le.s32.totalorder 1, %s18
      %p267 = scmp.lt.s32.totalorder %s18, 3
      %p268 = pnand %p266, %p267
      %p269 = pneg %p268
      // Predicated region
      $region45: #{enterprise_transformer_layer.1} parent=5 // pred_check
        _
      $region46: #{enterprise_transformer_layer.1} parent=5 // pred_check_branch
        %271 = sbr.rel (%p268) target = $region48
      $region47: #{enterprise_transformer_layer.1} parent=5 // pred_region
        %s272 = ssub.s32 %s18, 1
        %p273 = scmp.lt.s32.totalorder %s23, 1
        %s274 = scalar_select %p273, %s23, 1
        %s275 = smul.addr %s274, 8
        %s276 = scalar_lea.vmem %s0, %s275
        %p277 = pneg %p44
        %p278 = pneg %p41
        %p279 = pneg %p65
        %p280 = pneg %p62
        %p281 = pneg %p86
        %p282 = pneg %p83
        %p283 = pneg %p107
        %p284 = pneg %p104
        %p285 = pneg %p128
        %p286 = pneg %p125
        %p287 = pneg %p149
        %p288 = pneg %p146
        %p289 = pneg %p170
        %p290 = pneg %p167
        %p291 = pneg %p196
        %p292 = pneg %p193
        %s293 = sand.u32 %s183, 1
        %s294 = scalar_lea.sflag [#allocation3], %s293
        %s295 = sand.u32 %s183, 1
        %s296 = smul.addr %s295, 8
        %s297 = scalar_lea.vmem [#allocation2], %s296
        %p298 = pneg %p222
        %p299 = pneg %p219
        %p300 = scmp.lt.s32.totalorder %s23, 1
        %s301 = scalar_select %p300, %s23, 1
        %s302 = smul.addr %s301, 8
        %s303 = scalar_lea.vmem %s8, %s302
        %p304 = scmp.lt.s32.totalorder %s23, 1
        %s305 = scalar_select %p304, %s23, 1
        %s306 = smul.addr %s305, 8
        %s307 = scalar_lea.vmem %s0, %s306
        %p308 = scmp.lt.s32.totalorder %s23, 1
        %s309 = scalar_select %p308, %s23, 1
        %s310 = smul.addr %s309, 8
        %s311 = scalar_lea.vmem %s8, %s310
        %v312 = vld [vmem:[%s307] sm:$0xff]
        %vm313 = vcmask 261120
        %v314 = vsel %vm313, %v312, 0.0
        %315 = vadd.xlane.f32.xlu0 %v314
        %v316 = vpop.xlane.xlu0 %315
        %v317 = vrcp.pop 32.0
        %v318 = vmul.f32 %v316, %v317
        %v319 = vsub.f32 %v312, %v318
        %v320 = vmul.f32 %v319, %v319
        %v321 = vsel %vm313, %v320, 0.0
        %322 = vadd.xlane.f32.xlu0 %v321
        %v323 = vpop.xlane.xlu0 %322
        %v324 = vmul.f32 %v323, %v317
        %v325 = vadd.f32 %v324, 1e-05
        %v326 = vrsqrt.pop %v325
        %v327 = vmul.f32 %v319, %v326
        %v328 = vld [vmem:[%s1] sm:$0xff]
        %v329 = vld [vmem:[%s1 + $0x8] sm:$0xff]
        %v330 = vld [vmem:[%s1 + $0x10] sm:$0xff]
        %v331 = vld [vmem:[%s1 + $0x18] sm:$0xff]
        %v332 = vld [vmem:[%s2] sm:$0x1]
        %v334 = vlaneseq
        %v335 = vshrl.u32 %v334, 7
        %v336 = vsub.s32 0, %v335
        %v337 = vrot.slane %v332, %v336
        %v340 = vsel %vm313, %v327, 0
        %342 = vmatprep.subr.mxu0 0.0
        %343 = vmatpush1.msra.mxu0 0.0
        %344 = vmatprep.subr.mxu0 0.0
        %345 = vmatpush1.msra.mxu0 0.0
        %346 = vmatprep.subr.mxu0 0.0
        %347 = vmatpush1.msra.mxu0 0.0
        %348 = vmatprep.subr.mxu0 0.0
        %349 = vmatpush1.msra.mxu0 0.0
        %350 = vmatprep.subr.mxu0 0.0
        %351 = vmatpush1.msra.mxu0 0.0
        %352 = vmatprep.subr.mxu0 0.0
        %353 = vmatpush1.msra.mxu0 0.0
        %354 = vmatprep.subr.mxu0 0.0
        %355 = vmatpush1.msra.mxu0 0.0
        %356 = vmatprep.subr.mxu0 0.0
        %357 = vmatpush1.msra.mxu0 0.0
        %358 = vmatprep.subr.mxu0 0.0
        %359 = vmatpush1.msra.mxu0 0.0
        %360 = vmatprep.subr.mxu0 0.0
        %361 = vmatpush1.msra.mxu0 0.0
        %362 = vmatprep.subr.mxu0 0.0
        %363 = vmatpush1.msra.mxu0 0.0
        %364 = vmatprep.subr.mxu0 0.0
        %365 = vmatpush1.msra.mxu0 0.0
        %366 = vmatprep.subr.mxu0 0.0
        %v367 = vand.u32 %v331, 4294901760
        %368 = vmatpush1.msra.mxu0 %v367
        %369 = vmatprep.subr.mxu0 0.0
        %v370 = vand.u32 %v330, 4294901760
        %371 = vmatpush1.msra.mxu0 %v370
        %372 = vmatprep.subr.mxu0 0.0
        %v373 = vand.u32 %v329, 4294901760
        %374 = vmatpush1.msra.mxu0 %v373
        %375 = vmatprep.subr.mxu0 0.0
        %v376 = vand.u32 %v328, 4294901760
        %377 = vmatpush1.msra.mxu0 %v376
        %378 = vmatprep.subr.mxu0 0.0
        %379 = vmatpush2.msra.mxu0 0.0
        %380 = vmatprep.subr.mxu0 0.0
        %381 = vmatpush2.msra.mxu0 0.0
        %382 = vmatprep.subr.mxu0 0.0
        %383 = vmatpush2.msra.mxu0 0.0
        %384 = vmatprep.subr.mxu0 0.0
        %385 = vmatpush2.msra.mxu0 0.0
        %386 = vmatprep.subr.mxu0 0.0
        %387 = vmatpush2.msra.mxu0 0.0
        %388 = vmatprep.subr.mxu0 0.0
        %389 = vmatpush2.msra.mxu0 0.0
        %390 = vmatprep.subr.mxu0 0.0
        %391 = vmatpush2.msra.mxu0 0.0
        %392 = vmatprep.subr.mxu0 0.0
        %393 = vmatpush2.msra.mxu0 0.0
        %394 = vmatprep.subr.mxu0 0.0
        %395 = vmatpush2.msra.mxu0 0.0
        %396 = vmatprep.subr.mxu0 0.0
        %397 = vmatpush2.msra.mxu0 0.0
        %398 = vmatprep.subr.mxu0 0.0
        %399 = vmatpush2.msra.mxu0 0.0
        %400 = vmatprep.subr.mxu0 0.0
        %401 = vmatpush2.msra.mxu0 0.0
        %402 = vmatprep.subr.mxu0 0.0
        %403 = vmatpush2.msra.mxu0 0.0
        %404 = vmatprep.subr.mxu0 0.0
        %405 = vmatpush2.msra.mxu0 0.0
        %406 = vmatprep.subr.mxu0 0.0
        %407 = vmatpush2.msra.mxu0 0.0
        %408 = vmatprep.subr.mxu0 0.0
        %409 = vmatpush2.msra.mxu0 0.0
        %410 = vmatprep.mubr.f32.mxu0 0.0
        %v411 = vand.u32 %v340, 4294901760
        %v412 = vsub.f32 %v340, %v411
        %v413 = vand.u32 %v412, 4294901760
        %v414 = vsub.f32 %v412, %v413
        %v415 = vand.u32 %v414, 4294901760
        %416 = vmatmul.mubr.f32.gmra.mxu0 %v415
        %v417 = vpop.f32.mrf.mxu0
        %v418 = vadd.f32 %v337, %v417
        %v419 = vpop.f32.mrf.mxu0
        %420 = vdwg.mxu0
        %421 = vmatprep.subr.mxu0 0.0
        %422 = vmatpush1.msra.mxu0 0.0
        %423 = vmatprep.subr.mxu0 0.0
        %424 = vmatpush1.msra.mxu0 0.0
        %425 = vmatprep.subr.mxu0 0.0
        %426 = vmatpush1.msra.mxu0 0.0
        %427 = vmatprep.subr.mxu0 0.0
        %428 = vmatpush1.msra.mxu0 0.0
        %429 = vmatprep.subr.mxu0 0.0
        %430 = vmatpush1.msra.mxu0 0.0
        %431 = vmatprep.subr.mxu0 0.0
        %432 = vmatpush1.msra.mxu0 0.0
        %433 = vmatprep.subr.mxu0 0.0
        %434 = vmatpush1.msra.mxu0 0.0
        %435 = vmatprep.subr.mxu0 0.0
        %436 = vmatpush1.msra.mxu0 0.0
        %437 = vmatprep.subr.mxu0 0.0
        %438 = vmatpush1.msra.mxu0 0.0
        %439 = vmatprep.subr.mxu0 0.0
        %440 = vmatpush1.msra.mxu0 0.0
        %441 = vmatprep.subr.mxu0 0.0
        %442 = vmatpush1.msra.mxu0 0.0
        %443 = vmatprep.subr.mxu0 0.0
        %444 = vmatpush1.msra.mxu0 0.0
        %445 = vmatprep.subr.mxu0 0.0
        %v446 = vand.u32 %v331, 4294901760
        %v447 = vsub.f32 %v331, %v446
        %v448 = vand.u32 %v447, 4294901760
        %v449 = vsub.f32 %v447, %v448
        %v450 = vand.u32 %v449, 4294901760
        %451 = vmatpush1.msra.mxu0 %v450
        %452 = vmatprep.subr.mxu0 0.0
        %v453 = vand.u32 %v330, 4294901760
        %v454 = vsub.f32 %v330, %v453
        %v455 = vand.u32 %v454, 4294901760
        %v456 = vsub.f32 %v454, %v455
        %v457 = vand.u32 %v456, 4294901760
        %458 = vmatpush1.msra.mxu0 %v457
        %459 = vmatprep.subr.mxu0 0.0
        %v460 = vand.u32 %v329, 4294901760
        %v461 = vsub.f32 %v329, %v460
        %v462 = vand.u32 %v461, 4294901760
        %v463 = vsub.f32 %v461, %v462
        %v464 = vand.u32 %v463, 4294901760
        %465 = vmatpush1.msra.mxu0 %v464
        %466 = vmatprep.subr.mxu0 0.0
        %v467 = vand.u32 %v328, 4294901760
        %v468 = vsub.f32 %v328, %v467
        %v469 = vand.u32 %v468, 4294901760
        %v470 = vsub.f32 %v468, %v469
        %v471 = vand.u32 %v470, 4294901760
        %472 = vmatpush1.msra.mxu0 %v471
        %473 = vmatprep.subr.mxu0 0.0
        %474 = vmatpush2.msra.mxu0 0.0
        %475 = vmatprep.subr.mxu0 0.0
        %476 = vmatpush2.msra.mxu0 0.0
        %477 = vmatprep.subr.mxu0 0.0
        %478 = vmatpush2.msra.mxu0 0.0
        %479 = vmatprep.subr.mxu0 0.0
        %480 = vmatpush2.msra.mxu0 0.0
        %481 = vmatprep.subr.mxu0 0.0
        %482 = vmatpush2.msra.mxu0 0.0
        %483 = vmatprep.subr.mxu0 0.0
        %484 = vmatpush2.msra.mxu0 0.0
        %485 = vmatprep.subr.mxu0 0.0
        %486 = vmatpush2.msra.mxu0 0.0
        %487 = vmatprep.subr.mxu0 0.0
        %488 = vmatpush2.msra.mxu0 0.0
        %489 = vmatprep.subr.mxu0 0.0
        %490 = vmatpush2.msra.mxu0 0.0
        %491 = vmatprep.subr.mxu0 0.0
        %492 = vmatpush2.msra.mxu0 0.0
        %493 = vmatprep.subr.mxu0 0.0
        %494 = vmatpush2.msra.mxu0 0.0
        %495 = vmatprep.subr.mxu0 0.0
        %496 = vmatpush2.msra.mxu0 0.0
        %497 = vmatprep.subr.mxu0 0.0
        %498 = vmatpush2.msra.mxu0 0.0
        %499 = vmatprep.subr.mxu0 0.0
        %500 = vmatpush2.msra.mxu0 0.0
        %501 = vmatprep.subr.mxu0 0.0
        %502 = vmatpush2.msra.mxu0 0.0
        %503 = vmatprep.subr.mxu0 0.0
        %504 = vmatpush2.msra.mxu0 0.0
        %505 = vmatprep.mubr.f32.mxu0 0.0
        %v506 = vand.u32 %v340, 4294901760
        %507 = vmatmul.mubr.f32.gmra.mxu0 %v506
        %v508 = vpop.f32.mrf.mxu0
        %v509 = vadd.f32 %v418, %v508
        %v510 = vpop.f32.mrf.mxu0
        %511 = vdwg.mxu0
        %512 = vmatprep.subr.mxu0 0.0
        %513 = vmatpush1.msra.mxu0 0.0
        %514 = vmatprep.subr.mxu0 0.0
        %515 = vmatpush1.msra.mxu0 0.0
        %516 = vmatprep.subr.mxu0 0.0
        %517 = vmatpush1.msra.mxu0 0.0
        %518 = vmatprep.subr.mxu0 0.0
        %519 = vmatpush1.msra.mxu0 0.0
        %520 = vmatprep.subr.mxu0 0.0
        %521 = vmatpush1.msra.mxu0 0.0
        %522 = vmatprep.subr.mxu0 0.0
        %523 = vmatpush1.msra.mxu0 0.0
        %524 = vmatprep.subr.mxu0 0.0
        %525 = vmatpush1.msra.mxu0 0.0
        %526 = vmatprep.subr.mxu0 0.0
        %527 = vmatpush1.msra.mxu0 0.0
        %528 = vmatprep.subr.mxu0 0.0
        %529 = vmatpush1.msra.mxu0 0.0
        %530 = vmatprep.subr.mxu0 0.0
        %531 = vmatpush1.msra.mxu0 0.0
        %532 = vmatprep.subr.mxu0 0.0
        %533 = vmatpush1.msra.mxu0 0.0
        %534 = vmatprep.subr.mxu0 0.0
        %535 = vmatpush1.msra.mxu0 0.0
        %536 = vmatprep.subr.mxu0 0.0
        %v537 = vand.u32 %v331, 4294901760
        %v538 = vsub.f32 %v331, %v537
        %539 = vmatpush1.msra.mxu0 %v538
        %540 = vmatprep.subr.mxu0 0.0
        %v541 = vand.u32 %v330, 4294901760
        %v542 = vsub.f32 %v330, %v541
        %543 = vmatpush1.msra.mxu0 %v542
        %544 = vmatprep.subr.mxu0 0.0
        %v545 = vand.u32 %v329, 4294901760
        %v546 = vsub.f32 %v329, %v545
        %547 = vmatpush1.msra.mxu0 %v546
        %548 = vmatprep.subr.mxu0 0.0
        %v549 = vand.u32 %v328, 4294901760
        %v550 = vsub.f32 %v328, %v549
        %551 = vmatpush1.msra.mxu0 %v550
        %552 = vmatprep.subr.mxu0 0.0
        %553 = vmatpush2.msra.mxu0 0.0
        %554 = vmatprep.subr.mxu0 0.0
        %555 = vmatpush2.msra.mxu0 0.0
        %556 = vmatprep.subr.mxu0 0.0
        %557 = vmatpush2.msra.mxu0 0.0
        %558 = vmatprep.subr.mxu0 0.0
        %559 = vmatpush2.msra.mxu0 0.0
        %560 = vmatprep.subr.mxu0 0.0
        %561 = vmatpush2.msra.mxu0 0.0
        %562 = vmatprep.subr.mxu0 0.0
        %563 = vmatpush2.msra.mxu0 0.0
        %564 = vmatprep.subr.mxu0 0.0
        %565 = vmatpush2.msra.mxu0 0.0
        %566 = vmatprep.subr.mxu0 0.0
        %567 = vmatpush2.msra.mxu0 0.0
        %568 = vmatprep.subr.mxu0 0.0
        %569 = vmatpush2.msra.mxu0 0.0
        %570 = vmatprep.subr.mxu0 0.0
        %571 = vmatpush2.msra.mxu0 0.0
        %572 = vmatprep.subr.mxu0 0.0
        %573 = vmatpush2.msra.mxu0 0.0
        %574 = vmatprep.subr.mxu0 0.0
        %575 = vmatpush2.msra.mxu0 0.0
        %576 = vmatprep.subr.mxu0 0.0
        %577 = vmatpush2.msra.mxu0 0.0
        %578 = vmatprep.subr.mxu0 0.0
        %579 = vmatpush2.msra.mxu0 0.0
        %580 = vmatprep.subr.mxu0 0.0
        %581 = vmatpush2.msra.mxu0 0.0
        %582 = vmatprep.subr.mxu0 0.0
        %583 = vmatpush2.msra.mxu0 0.0
        %584 = vmatprep.mubr.f32.mxu0 0.0
        %v585 = vand.u32 %v340, 4294901760
        %v586 = vsub.f32 %v340, %v585
        %587 = vmatmul.mubr.f32.gmra.mxu0 %v586
        %v588 = vpop.f32.mrf.mxu0
        %v589 = vadd.f32 %v509, %v588
        %v590 = vpop.f32.mrf.mxu0
        %591 = vdwg.mxu0
        %592 = vmatprep.subr.mxu0 0.0
        %593 = vmatpush1.msra.mxu0 0.0
        %594 = vmatprep.subr.mxu0 0.0
        %595 = vmatpush1.msra.mxu0 0.0
        %596 = vmatprep.subr.mxu0 0.0
        %597 = vmatpush1.msra.mxu0 0.0
        %598 = vmatprep.subr.mxu0 0.0
        %599 = vmatpush1.msra.mxu0 0.0
        %600 = vmatprep.subr.mxu0 0.0
        %601 = vmatpush1.msra.mxu0 0.0
        %602 = vmatprep.subr.mxu0 0.0
        %603 = vmatpush1.msra.mxu0 0.0
        %604 = vmatprep.subr.mxu0 0.0
        %605 = vmatpush1.msra.mxu0 0.0
        %606 = vmatprep.subr.mxu0 0.0
        %607 = vmatpush1.msra.mxu0 0.0
        %608 = vmatprep.subr.mxu0 0.0
        %609 = vmatpush1.msra.mxu0 0.0
        %610 = vmatprep.subr.mxu0 0.0
        %611 = vmatpush1.msra.mxu0 0.0
        %612 = vmatprep.subr.mxu0 0.0
        %613 = vmatpush1.msra.mxu0 0.0
        %614 = vmatprep.subr.mxu0 0.0
        %615 = vmatpush1.msra.mxu0 0.0
        %616 = vmatprep.subr.mxu0 0.0
        %v617 = vand.u32 %v331, 4294901760
        %618 = vmatpush1.msra.mxu0 %v617
        %619 = vmatprep.subr.mxu0 0.0
        %v620 = vand.u32 %v330, 4294901760
        %621 = vmatpush1.msra.mxu0 %v620
        %622 = vmatprep.subr.mxu0 0.0
        %v623 = vand.u32 %v329, 4294901760
        %624 = vmatpush1.msra.mxu0 %v623
        %625 = vmatprep.subr.mxu0 0.0
        %v626 = vand.u32 %v328, 4294901760
        %627 = vmatpush1.msra.mxu0 %v626
        %628 = vmatprep.subr.mxu0 0.0
        %629 = vmatpush2.msra.mxu0 0.0
        %630 = vmatprep.subr.mxu0 0.0
        %631 = vmatpush2.msra.mxu0 0.0
        %632 = vmatprep.subr.mxu0 0.0
        %633 = vmatpush2.msra.mxu0 0.0
        %634 = vmatprep.subr.mxu0 0.0
        %635 = vmatpush2.msra.mxu0 0.0
        %636 = vmatprep.subr.mxu0 0.0
        %637 = vmatpush2.msra.mxu0 0.0
        %638 = vmatprep.subr.mxu0 0.0
        %639 = vmatpush2.msra.mxu0 0.0
        %640 = vmatprep.subr.mxu0 0.0
        %641 = vmatpush2.msra.mxu0 0.0
        %642 = vmatprep.subr.mxu0 0.0
        %643 = vmatpush2.msra.mxu0 0.0
        %644 = vmatprep.subr.mxu0 0.0
        %645 = vmatpush2.msra.mxu0 0.0
        %646 = vmatprep.subr.mxu0 0.0
        %647 = vmatpush2.msra.mxu0 0.0
        %648 = vmatprep.subr.mxu0 0.0
        %649 = vmatpush2.msra.mxu0 0.0
        %650 = vmatprep.subr.mxu0 0.0
        %651 = vmatpush2.msra.mxu0 0.0
        %652 = vmatprep.subr.mxu0 0.0
        %653 = vmatpush2.msra.mxu0 0.0
        %654 = vmatprep.subr.mxu0 0.0
        %655 = vmatpush2.msra.mxu0 0.0
        %656 = vmatprep.subr.mxu0 0.0
        %657 = vmatpush2.msra.mxu0 0.0
        %658 = vmatprep.subr.mxu0 0.0
        %659 = vmatpush2.msra.mxu0 0.0
        %660 = vmatprep.mubr.f32.mxu0 0.0
        %v661 = vand.u32 %v340, 4294901760
        %v662 = vsub.f32 %v340, %v661
        %v663 = vand.u32 %v662, 4294901760
        %664 = vmatmul.mubr.f32.gmra.mxu0 %v663
        %v665 = vpop.f32.mrf.mxu0
        %v666 = vadd.f32 %v589, %v665
        %v667 = vpop.f32.mrf.mxu0
        %668 = vdwg.mxu0
        %669 = vmatprep.subr.mxu0 0.0
        %670 = vmatpush1.msra.mxu0 0.0
        %671 = vmatprep.subr.mxu0 0.0
        %672 = vmatpush1.msra.mxu0 0.0
        %673 = vmatprep.subr.mxu0 0.0
        %674 = vmatpush1.msra.mxu0 0.0
        %675 = vmatprep.subr.mxu0 0.0
        %676 = vmatpush1.msra.mxu0 0.0
        %677 = vmatprep.subr.mxu0 0.0
        %678 = vmatpush1.msra.mxu0 0.0
        %679 = vmatprep.subr.mxu0 0.0
        %680 = vmatpush1.msra.mxu0 0.0
        %681 = vmatprep.subr.mxu0 0.0
        %682 = vmatpush1.msra.mxu0 0.0
        %683 = vmatprep.subr.mxu0 0.0
        %684 = vmatpush1.msra.mxu0 0.0
        %685 = vmatprep.subr.mxu0 0.0
        %686 = vmatpush1.msra.mxu0 0.0
        %687 = vmatprep.subr.mxu0 0.0
        %688 = vmatpush1.msra.mxu0 0.0
        %689 = vmatprep.subr.mxu0 0.0
        %690 = vmatpush1.msra.mxu0 0.0
        %691 = vmatprep.subr.mxu0 0.0
        %692 = vmatpush1.msra.mxu0 0.0
        %693 = vmatprep.subr.mxu0 0.0
        %v694 = vand.u32 %v331, 4294901760
        %v695 = vsub.f32 %v331, %v694
        %v696 = vand.u32 %v695, 4294901760
        %697 = vmatpush1.msra.mxu0 %v696
        %698 = vmatprep.subr.mxu0 0.0
        %v699 = vand.u32 %v330, 4294901760
        %v700 = vsub.f32 %v330, %v699
        %v701 = vand.u32 %v700, 4294901760
        %702 = vmatpush1.msra.mxu0 %v701
        %703 = vmatprep.subr.mxu0 0.0
        %v704 = vand.u32 %v329, 4294901760
        %v705 = vsub.f32 %v329, %v704
        %v706 = vand.u32 %v705, 4294901760
        %707 = vmatpush1.msra.mxu0 %v706
        %708 = vmatprep.subr.mxu0 0.0
        %v709 = vand.u32 %v328, 4294901760
        %v710 = vsub.f32 %v328, %v709
        %v711 = vand.u32 %v710, 4294901760
        %712 = vmatpush1.msra.mxu0 %v711
        %713 = vmatprep.subr.mxu0 0.0
        %714 = vmatpush2.msra.mxu0 0.0
        %715 = vmatprep.subr.mxu0 0.0
        %716 = vmatpush2.msra.mxu0 0.0
        %717 = vmatprep.subr.mxu0 0.0
        %718 = vmatpush2.msra.mxu0 0.0
        %719 = vmatprep.subr.mxu0 0.0
        %720 = vmatpush2.msra.mxu0 0.0
        %721 = vmatprep.subr.mxu0 0.0
        %722 = vmatpush2.msra.mxu0 0.0
        %723 = vmatprep.subr.mxu0 0.0
        %724 = vmatpush2.msra.mxu0 0.0
        %725 = vmatprep.subr.mxu0 0.0
        %726 = vmatpush2.msra.mxu0 0.0
        %727 = vmatprep.subr.mxu0 0.0
        %728 = vmatpush2.msra.mxu0 0.0
        %729 = vmatprep.subr.mxu0 0.0
        %730 = vmatpush2.msra.mxu0 0.0
        %731 = vmatprep.subr.mxu0 0.0
        %732 = vmatpush2.msra.mxu0 0.0
        %733 = vmatprep.subr.mxu0 0.0
        %734 = vmatpush2.msra.mxu0 0.0
        %735 = vmatprep.subr.mxu0 0.0
        %736 = vmatpush2.msra.mxu0 0.0
        %737 = vmatprep.subr.mxu0 0.0
        %738 = vmatpush2.msra.mxu0 0.0
        %739 = vmatprep.subr.mxu0 0.0
        %740 = vmatpush2.msra.mxu0 0.0
        %741 = vmatprep.subr.mxu0 0.0
        %742 = vmatpush2.msra.mxu0 0.0
        %743 = vmatprep.subr.mxu0 0.0
        %744 = vmatpush2.msra.mxu0 0.0
        %745 = vmatprep.mubr.f32.mxu0 0.0
        %v746 = vand.u32 %v340, 4294901760
        %747 = vmatmul.mubr.f32.gmra.mxu0 %v746
        %v748 = vpop.f32.mrf.mxu0
        %v749 = vadd.f32 %v666, %v748
        %v750 = vpop.f32.mrf.mxu0
        %751 = vdwg.mxu0
        %752 = vmatprep.subr.mxu0 0.0
        %753 = vmatpush1.msra.mxu0 0.0
        %754 = vmatprep.subr.mxu0 0.0
        %755 = vmatpush1.msra.mxu0 0.0
        %756 = vmatprep.subr.mxu0 0.0
        %757 = vmatpush1.msra.mxu0 0.0
        %758 = vmatprep.subr.mxu0 0.0
        %759 = vmatpush1.msra.mxu0 0.0
        %760 = vmatprep.subr.mxu0 0.0
        %761 = vmatpush1.msra.mxu0 0.0
        %762 = vmatprep.subr.mxu0 0.0
        %763 = vmatpush1.msra.mxu0 0.0
        %764 = vmatprep.subr.mxu0 0.0
        %765 = vmatpush1.msra.mxu0 0.0
        %766 = vmatprep.subr.mxu0 0.0
        %767 = vmatpush1.msra.mxu0 0.0
        %768 = vmatprep.subr.mxu0 0.0
        %769 = vmatpush1.msra.mxu0 0.0
        %770 = vmatprep.subr.mxu0 0.0
        %771 = vmatpush1.msra.mxu0 0.0
        %772 = vmatprep.subr.mxu0 0.0
        %773 = vmatpush1.msra.mxu0 0.0
        %774 = vmatprep.subr.mxu0 0.0
        %775 = vmatpush1.msra.mxu0 0.0
        %776 = vmatprep.subr.mxu0 0.0
        %v777 = vand.u32 %v331, 4294901760
        %778 = vmatpush1.msra.mxu0 %v777
        %779 = vmatprep.subr.mxu0 0.0
        %v780 = vand.u32 %v330, 4294901760
        %781 = vmatpush1.msra.mxu0 %v780
        %782 = vmatprep.subr.mxu0 0.0
        %v783 = vand.u32 %v329, 4294901760
        %784 = vmatpush1.msra.mxu0 %v783
        %785 = vmatprep.subr.mxu0 0.0
        %v786 = vand.u32 %v328, 4294901760
        %787 = vmatpush1.msra.mxu0 %v786
        %788 = vmatprep.subr.mxu0 0.0
        %789 = vmatpush2.msra.mxu0 0.0
        %790 = vmatprep.subr.mxu0 0.0
        %791 = vmatpush2.msra.mxu0 0.0
        %792 = vmatprep.subr.mxu0 0.0
        %793 = vmatpush2.msra.mxu0 0.0
        %794 = vmatprep.subr.mxu0 0.0
        %795 = vmatpush2.msra.mxu0 0.0
        %796 = vmatprep.subr.mxu0 0.0
        %797 = vmatpush2.msra.mxu0 0.0
        %798 = vmatprep.subr.mxu0 0.0
        %799 = vmatpush2.msra.mxu0 0.0
        %800 = vmatprep.subr.mxu0 0.0
        %801 = vmatpush2.msra.mxu0 0.0
        %802 = vmatprep.subr.mxu0 0.0
        %803 = vmatpush2.msra.mxu0 0.0
        %804 = vmatprep.subr.mxu0 0.0
        %805 = vmatpush2.msra.mxu0 0.0
        %806 = vmatprep.subr.mxu0 0.0
        %807 = vmatpush2.msra.mxu0 0.0
        %808 = vmatprep.subr.mxu0 0.0
        %809 = vmatpush2.msra.mxu0 0.0
        %810 = vmatprep.subr.mxu0 0.0
        %811 = vmatpush2.msra.mxu0 0.0
        %812 = vmatprep.subr.mxu0 0.0
        %813 = vmatpush2.msra.mxu0 0.0
        %814 = vmatprep.subr.mxu0 0.0
        %815 = vmatpush2.msra.mxu0 0.0
        %816 = vmatprep.subr.mxu0 0.0
        %817 = vmatpush2.msra.mxu0 0.0
        %818 = vmatprep.subr.mxu0 0.0
        %819 = vmatpush2.msra.mxu0 0.0
        %820 = vmatprep.mubr.f32.mxu0 0.0
        %v821 = vand.u32 %v340, 4294901760
        %822 = vmatmul.mubr.f32.gmra.mxu0 %v821
        %v823 = vpop.f32.mrf.mxu0
        %v824 = vadd.f32 %v749, %v823
        %v825 = vpop.f32.mrf.mxu0
        %826 = vdwg.mxu0
        %828 = vrot.lane.b32.xlu0 %v824, 96
        %v829 = vpop.permute.xlu0 %828
        %v830 = vsel %vm313, %v824, 0
        %v832 = vsel %vm313, %v829, 0
        %834 = vmatprep.subr.mxu0 0.0
        %835 = vmatpush1.xpose.msra.mxu0 0.0
        %836 = vmatprep.subr.mxu0 0.0
        %837 = vmatpush1.xpose.msra.mxu0 0.0
        %838 = vmatprep.subr.mxu0 0.0
        %839 = vmatpush1.xpose.msra.mxu0 0.0
        %840 = vmatprep.subr.mxu0 0.0
        %841 = vmatpush1.xpose.msra.mxu0 0.0
        %842 = vmatprep.subr.mxu0 0.0
        %843 = vmatpush1.xpose.msra.mxu0 0.0
        %844 = vmatprep.subr.mxu0 0.0
        %845 = vmatpush1.xpose.msra.mxu0 0.0
        %846 = vmatprep.subr.mxu0 0.0
        %847 = vmatpush1.xpose.msra.mxu0 0.0
        %848 = vmatprep.subr.mxu0 0.0
        %849 = vmatpush1.xpose.msra.mxu0 0.0
        %850 = vmatprep.subr.mxu0 0.0
        %851 = vmatpush1.xpose.msra.mxu0 0.0
        %852 = vmatprep.subr.mxu0 0.0
        %853 = vmatpush1.xpose.msra.mxu0 0.0
        %854 = vmatprep.subr.mxu0 0.0
        %855 = vmatpush1.xpose.msra.mxu0 0.0
        %856 = vmatprep.subr.mxu0 0.0
        %857 = vmatpush1.xpose.msra.mxu0 0.0
        %858 = vmatprep.subr.mxu0 0.0
        %859 = vmatpush1.xpose.msra.mxu0 0.0
        %860 = vmatprep.subr.mxu0 0.0
        %861 = vmatpush1.xpose.msra.mxu0 0.0
        %862 = vmatprep.subr.mxu0 0.0
        %863 = vmatpush1.xpose.msra.mxu0 0.0
        %864 = vmatprep.subr.mxu0 0.0
        %v865 = vand.u32 %v832, 4294901760
        %866 = vmatpush1.xpose.msra.mxu0 %v865
        %867 = vmatprep.subr.mxu0 0.0
        %868 = vmatpush2.xpose.msra.mxu0 0.0
        %869 = vmatprep.subr.mxu0 0.0
        %870 = vmatpush2.xpose.msra.mxu0 0.0
        %871 = vmatprep.subr.mxu0 0.0
        %872 = vmatpush2.xpose.msra.mxu0 0.0
        %873 = vmatprep.subr.mxu0 0.0
        %874 = vmatpush2.xpose.msra.mxu0 0.0
        %875 = vmatprep.subr.mxu0 0.0
        %876 = vmatpush2.xpose.msra.mxu0 0.0
        %877 = vmatprep.subr.mxu0 0.0
        %878 = vmatpush2.xpose.msra.mxu0 0.0
        %879 = vmatprep.subr.mxu0 0.0
        %880 = vmatpush2.xpose.msra.mxu0 0.0
        %881 = vmatprep.subr.mxu0 0.0
        %882 = vmatpush2.xpose.msra.mxu0 0.0
        %883 = vmatprep.subr.mxu0 0.0
        %884 = vmatpush2.xpose.msra.mxu0 0.0
        %885 = vmatprep.subr.mxu0 0.0
        %886 = vmatpush2.xpose.msra.mxu0 0.0
        %887 = vmatprep.subr.mxu0 0.0
        %888 = vmatpush2.xpose.msra.mxu0 0.0
        %889 = vmatprep.subr.mxu0 0.0
        %890 = vmatpush2.xpose.msra.mxu0 0.0
        %891 = vmatprep.subr.mxu0 0.0
        %892 = vmatpush2.xpose.msra.mxu0 0.0
        %893 = vmatprep.subr.mxu0 0.0
        %894 = vmatpush2.xpose.msra.mxu0 0.0
        %895 = vmatprep.subr.mxu0 0.0
        %896 = vmatpush2.xpose.msra.mxu0 0.0
        %897 = vmatprep.subr.mxu0 0.0
        %898 = vmatpush2.xpose.msra.mxu0 0.0
        %899 = vmatprep.mubr.f32.mxu0 0.0
        %v900 = vand.u32 %v830, 4294901760
        %v901 = vsub.f32 %v830, %v900
        %v902 = vand.u32 %v901, 4294901760
        %v903 = vsub.f32 %v901, %v902
        %v904 = vand.u32 %v903, 4294901760
        %905 = vmatmul.mubr.f32.gmra.mxu0 %v904
        %v906 = vpop.f32.mrf.mxu0
        %v907 = vadd.f32 0.0, %v906
        %v908 = vpop.f32.mrf.mxu0
        %909 = vdwg.mxu0
        %910 = vmatprep.subr.mxu0 0.0
        %911 = vmatpush1.xpose.msra.mxu0 0.0
        %912 = vmatprep.subr.mxu0 0.0
        %913 = vmatpush1.xpose.msra.mxu0 0.0
        %914 = vmatprep.subr.mxu0 0.0
        %915 = vmatpush1.xpose.msra.mxu0 0.0
        %916 = vmatprep.subr.mxu0 0.0
        %917 = vmatpush1.xpose.msra.mxu0 0.0
        %918 = vmatprep.subr.mxu0 0.0
        %919 = vmatpush1.xpose.msra.mxu0 0.0
        %920 = vmatprep.subr.mxu0 0.0
        %921 = vmatpush1.xpose.msra.mxu0 0.0
        %922 = vmatprep.subr.mxu0 0.0
        %923 = vmatpush1.xpose.msra.mxu0 0.0
        %924 = vmatprep.subr.mxu0 0.0
        %925 = vmatpush1.xpose.msra.mxu0 0.0
        %926 = vmatprep.subr.mxu0 0.0
        %927 = vmatpush1.xpose.msra.mxu0 0.0
        %928 = vmatprep.subr.mxu0 0.0
        %929 = vmatpush1.xpose.msra.mxu0 0.0
        %930 = vmatprep.subr.mxu0 0.0
        %931 = vmatpush1.xpose.msra.mxu0 0.0
        %932 = vmatprep.subr.mxu0 0.0
        %933 = vmatpush1.xpose.msra.mxu0 0.0
        %934 = vmatprep.subr.mxu0 0.0
        %935 = vmatpush1.xpose.msra.mxu0 0.0
        %936 = vmatprep.subr.mxu0 0.0
        %937 = vmatpush1.xpose.msra.mxu0 0.0
        %938 = vmatprep.subr.mxu0 0.0
        %939 = vmatpush1.xpose.msra.mxu0 0.0
        %940 = vmatprep.subr.mxu0 0.0
        %v941 = vand.u32 %v832, 4294901760
        %v942 = vsub.f32 %v832, %v941
        %v943 = vand.u32 %v942, 4294901760
        %v944 = vsub.f32 %v942, %v943
        %v945 = vand.u32 %v944, 4294901760
        %946 = vmatpush1.xpose.msra.mxu0 %v945
        %947 = vmatprep.subr.mxu0 0.0
        %948 = vmatpush2.xpose.msra.mxu0 0.0
        %949 = vmatprep.subr.mxu0 0.0
        %950 = vmatpush2.xpose.msra.mxu0 0.0
        %951 = vmatprep.subr.mxu0 0.0
        %952 = vmatpush2.xpose.msra.mxu0 0.0
        %953 = vmatprep.subr.mxu0 0.0
        %954 = vmatpush2.xpose.msra.mxu0 0.0
        %955 = vmatprep.subr.mxu0 0.0
        %956 = vmatpush2.xpose.msra.mxu0 0.0
        %957 = vmatprep.subr.mxu0 0.0
        %958 = vmatpush2.xpose.msra.mxu0 0.0
        %959 = vmatprep.subr.mxu0 0.0
        %960 = vmatpush2.xpose.msra.mxu0 0.0
        %961 = vmatprep.subr.mxu0 0.0
        %962 = vmatpush2.xpose.msra.mxu0 0.0
        %963 = vmatprep.subr.mxu0 0.0
        %964 = vmatpush2.xpose.msra.mxu0 0.0
        %965 = vmatprep.subr.mxu0 0.0
        %966 = vmatpush2.xpose.msra.mxu0 0.0
        %967 = vmatprep.subr.mxu0 0.0
        %968 = vmatpush2.xpose.msra.mxu0 0.0
        %969 = vmatprep.subr.mxu0 0.0
        %970 = vmatpush2.xpose.msra.mxu0 0.0
        %971 = vmatprep.subr.mxu0 0.0
        %972 = vmatpush2.xpose.msra.mxu0 0.0
        %973 = vmatprep.subr.mxu0 0.0
        %974 = vmatpush2.xpose.msra.mxu0 0.0
        %975 = vmatprep.subr.mxu0 0.0
        %976 = vmatpush2.xpose.msra.mxu0 0.0
        %977 = vmatprep.subr.mxu0 0.0
        %978 = vmatpush2.xpose.msra.mxu0 0.0
        %979 = vmatprep.mubr.f32.mxu0 0.0
        %v980 = vand.u32 %v830, 4294901760
        %981 = vmatmul.mubr.f32.gmra.mxu0 %v980
        %v982 = vpop.f32.mrf.mxu0
        %v983 = vadd.f32 %v907, %v982
        %v984 = vpop.f32.mrf.mxu0
        %985 = vdwg.mxu0
        %986 = vmatprep.subr.mxu0 0.0
        %987 = vmatpush1.xpose.msra.mxu0 0.0
        %988 = vmatprep.subr.mxu0 0.0
        %989 = vmatpush1.xpose.msra.mxu0 0.0
        %990 = vmatprep.subr.mxu0 0.0
        %991 = vmatpush1.xpose.msra.mxu0 0.0
        %992 = vmatprep.subr.mxu0 0.0
        %993 = vmatpush1.xpose.msra.mxu0 0.0
        %994 = vmatprep.subr.mxu0 0.0
        %995 = vmatpush1.xpose.msra.mxu0 0.0
        %996 = vmatprep.subr.mxu0 0.0
        %997 = vmatpush1.xpose.msra.mxu0 0.0
        %998 = vmatprep.subr.mxu0 0.0
        %999 = vmatpush1.xpose.msra.mxu0 0.0
        %1000 = vmatprep.subr.mxu0 0.0
        %1001 = vmatpush1.xpose.msra.mxu0 0.0
        %1002 = vmatprep.subr.mxu0 0.0
        %1003 = vmatpush1.xpose.msra.mxu0 0.0
        %1004 = vmatprep.subr.mxu0 0.0
        %1005 = vmatpush1.xpose.msra.mxu0 0.0
        %1006 = vmatprep.subr.mxu0 0.0
        %1007 = vmatpush1.xpose.msra.mxu0 0.0
        %1008 = vmatprep.subr.mxu0 0.0
        %1009 = vmatpush1.xpose.msra.mxu0 0.0
        %1010 = vmatprep.subr.mxu0 0.0
        %1011 = vmatpush1.xpose.msra.mxu0 0.0
        %1012 = vmatprep.subr.mxu0 0.0
        %1013 = vmatpush1.xpose.msra.mxu0 0.0
        %1014 = vmatprep.subr.mxu0 0.0
        %1015 = vmatpush1.xpose.msra.mxu0 0.0
        %1016 = vmatprep.subr.mxu0 0.0
        %v1017 = vand.u32 %v832, 4294901760
        %v1018 = vsub.f32 %v832, %v1017
        %1019 = vmatpush1.xpose.msra.mxu0 %v1018
        %1020 = vmatprep.subr.mxu0 0.0
        %1021 = vmatpush2.xpose.msra.mxu0 0.0
        %1022 = vmatprep.subr.mxu0 0.0
        %1023 = vmatpush2.xpose.msra.mxu0 0.0
        %1024 = vmatprep.subr.mxu0 0.0
        %1025 = vmatpush2.xpose.msra.mxu0 0.0
        %1026 = vmatprep.subr.mxu0 0.0
        %1027 = vmatpush2.xpose.msra.mxu0 0.0
        %1028 = vmatprep.subr.mxu0 0.0
        %1029 = vmatpush2.xpose.msra.mxu0 0.0
        %1030 = vmatprep.subr.mxu0 0.0
        %1031 = vmatpush2.xpose.msra.mxu0 0.0
        %1032 = vmatprep.subr.mxu0 0.0
        %1033 = vmatpush2.xpose.msra.mxu0 0.0
        %1034 = vmatprep.subr.mxu0 0.0
        %1035 = vmatpush2.xpose.msra.mxu0 0.0
        %1036 = vmatprep.subr.mxu0 0.0
        %1037 = vmatpush2.xpose.msra.mxu0 0.0
        %1038 = vmatprep.subr.mxu0 0.0
        %1039 = vmatpush2.xpose.msra.mxu0 0.0
        %1040 = vmatprep.subr.mxu0 0.0
        %1041 = vmatpush2.xpose.msra.mxu0 0.0
        %1042 = vmatprep.subr.mxu0 0.0
        %1043 = vmatpush2.xpose.msra.mxu0 0.0
        %1044 = vmatprep.subr.mxu0 0.0
        %1045 = vmatpush2.xpose.msra.mxu0 0.0
        %1046 = vmatprep.subr.mxu0 0.0
        %1047 = vmatpush2.xpose.msra.mxu0 0.0
        %1048 = vmatprep.subr.mxu0 0.0
        %1049 = vmatpush2.xpose.msra.mxu0 0.0
        %1050 = vmatprep.subr.mxu0 0.0
        %1051 = vmatpush2.xpose.msra.mxu0 0.0
        %1052 = vmatprep.mubr.f32.mxu0 0.0
        %v1053 = vand.u32 %v830, 4294901760
        %v1054 = vsub.f32 %v830, %v1053
        %1055 = vmatmul.mubr.f32.gmra.mxu0 %v1054
        %v1056 = vpop.f32.mrf.mxu0
        %v1057 = vadd.f32 %v983, %v1056
        %v1058 = vpop.f32.mrf.mxu0
        %1059 = vdwg.mxu0
        %1060 = vmatprep.subr.mxu0 0.0
        %1061 = vmatpush1.xpose.msra.mxu0 0.0
        %1062 = vmatprep.subr.mxu0 0.0
        %1063 = vmatpush1.xpose.msra.mxu0 0.0
        %1064 = vmatprep.subr.mxu0 0.0
        %1065 = vmatpush1.xpose.msra.mxu0 0.0
        %1066 = vmatprep.subr.mxu0 0.0
        %1067 = vmatpush1.xpose.msra.mxu0 0.0
        %1068 = vmatprep.subr.mxu0 0.0
        %1069 = vmatpush1.xpose.msra.mxu0 0.0
        %1070 = vmatprep.subr.mxu0 0.0
        %1071 = vmatpush1.xpose.msra.mxu0 0.0
        %1072 = vmatprep.subr.mxu0 0.0
        %1073 = vmatpush1.xpose.msra.mxu0 0.0
        %1074 = vmatprep.subr.mxu0 0.0
        %1075 = vmatpush1.xpose.msra.mxu0 0.0
        %1076 = vmatprep.subr.mxu0 0.0
        %1077 = vmatpush1.xpose.msra.mxu0 0.0
        %1078 = vmatprep.subr.mxu0 0.0
        %1079 = vmatpush1.xpose.msra.mxu0 0.0
        %1080 = vmatprep.subr.mxu0 0.0
        %1081 = vmatpush1.xpose.msra.mxu0 0.0
        %1082 = vmatprep.subr.mxu0 0.0
        %1083 = vmatpush1.xpose.msra.mxu0 0.0
        %1084 = vmatprep.subr.mxu0 0.0
        %1085 = vmatpush1.xpose.msra.mxu0 0.0
        %1086 = vmatprep.subr.mxu0 0.0
        %1087 = vmatpush1.xpose.msra.mxu0 0.0
        %1088 = vmatprep.subr.mxu0 0.0
        %1089 = vmatpush1.xpose.msra.mxu0 0.0
        %1090 = vmatprep.subr.mxu0 0.0
        %v1091 = vand.u32 %v832, 4294901760
        %1092 = vmatpush1.xpose.msra.mxu0 %v1091
        %1093 = vmatprep.subr.mxu0 0.0
        %1094 = vmatpush2.xpose.msra.mxu0 0.0
        %1095 = vmatprep.subr.mxu0 0.0
        %1096 = vmatpush2.xpose.msra.mxu0 0.0
        %1097 = vmatprep.subr.mxu0 0.0
        %1098 = vmatpush2.xpose.msra.mxu0 0.0
        %1099 = vmatprep.subr.mxu0 0.0
        %1100 = vmatpush2.xpose.msra.mxu0 0.0
        %1101 = vmatprep.subr.mxu0 0.0
        %1102 = vmatpush2.xpose.msra.mxu0 0.0
        %1103 = vmatprep.subr.mxu0 0.0
        %1104 = vmatpush2.xpose.msra.mxu0 0.0
        %1105 = vmatprep.subr.mxu0 0.0
        %1106 = vmatpush2.xpose.msra.mxu0 0.0
        %1107 = vmatprep.subr.mxu0 0.0
        %1108 = vmatpush2.xpose.msra.mxu0 0.0
        %1109 = vmatprep.subr.mxu0 0.0
        %1110 = vmatpush2.xpose.msra.mxu0 0.0
        %1111 = vmatprep.subr.mxu0 0.0
        %1112 = vmatpush2.xpose.msra.mxu0 0.0
        %1113 = vmatprep.subr.mxu0 0.0
        %1114 = vmatpush2.xpose.msra.mxu0 0.0
        %1115 = vmatprep.subr.mxu0 0.0
        %1116 = vmatpush2.xpose.msra.mxu0 0.0
        %1117 = vmatprep.subr.mxu0 0.0
        %1118 = vmatpush2.xpose.msra.mxu0 0.0
        %1119 = vmatprep.subr.mxu0 0.0
        %1120 = vmatpush2.xpose.msra.mxu0 0.0
        %1121 = vmatprep.subr.mxu0 0.0
        %1122 = vmatpush2.xpose.msra.mxu0 0.0
        %1123 = vmatprep.subr.mxu0 0.0
        %1124 = vmatpush2.xpose.msra.mxu0 0.0
        %1125 = vmatprep.mubr.f32.mxu0 0.0
        %v1126 = vand.u32 %v830, 4294901760
        %v1127 = vsub.f32 %v830, %v1126
        %v1128 = vand.u32 %v1127, 4294901760
        %1129 = vmatmul.mubr.f32.gmra.mxu0 %v1128
        %v1130 = vpop.f32.mrf.mxu0
        %v1131 = vadd.f32 %v1057, %v1130
        %v1132 = vpop.f32.mrf.mxu0
        %1133 = vdwg.mxu0
        %1134 = vmatprep.subr.mxu0 0.0
        %1135 = vmatpush1.xpose.msra.mxu0 0.0
        %1136 = vmatprep.subr.mxu0 0.0
        %1137 = vmatpush1.xpose.msra.mxu0 0.0
        %1138 = vmatprep.subr.mxu0 0.0
        %1139 = vmatpush1.xpose.msra.mxu0 0.0
        %1140 = vmatprep.subr.mxu0 0.0
        %1141 = vmatpush1.xpose.msra.mxu0 0.0
        %1142 = vmatprep.subr.mxu0 0.0
        %1143 = vmatpush1.xpose.msra.mxu0 0.0
        %1144 = vmatprep.subr.mxu0 0.0
        %1145 = vmatpush1.xpose.msra.mxu0 0.0
        %1146 = vmatprep.subr.mxu0 0.0
        %1147 = vmatpush1.xpose.msra.mxu0 0.0
        %1148 = vmatprep.subr.mxu0 0.0
        %1149 = vmatpush1.xpose.msra.mxu0 0.0
        %1150 = vmatprep.subr.mxu0 0.0
        %1151 = vmatpush1.xpose.msra.mxu0 0.0
        %1152 = vmatprep.subr.mxu0 0.0
        %1153 = vmatpush1.xpose.msra.mxu0 0.0
        %1154 = vmatprep.subr.mxu0 0.0
        %1155 = vmatpush1.xpose.msra.mxu0 0.0
        %1156 = vmatprep.subr.mxu0 0.0
        %1157 = vmatpush1.xpose.msra.mxu0 0.0
        %1158 = vmatprep.subr.mxu0 0.0
        %1159 = vmatpush1.xpose.msra.mxu0 0.0
        %1160 = vmatprep.subr.mxu0 0.0
        %1161 = vmatpush1.xpose.msra.mxu0 0.0
        %1162 = vmatprep.subr.mxu0 0.0
        %1163 = vmatpush1.xpose.msra.mxu0 0.0
        %1164 = vmatprep.subr.mxu0 0.0
        %v1165 = vand.u32 %v832, 4294901760
        %v1166 = vsub.f32 %v832, %v1165
        %v1167 = vand.u32 %v1166, 4294901760
        %1168 = vmatpush1.xpose.msra.mxu0 %v1167
        %1169 = vmatprep.subr.mxu0 0.0
        %1170 = vmatpush2.xpose.msra.mxu0 0.0
        %1171 = vmatprep.subr.mxu0 0.0
        %1172 = vmatpush2.xpose.msra.mxu0 0.0
        %1173 = vmatprep.subr.mxu0 0.0
        %1174 = vmatpush2.xpose.msra.mxu0 0.0
        %1175 = vmatprep.subr.mxu0 0.0
        %1176 = vmatpush2.xpose.msra.mxu0 0.0
        %1177 = vmatprep.subr.mxu0 0.0
        %1178 = vmatpush2.xpose.msra.mxu0 0.0
        %1179 = vmatprep.subr.mxu0 0.0
        %1180 = vmatpush2.xpose.msra.mxu0 0.0
        %1181 = vmatprep.subr.mxu0 0.0
        %1182 = vmatpush2.xpose.msra.mxu0 0.0
        %1183 = vmatprep.subr.mxu0 0.0
        %1184 = vmatpush2.xpose.msra.mxu0 0.0
        %1185 = vmatprep.subr.mxu0 0.0
        %1186 = vmatpush2.xpose.msra.mxu0 0.0
        %1187 = vmatprep.subr.mxu0 0.0
        %1188 = vmatpush2.xpose.msra.mxu0 0.0
        %1189 = vmatprep.subr.mxu0 0.0
        %1190 = vmatpush2.xpose.msra.mxu0 0.0
        %1191 = vmatprep.subr.mxu0 0.0
        %1192 = vmatpush2.xpose.msra.mxu0 0.0
        %1193 = vmatprep.subr.mxu0 0.0
        %1194 = vmatpush2.xpose.msra.mxu0 0.0
        %1195 = vmatprep.subr.mxu0 0.0
        %1196 = vmatpush2.xpose.msra.mxu0 0.0
        %1197 = vmatprep.subr.mxu0 0.0
        %1198 = vmatpush2.xpose.msra.mxu0 0.0
        %1199 = vmatprep.subr.mxu0 0.0
        %1200 = vmatpush2.xpose.msra.mxu0 0.0
        %1201 = vmatprep.mubr.f32.mxu0 0.0
        %v1202 = vand.u32 %v830, 4294901760
        %1203 = vmatmul.mubr.f32.gmra.mxu0 %v1202
        %v1204 = vpop.f32.mrf.mxu0
        %v1205 = vadd.f32 %v1131, %v1204
        %v1206 = vpop.f32.mrf.mxu0
        %1207 = vdwg.mxu0
        %1208 = vmatprep.subr.mxu0 0.0
        %1209 = vmatpush1.xpose.msra.mxu0 0.0
        %1210 = vmatprep.subr.mxu0 0.0
        %1211 = vmatpush1.xpose.msra.mxu0 0.0
        %1212 = vmatprep.subr.mxu0 0.0
        %1213 = vmatpush1.xpose.msra.mxu0 0.0
        %1214 = vmatprep.subr.mxu0 0.0
        %1215 = vmatpush1.xpose.msra.mxu0 0.0
        %1216 = vmatprep.subr.mxu0 0.0
        %1217 = vmatpush1.xpose.msra.mxu0 0.0
        %1218 = vmatprep.subr.mxu0 0.0
        %1219 = vmatpush1.xpose.msra.mxu0 0.0
        %1220 = vmatprep.subr.mxu0 0.0
        %1221 = vmatpush1.xpose.msra.mxu0 0.0
        %1222 = vmatprep.subr.mxu0 0.0
        %1223 = vmatpush1.xpose.msra.mxu0 0.0
        %1224 = vmatprep.subr.mxu0 0.0
        %1225 = vmatpush1.xpose.msra.mxu0 0.0
        %1226 = vmatprep.subr.mxu0 0.0
        %1227 = vmatpush1.xpose.msra.mxu0 0.0
        %1228 = vmatprep.subr.mxu0 0.0
        %1229 = vmatpush1.xpose.msra.mxu0 0.0
        %1230 = vmatprep.subr.mxu0 0.0
        %1231 = vmatpush1.xpose.msra.mxu0 0.0
        %1232 = vmatprep.subr.mxu0 0.0
        %1233 = vmatpush1.xpose.msra.mxu0 0.0
        %1234 = vmatprep.subr.mxu0 0.0
        %1235 = vmatpush1.xpose.msra.mxu0 0.0
        %1236 = vmatprep.subr.mxu0 0.0
        %1237 = vmatpush1.xpose.msra.mxu0 0.0
        %1238 = vmatprep.subr.mxu0 0.0
        %v1239 = vand.u32 %v832, 4294901760
        %1240 = vmatpush1.xpose.msra.mxu0 %v1239
        %1241 = vmatprep.subr.mxu0 0.0
        %1242 = vmatpush2.xpose.msra.mxu0 0.0
        %1243 = vmatprep.subr.mxu0 0.0
        %1244 = vmatpush2.xpose.msra.mxu0 0.0
        %1245 = vmatprep.subr.mxu0 0.0
        %1246 = vmatpush2.xpose.msra.mxu0 0.0
        %1247 = vmatprep.subr.mxu0 0.0
        %1248 = vmatpush2.xpose.msra.mxu0 0.0
        %1249 = vmatprep.subr.mxu0 0.0
        %1250 = vmatpush2.xpose.msra.mxu0 0.0
        %1251 = vmatprep.subr.mxu0 0.0
        %1252 = vmatpush2.xpose.msra.mxu0 0.0
        %1253 = vmatprep.subr.mxu0 0.0
        %1254 = vmatpush2.xpose.msra.mxu0 0.0
        %1255 = vmatprep.subr.mxu0 0.0
        %1256 = vmatpush2.xpose.msra.mxu0 0.0
        %1257 = vmatprep.subr.mxu0 0.0
        %1258 = vmatpush2.xpose.msra.mxu0 0.0
        %1259 = vmatprep.subr.mxu0 0.0
        %1260 = vmatpush2.xpose.msra.mxu0 0.0
        %1261 = vmatprep.subr.mxu0 0.0
        %1262 = vmatpush2.xpose.msra.mxu0 0.0
        %1263 = vmatprep.subr.mxu0 0.0
        %1264 = vmatpush2.xpose.msra.mxu0 0.0
        %1265 = vmatprep.subr.mxu0 0.0
        %1266 = vmatpush2.xpose.msra.mxu0 0.0
        %1267 = vmatprep.subr.mxu0 0.0
        %1268 = vmatpush2.xpose.msra.mxu0 0.0
        %1269 = vmatprep.subr.mxu0 0.0
        %1270 = vmatpush2.xpose.msra.mxu0 0.0
        %1271 = vmatprep.subr.mxu0 0.0
        %1272 = vmatpush2.xpose.msra.mxu0 0.0
        %1273 = vmatprep.mubr.f32.mxu0 0.0
        %v1274 = vand.u32 %v830, 4294901760
        %1275 = vmatmul.mubr.f32.gmra.mxu0 %v1274
        %v1276 = vpop.f32.mrf.mxu0
        %v1277 = vadd.f32 %v1205, %v1276
        %v1278 = vpop.f32.mrf.mxu0
        %1279 = vdwg.mxu0
        %v1280 = vmul.f32 %v1277, 0.17677669
        %v1281 = vlaneseq
        %v1282 = vshrl.u32 %v1281, 7
        %v1283 = vlaneseq
        %v1284 = vand.u32 %v1283, 127
        %vm1285 = vcmp.le.s32.totalorder %v1284, %v1282
        %v1286 = vsel %vm1285, 0.0, -1e+30
        %v1287 = vadd.f32 %v1280, %v1286
        %vm1288 = vcmask 64512
        %v1289 = vsel %vm1288, %v1287, -inf
        %1290 = vmax.xlane.f32.xlu0 %v1289
        %v1291 = vpop.xlane.xlu0 %1290
        %v1292 = vsub.f32 %v1287, %v1291
        %v1293 = vmul.f32 %v1292, 1.442695
        %v1294 = vpow.pop %v1293
        %v1295 = vsel %vm1288, %v1294, 0.0
        %1296 = vadd.xlane.f32.xlu0 %v1295
        %v1297 = vpop.xlane.xlu0 %1296
        %v1298 = vrcp.pop %v1297
        %v1299 = vmul.f32 %v1294, %v1298
        %1300 = vrot.lane.b32.xlu0 %v824, 64
        %v1301 = vpop.permute.xlu0 %1300
        %v1304 = vsel %vm1288, %v1299, 0
        %1306 = vmatprep.subr.mxu0 0.0
        %1307 = vmatpush1.msra.mxu0 0.0
        %1308 = vmatprep.subr.mxu0 0.0
        %1309 = vmatpush1.msra.mxu0 0.0
        %1310 = vmatprep.subr.mxu0 0.0
        %1311 = vmatpush1.msra.mxu0 0.0
        %1312 = vmatprep.subr.mxu0 0.0
        %1313 = vmatpush1.msra.mxu0 0.0
        %1314 = vmatprep.subr.mxu0 0.0
        %1315 = vmatpush1.msra.mxu0 0.0
        %1316 = vmatprep.subr.mxu0 0.0
        %1317 = vmatpush1.msra.mxu0 0.0
        %1318 = vmatprep.subr.mxu0 0.0
        %1319 = vmatpush1.msra.mxu0 0.0
        %1320 = vmatprep.subr.mxu0 0.0
        %1321 = vmatpush1.msra.mxu0 0.0
        %1322 = vmatprep.subr.mxu0 0.0
        %1323 = vmatpush1.msra.mxu0 0.0
        %1324 = vmatprep.subr.mxu0 0.0
        %1325 = vmatpush1.msra.mxu0 0.0
        %1326 = vmatprep.subr.mxu0 0.0
        %1327 = vmatpush1.msra.mxu0 0.0
        %1328 = vmatprep.subr.mxu0 0.0
        %1329 = vmatpush1.msra.mxu0 0.0
        %1330 = vmatprep.subr.mxu0 0.0
        %1331 = vmatpush1.msra.mxu0 0.0
        %1332 = vmatprep.subr.mxu0 0.0
        %1333 = vmatpush1.msra.mxu0 0.0
        %1334 = vmatprep.subr.mxu0 0.0
        %1335 = vmatpush1.msra.mxu0 0.0
        %1336 = vmatprep.subr.mxu0 0.0
        %v1337 = vand.u32 %v1301, 4294901760
        %1338 = vmatpush1.msra.mxu0 %v1337
        %1339 = vmatprep.subr.mxu0 0.0
        %1340 = vmatpush2.msra.mxu0 0.0
        %1341 = vmatprep.subr.mxu0 0.0
        %1342 = vmatpush2.msra.mxu0 0.0
        %1343 = vmatprep.subr.mxu0 0.0
        %1344 = vmatpush2.msra.mxu0 0.0
        %1345 = vmatprep.subr.mxu0 0.0
        %1346 = vmatpush2.msra.mxu0 0.0
        %1347 = vmatprep.subr.mxu0 0.0
        %1348 = vmatpush2.msra.mxu0 0.0
        %1349 = vmatprep.subr.mxu0 0.0
        %1350 = vmatpush2.msra.mxu0 0.0
        %1351 = vmatprep.subr.mxu0 0.0
        %1352 = vmatpush2.msra.mxu0 0.0
        %1353 = vmatprep.subr.mxu0 0.0
        %1354 = vmatpush2.msra.mxu0 0.0
        %1355 = vmatprep.subr.mxu0 0.0
        %1356 = vmatpush2.msra.mxu0 0.0
        %1357 = vmatprep.subr.mxu0 0.0
        %1358 = vmatpush2.msra.mxu0 0.0
        %1359 = vmatprep.subr.mxu0 0.0
        %1360 = vmatpush2.msra.mxu0 0.0
        %1361 = vmatprep.subr.mxu0 0.0
        %1362 = vmatpush2.msra.mxu0 0.0
        %1363 = vmatprep.subr.mxu0 0.0
        %1364 = vmatpush2.msra.mxu0 0.0
        %1365 = vmatprep.subr.mxu0 0.0
        %1366 = vmatpush2.msra.mxu0 0.0
        %1367 = vmatprep.subr.mxu0 0.0
        %1368 = vmatpush2.msra.mxu0 0.0
        %1369 = vmatprep.subr.mxu0 0.0
        %1370 = vmatpush2.msra.mxu0 0.0
        %1371 = vmatprep.mubr.f32.mxu0 0.0
        %v1372 = vand.u32 %v1304, 4294901760
        %v1373 = vsub.f32 %v1304, %v1372
        %v1374 = vand.u32 %v1373, 4294901760
        %v1375 = vsub.f32 %v1373, %v1374
        %v1376 = vand.u32 %v1375, 4294901760
        %1377 = vmatmul.mubr.f32.gmra.mxu0 %v1376
        %v1378 = vpop.f32.mrf.mxu0
        %v1379 = vadd.f32 0.0, %v1378
        %v1380 = vpop.f32.mrf.mxu0
        %1381 = vdwg.mxu0
        %1382 = vmatprep.subr.mxu0 0.0
        %1383 = vmatpush1.msra.mxu0 0.0
        %1384 = vmatprep.subr.mxu0 0.0
        %1385 = vmatpush1.msra.mxu0 0.0
        %1386 = vmatprep.subr.mxu0 0.0
        %1387 = vmatpush1.msra.mxu0 0.0
        %1388 = vmatprep.subr.mxu0 0.0
        %1389 = vmatpush1.msra.mxu0 0.0
        %1390 = vmatprep.subr.mxu0 0.0
        %1391 = vmatpush1.msra.mxu0 0.0
        %1392 = vmatprep.subr.mxu0 0.0
        %1393 = vmatpush1.msra.mxu0 0.0
        %1394 = vmatprep.subr.mxu0 0.0
        %1395 = vmatpush1.msra.mxu0 0.0
        %1396 = vmatprep.subr.mxu0 0.0
        %1397 = vmatpush1.msra.mxu0 0.0
        %1398 = vmatprep.subr.mxu0 0.0
        %1399 = vmatpush1.msra.mxu0 0.0
        %1400 = vmatprep.subr.mxu0 0.0
        %1401 = vmatpush1.msra.mxu0 0.0
        %1402 = vmatprep.subr.mxu0 0.0
        %1403 = vmatpush1.msra.mxu0 0.0
        %1404 = vmatprep.subr.mxu0 0.0
        %1405 = vmatpush1.msra.mxu0 0.0
        %1406 = vmatprep.subr.mxu0 0.0
        %1407 = vmatpush1.msra.mxu0 0.0
        %1408 = vmatprep.subr.mxu0 0.0
        %1409 = vmatpush1.msra.mxu0 0.0
        %1410 = vmatprep.subr.mxu0 0.0
        %1411 = vmatpush1.msra.mxu0 0.0
        %1412 = vmatprep.subr.mxu0 0.0
        %v1413 = vand.u32 %v1301, 4294901760
        %v1414 = vsub.f32 %v1301, %v1413
        %v1415 = vand.u32 %v1414, 4294901760
        %v1416 = vsub.f32 %v1414, %v1415
        %v1417 = vand.u32 %v1416, 4294901760
        %1418 = vmatpush1.msra.mxu0 %v1417
        %1419 = vmatprep.subr.mxu0 0.0
        %1420 = vmatpush2.msra.mxu0 0.0
        %1421 = vmatprep.subr.mxu0 0.0
        %1422 = vmatpush2.msra.mxu0 0.0
        %1423 = vmatprep.subr.mxu0 0.0
        %1424 = vmatpush2.msra.mxu0 0.0
        %1425 = vmatprep.subr.mxu0 0.0
        %1426 = vmatpush2.msra.mxu0 0.0
        %1427 = vmatprep.subr.mxu0 0.0
        %1428 = vmatpush2.msra.mxu0 0.0
        %1429 = vmatprep.subr.mxu0 0.0
        %1430 = vmatpush2.msra.mxu0 0.0
        %1431 = vmatprep.subr.mxu0 0.0
        %1432 = vmatpush2.msra.mxu0 0.0
        %1433 = vmatprep.subr.mxu0 0.0
        %1434 = vmatpush2.msra.mxu0 0.0
        %1435 = vmatprep.subr.mxu0 0.0
        %1436 = vmatpush2.msra.mxu0 0.0
        %1437 = vmatprep.subr.mxu0 0.0
        %1438 = vmatpush2.msra.mxu0 0.0
        %1439 = vmatprep.subr.mxu0 0.0
        %1440 = vmatpush2.msra.mxu0 0.0
        %1441 = vmatprep.subr.mxu0 0.0
        %1442 = vmatpush2.msra.mxu0 0.0
        %1443 = vmatprep.subr.mxu0 0.0
        %1444 = vmatpush2.msra.mxu0 0.0
        %1445 = vmatprep.subr.mxu0 0.0
        %1446 = vmatpush2.msra.mxu0 0.0
        %1447 = vmatprep.subr.mxu0 0.0
        %1448 = vmatpush2.msra.mxu0 0.0
        %1449 = vmatprep.subr.mxu0 0.0
        %1450 = vmatpush2.msra.mxu0 0.0
        %1451 = vmatprep.mubr.f32.mxu0 0.0
        %v1452 = vand.u32 %v1304, 4294901760
        %1453 = vmatmul.mubr.f32.gmra.mxu0 %v1452
        %v1454 = vpop.f32.mrf.mxu0
        %v1455 = vadd.f32 %v1379, %v1454
        %v1456 = vpop.f32.mrf.mxu0
        %1457 = vdwg.mxu0
        %1458 = vmatprep.subr.mxu0 0.0
        %1459 = vmatpush1.msra.mxu0 0.0
        %1460 = vmatprep.subr.mxu0 0.0
        %1461 = vmatpush1.msra.mxu0 0.0
        %1462 = vmatprep.subr.mxu0 0.0
        %1463 = vmatpush1.msra.mxu0 0.0
        %1464 = vmatprep.subr.mxu0 0.0
        %1465 = vmatpush1.msra.mxu0 0.0
        %1466 = vmatprep.subr.mxu0 0.0
        %1467 = vmatpush1.msra.mxu0 0.0
        %1468 = vmatprep.subr.mxu0 0.0
        %1469 = vmatpush1.msra.mxu0 0.0
        %1470 = vmatprep.subr.mxu0 0.0
        %1471 = vmatpush1.msra.mxu0 0.0
        %1472 = vmatprep.subr.mxu0 0.0
        %1473 = vmatpush1.msra.mxu0 0.0
        %1474 = vmatprep.subr.mxu0 0.0
        %1475 = vmatpush1.msra.mxu0 0.0
        %1476 = vmatprep.subr.mxu0 0.0
        %1477 = vmatpush1.msra.mxu0 0.0
        %1478 = vmatprep.subr.mxu0 0.0
        %1479 = vmatpush1.msra.mxu0 0.0
        %1480 = vmatprep.subr.mxu0 0.0
        %1481 = vmatpush1.msra.mxu0 0.0
        %1482 = vmatprep.subr.mxu0 0.0
        %1483 = vmatpush1.msra.mxu0 0.0
        %1484 = vmatprep.subr.mxu0 0.0
        %1485 = vmatpush1.msra.mxu0 0.0
        %1486 = vmatprep.subr.mxu0 0.0
        %1487 = vmatpush1.msra.mxu0 0.0
        %1488 = vmatprep.subr.mxu0 0.0
        %v1489 = vand.u32 %v1301, 4294901760
        %v1490 = vsub.f32 %v1301, %v1489
        %1491 = vmatpush1.msra.mxu0 %v1490
        %1492 = vmatprep.subr.mxu0 0.0
        %1493 = vmatpush2.msra.mxu0 0.0
        %1494 = vmatprep.subr.mxu0 0.0
        %1495 = vmatpush2.msra.mxu0 0.0
        %1496 = vmatprep.subr.mxu0 0.0
        %1497 = vmatpush2.msra.mxu0 0.0
        %1498 = vmatprep.subr.mxu0 0.0
        %1499 = vmatpush2.msra.mxu0 0.0
        %1500 = vmatprep.subr.mxu0 0.0
        %1501 = vmatpush2.msra.mxu0 0.0
        %1502 = vmatprep.subr.mxu0 0.0
        %1503 = vmatpush2.msra.mxu0 0.0
        %1504 = vmatprep.subr.mxu0 0.0
        %1505 = vmatpush2.msra.mxu0 0.0
        %1506 = vmatprep.subr.mxu0 0.0
        %1507 = vmatpush2.msra.mxu0 0.0
        %1508 = vmatprep.subr.mxu0 0.0
        %1509 = vmatpush2.msra.mxu0 0.0
        %1510 = vmatprep.subr.mxu0 0.0
        %1511 = vmatpush2.msra.mxu0 0.0
        %1512 = vmatprep.subr.mxu0 0.0
        %1513 = vmatpush2.msra.mxu0 0.0
        %1514 = vmatprep.subr.mxu0 0.0
        %1515 = vmatpush2.msra.mxu0 0.0
        %1516 = vmatprep.subr.mxu0 0.0
        %1517 = vmatpush2.msra.mxu0 0.0
        %1518 = vmatprep.subr.mxu0 0.0
        %1519 = vmatpush2.msra.mxu0 0.0
        %1520 = vmatprep.subr.mxu0 0.0
        %1521 = vmatpush2.msra.mxu0 0.0
        %1522 = vmatprep.subr.mxu0 0.0
        %1523 = vmatpush2.msra.mxu0 0.0
        %1524 = vmatprep.mubr.f32.mxu0 0.0
        %v1525 = vand.u32 %v1304, 4294901760
        %v1526 = vsub.f32 %v1304, %v1525
        %1527 = vmatmul.mubr.f32.gmra.mxu0 %v1526
        %v1528 = vpop.f32.mrf.mxu0
        %v1529 = vadd.f32 %v1455, %v1528
        %v1530 = vpop.f32.mrf.mxu0
        %1531 = vdwg.mxu0
        %1532 = vmatprep.subr.mxu0 0.0
        %1533 = vmatpush1.msra.mxu0 0.0
        %1534 = vmatprep.subr.mxu0 0.0
        %1535 = vmatpush1.msra.mxu0 0.0
        %1536 = vmatprep.subr.mxu0 0.0
        %1537 = vmatpush1.msra.mxu0 0.0
        %1538 = vmatprep.subr.mxu0 0.0
        %1539 = vmatpush1.msra.mxu0 0.0
        %1540 = vmatprep.subr.mxu0 0.0
        %1541 = vmatpush1.msra.mxu0 0.0
        %1542 = vmatprep.subr.mxu0 0.0
        %1543 = vmatpush1.msra.mxu0 0.0
        %1544 = vmatprep.subr.mxu0 0.0
        %1545 = vmatpush1.msra.mxu0 0.0
        %1546 = vmatprep.subr.mxu0 0.0
        %1547 = vmatpush1.msra.mxu0 0.0
        %1548 = vmatprep.subr.mxu0 0.0
        %1549 = vmatpush1.msra.mxu0 0.0
        %1550 = vmatprep.subr.mxu0 0.0
        %1551 = vmatpush1.msra.mxu0 0.0
        %1552 = vmatprep.subr.mxu0 0.0
        %1553 = vmatpush1.msra.mxu0 0.0
        %1554 = vmatprep.subr.mxu0 0.0
        %1555 = vmatpush1.msra.mxu0 0.0
        %1556 = vmatprep.subr.mxu0 0.0
        %1557 = vmatpush1.msra.mxu0 0.0
        %1558 = vmatprep.subr.mxu0 0.0
        %1559 = vmatpush1.msra.mxu0 0.0
        %1560 = vmatprep.subr.mxu0 0.0
        %1561 = vmatpush1.msra.mxu0 0.0
        %1562 = vmatprep.subr.mxu0 0.0
        %v1563 = vand.u32 %v1301, 4294901760
        %1564 = vmatpush1.msra.mxu0 %v1563
        %1565 = vmatprep.subr.mxu0 0.0
        %1566 = vmatpush2.msra.mxu0 0.0
        %1567 = vmatprep.subr.mxu0 0.0
        %1568 = vmatpush2.msra.mxu0 0.0
        %1569 = vmatprep.subr.mxu0 0.0
        %1570 = vmatpush2.msra.mxu0 0.0
        %1571 = vmatprep.subr.mxu0 0.0
        %1572 = vmatpush2.msra.mxu0 0.0
        %1573 = vmatprep.subr.mxu0 0.0
        %1574 = vmatpush2.msra.mxu0 0.0
        %1575 = vmatprep.subr.mxu0 0.0
        %1576 = vmatpush2.msra.mxu0 0.0
        %1577 = vmatprep.subr.mxu0 0.0
        %1578 = vmatpush2.msra.mxu0 0.0
        %1579 = vmatprep.subr.mxu0 0.0
        %1580 = vmatpush2.msra.mxu0 0.0
        %1581 = vmatprep.subr.mxu0 0.0
        %1582 = vmatpush2.msra.mxu0 0.0
        %1583 = vmatprep.subr.mxu0 0.0
        %1584 = vmatpush2.msra.mxu0 0.0
        %1585 = vmatprep.subr.mxu0 0.0
        %1586 = vmatpush2.msra.mxu0 0.0
        %1587 = vmatprep.subr.mxu0 0.0
        %1588 = vmatpush2.msra.mxu0 0.0
        %1589 = vmatprep.subr.mxu0 0.0
        %1590 = vmatpush2.msra.mxu0 0.0
        %1591 = vmatprep.subr.mxu0 0.0
        %1592 = vmatpush2.msra.mxu0 0.0
        %1593 = vmatprep.subr.mxu0 0.0
        %1594 = vmatpush2.msra.mxu0 0.0
        %1595 = vmatprep.subr.mxu0 0.0
        %1596 = vmatpush2.msra.mxu0 0.0
        %1597 = vmatprep.mubr.f32.mxu0 0.0
        %v1598 = vand.u32 %v1304, 4294901760
        %v1599 = vsub.f32 %v1304, %v1598
        %v1600 = vand.u32 %v1599, 4294901760
        %1601 = vmatmul.mubr.f32.gmra.mxu0 %v1600
        %v1602 = vpop.f32.mrf.mxu0
        %v1603 = vadd.f32 %v1529, %v1602
        %v1604 = vpop.f32.mrf.mxu0
        %1605 = vdwg.mxu0
        %1606 = vmatprep.subr.mxu0 0.0
        %1607 = vmatpush1.msra.mxu0 0.0
        %1608 = vmatprep.subr.mxu0 0.0
        %1609 = vmatpush1.msra.mxu0 0.0
        %1610 = vmatprep.subr.mxu0 0.0
        %1611 = vmatpush1.msra.mxu0 0.0
        %1612 = vmatprep.subr.mxu0 0.0
        %1613 = vmatpush1.msra.mxu0 0.0
        %1614 = vmatprep.subr.mxu0 0.0
        %1615 = vmatpush1.msra.mxu0 0.0
        %1616 = vmatprep.subr.mxu0 0.0
        %1617 = vmatpush1.msra.mxu0 0.0
        %1618 = vmatprep.subr.mxu0 0.0
        %1619 = vmatpush1.msra.mxu0 0.0
        %1620 = vmatprep.subr.mxu0 0.0
        %1621 = vmatpush1.msra.mxu0 0.0
        %1622 = vmatprep.subr.mxu0 0.0
        %1623 = vmatpush1.msra.mxu0 0.0
        %1624 = vmatprep.subr.mxu0 0.0
        %1625 = vmatpush1.msra.mxu0 0.0
        %1626 = vmatprep.subr.mxu0 0.0
        %1627 = vmatpush1.msra.mxu0 0.0
        %1628 = vmatprep.subr.mxu0 0.0
        %1629 = vmatpush1.msra.mxu0 0.0
        %1630 = vmatprep.subr.mxu0 0.0
        %1631 = vmatpush1.msra.mxu0 0.0
        %1632 = vmatprep.subr.mxu0 0.0
        %1633 = vmatpush1.msra.mxu0 0.0
        %1634 = vmatprep.subr.mxu0 0.0
        %1635 = vmatpush1.msra.mxu0 0.0
        %1636 = vmatprep.subr.mxu0 0.0
        %v1637 = vand.u32 %v1301, 4294901760
        %v1638 = vsub.f32 %v1301, %v1637
        %v1639 = vand.u32 %v1638, 4294901760
        %1640 = vmatpush1.msra.mxu0 %v1639
        %1641 = vmatprep.subr.mxu0 0.0
        %1642 = vmatpush2.msra.mxu0 0.0
        %1643 = vmatprep.subr.mxu0 0.0
        %1644 = vmatpush2.msra.mxu0 0.0
        %1645 = vmatprep.subr.mxu0 0.0
        %1646 = vmatpush2.msra.mxu0 0.0
        %1647 = vmatprep.subr.mxu0 0.0
        %1648 = vmatpush2.msra.mxu0 0.0
        %1649 = vmatprep.subr.mxu0 0.0
        %1650 = vmatpush2.msra.mxu0 0.0
        %1651 = vmatprep.subr.mxu0 0.0
        %1652 = vmatpush2.msra.mxu0 0.0
        %1653 = vmatprep.subr.mxu0 0.0
        %1654 = vmatpush2.msra.mxu0 0.0
        %1655 = vmatprep.subr.mxu0 0.0
        %1656 = vmatpush2.msra.mxu0 0.0
        %1657 = vmatprep.subr.mxu0 0.0
        %1658 = vmatpush2.msra.mxu0 0.0
        %1659 = vmatprep.subr.mxu0 0.0
        %1660 = vmatpush2.msra.mxu0 0.0
        %1661 = vmatprep.subr.mxu0 0.0
        %1662 = vmatpush2.msra.mxu0 0.0
        %1663 = vmatprep.subr.mxu0 0.0
        %1664 = vmatpush2.msra.mxu0 0.0
        %1665 = vmatprep.subr.mxu0 0.0
        %1666 = vmatpush2.msra.mxu0 0.0
        %1667 = vmatprep.subr.mxu0 0.0
        %1668 = vmatpush2.msra.mxu0 0.0
        %1669 = vmatprep.subr.mxu0 0.0
        %1670 = vmatpush2.msra.mxu0 0.0
        %1671 = vmatprep.subr.mxu0 0.0
        %1672 = vmatpush2.msra.mxu0 0.0
        %1673 = vmatprep.mubr.f32.mxu0 0.0
        %v1674 = vand.u32 %v1304, 4294901760
        %1675 = vmatmul.mubr.f32.gmra.mxu0 %v1674
        %v1676 = vpop.f32.mrf.mxu0
        %v1677 = vadd.f32 %v1603, %v1676
        %v1678 = vpop.f32.mrf.mxu0
        %1679 = vdwg.mxu0
        %1680 = vmatprep.subr.mxu0 0.0
        %1681 = vmatpush1.msra.mxu0 0.0
        %1682 = vmatprep.subr.mxu0 0.0
        %1683 = vmatpush1.msra.mxu0 0.0
        %1684 = vmatprep.subr.mxu0 0.0
        %1685 = vmatpush1.msra.mxu0 0.0
        %1686 = vmatprep.subr.mxu0 0.0
        %1687 = vmatpush1.msra.mxu0 0.0
        %1688 = vmatprep.subr.mxu0 0.0
        %1689 = vmatpush1.msra.mxu0 0.0
        %1690 = vmatprep.subr.mxu0 0.0
        %1691 = vmatpush1.msra.mxu0 0.0
        %1692 = vmatprep.subr.mxu0 0.0
        %1693 = vmatpush1.msra.mxu0 0.0
        %1694 = vmatprep.subr.mxu0 0.0
        %1695 = vmatpush1.msra.mxu0 0.0
        %1696 = vmatprep.subr.mxu0 0.0
        %1697 = vmatpush1.msra.mxu0 0.0
        %1698 = vmatprep.subr.mxu0 0.0
        %1699 = vmatpush1.msra.mxu0 0.0
        %1700 = vmatprep.subr.mxu0 0.0
        %1701 = vmatpush1.msra.mxu0 0.0
        %1702 = vmatprep.subr.mxu0 0.0
        %1703 = vmatpush1.msra.mxu0 0.0
        %1704 = vmatprep.subr.mxu0 0.0
        %1705 = vmatpush1.msra.mxu0 0.0
        %1706 = vmatprep.subr.mxu0 0.0
        %1707 = vmatpush1.msra.mxu0 0.0
        %1708 = vmatprep.subr.mxu0 0.0
        %1709 = vmatpush1.msra.mxu0 0.0
        %1710 = vmatprep.subr.mxu0 0.0
        %v1711 = vand.u32 %v1301, 4294901760
        %1712 = vmatpush1.msra.mxu0 %v1711
        %1713 = vmatprep.subr.mxu0 0.0
        %1714 = vmatpush2.msra.mxu0 0.0
        %1715 = vmatprep.subr.mxu0 0.0
        %1716 = vmatpush2.msra.mxu0 0.0
        %1717 = vmatprep.subr.mxu0 0.0
        %1718 = vmatpush2.msra.mxu0 0.0
        %1719 = vmatprep.subr.mxu0 0.0
        %1720 = vmatpush2.msra.mxu0 0.0
        %1721 = vmatprep.subr.mxu0 0.0
        %1722 = vmatpush2.msra.mxu0 0.0
        %1723 = vmatprep.subr.mxu0 0.0
        %1724 = vmatpush2.msra.mxu0 0.0
        %1725 = vmatprep.subr.mxu0 0.0
        %1726 = vmatpush2.msra.mxu0 0.0
        %1727 = vmatprep.subr.mxu0 0.0
        %1728 = vmatpush2.msra.mxu0 0.0
        %1729 = vmatprep.subr.mxu0 0.0
        %1730 = vmatpush2.msra.mxu0 0.0
        %1731 = vmatprep.subr.mxu0 0.0
        %1732 = vmatpush2.msra.mxu0 0.0
        %1733 = vmatprep.subr.mxu0 0.0
        %1734 = vmatpush2.msra.mxu0 0.0
        %1735 = vmatprep.subr.mxu0 0.0
        %1736 = vmatpush2.msra.mxu0 0.0
        %1737 = vmatprep.subr.mxu0 0.0
        %1738 = vmatpush2.msra.mxu0 0.0
        %1739 = vmatprep.subr.mxu0 0.0
        %1740 = vmatpush2.msra.mxu0 0.0
        %1741 = vmatprep.subr.mxu0 0.0
        %1742 = vmatpush2.msra.mxu0 0.0
        %1743 = vmatprep.subr.mxu0 0.0
        %1744 = vmatpush2.msra.mxu0 0.0
        %1745 = vmatprep.mubr.f32.mxu0 0.0
        %v1746 = vand.u32 %v1304, 4294901760
        %1747 = vmatmul.mubr.f32.gmra.mxu0 %v1746
        %v1748 = vpop.f32.mrf.mxu0
        %v1749 = vadd.f32 %v1677, %v1748
        %v1750 = vpop.f32.mrf.mxu0
        %1751 = vdwg.mxu0
        %v1752 = vld [vmem:[%s3] sm:$0xff]
        %v1753 = vld [vmem:[%s3 + $0x8] sm:$0xff]
        %v1754 = vld [vmem:[%s3 + $0x10] sm:$0xff]
        %v1755 = vld [vmem:[%s3 + $0x18] sm:$0xff]
        %v1757 = vsel %vm313, %v1749, 0
        %1759 = vmatprep.subr.mxu0 0.0
        %1760 = vmatpush1.msra.mxu0 0.0
        %1761 = vmatprep.subr.mxu0 0.0
        %1762 = vmatpush1.msra.mxu0 0.0
        %1763 = vmatprep.subr.mxu0 0.0
        %1764 = vmatpush1.msra.mxu0 0.0
        %1765 = vmatprep.subr.mxu0 0.0
        %1766 = vmatpush1.msra.mxu0 0.0
        %1767 = vmatprep.subr.mxu0 0.0
        %1768 = vmatpush1.msra.mxu0 0.0
        %1769 = vmatprep.subr.mxu0 0.0
        %1770 = vmatpush1.msra.mxu0 0.0
        %1771 = vmatprep.subr.mxu0 0.0
        %1772 = vmatpush1.msra.mxu0 0.0
        %1773 = vmatprep.subr.mxu0 0.0
        %1774 = vmatpush1.msra.mxu0 0.0
        %1775 = vmatprep.subr.mxu0 0.0
        %1776 = vmatpush1.msra.mxu0 0.0
        %1777 = vmatprep.subr.mxu0 0.0
        %1778 = vmatpush1.msra.mxu0 0.0
        %1779 = vmatprep.subr.mxu0 0.0
        %1780 = vmatpush1.msra.mxu0 0.0
        %1781 = vmatprep.subr.mxu0 0.0
        %1782 = vmatpush1.msra.mxu0 0.0
        %1783 = vmatprep.subr.mxu0 0.0
        %v1784 = vand.u32 %v1755, 4294901760
        %1785 = vmatpush1.msra.mxu0 %v1784
        %1786 = vmatprep.subr.mxu0 0.0
        %v1787 = vand.u32 %v1754, 4294901760
        %1788 = vmatpush1.msra.mxu0 %v1787
        %1789 = vmatprep.subr.mxu0 0.0
        %v1790 = vand.u32 %v1753, 4294901760
        %1791 = vmatpush1.msra.mxu0 %v1790
        %1792 = vmatprep.subr.mxu0 0.0
        %v1793 = vand.u32 %v1752, 4294901760
        %1794 = vmatpush1.msra.mxu0 %v1793
        %1795 = vmatprep.subr.mxu0 0.0
        %1796 = vmatpush2.msra.mxu0 0.0
        %1797 = vmatprep.subr.mxu0 0.0
        %1798 = vmatpush2.msra.mxu0 0.0
        %1799 = vmatprep.subr.mxu0 0.0
        %1800 = vmatpush2.msra.mxu0 0.0
        %1801 = vmatprep.subr.mxu0 0.0
        %1802 = vmatpush2.msra.mxu0 0.0
        %1803 = vmatprep.subr.mxu0 0.0
        %1804 = vmatpush2.msra.mxu0 0.0
        %1805 = vmatprep.subr.mxu0 0.0
        %1806 = vmatpush2.msra.mxu0 0.0
        %1807 = vmatprep.subr.mxu0 0.0
        %1808 = vmatpush2.msra.mxu0 0.0
        %1809 = vmatprep.subr.mxu0 0.0
        %1810 = vmatpush2.msra.mxu0 0.0
        %1811 = vmatprep.subr.mxu0 0.0
        %1812 = vmatpush2.msra.mxu0 0.0
        %1813 = vmatprep.subr.mxu0 0.0
        %1814 = vmatpush2.msra.mxu0 0.0
        %1815 = vmatprep.subr.mxu0 0.0
        %1816 = vmatpush2.msra.mxu0 0.0
        %1817 = vmatprep.subr.mxu0 0.0
        %1818 = vmatpush2.msra.mxu0 0.0
        %1819 = vmatprep.subr.mxu0 0.0
        %1820 = vmatpush2.msra.mxu0 0.0
        %1821 = vmatprep.subr.mxu0 0.0
        %1822 = vmatpush2.msra.mxu0 0.0
        %1823 = vmatprep.subr.mxu0 0.0
        %1824 = vmatpush2.msra.mxu0 0.0
        %1825 = vmatprep.subr.mxu0 0.0
        %1826 = vmatpush2.msra.mxu0 0.0
        %1827 = vmatprep.mubr.f32.mxu0 0.0
        %v1828 = vand.u32 %v1757, 4294901760
        %v1829 = vsub.f32 %v1757, %v1828
        %v1830 = vand.u32 %v1829, 4294901760
        %v1831 = vsub.f32 %v1829, %v1830
        %v1832 = vand.u32 %v1831, 4294901760
        %1833 = vmatmul.mubr.f32.gmra.mxu0 %v1832
        %v1834 = vpop.f32.mrf.mxu0
        %v1835 = vadd.f32 0.0, %v1834
        %v1836 = vpop.f32.mrf.mxu0
        %1837 = vdwg.mxu0
        %1838 = vmatprep.subr.mxu0 0.0
        %1839 = vmatpush1.msra.mxu0 0.0
        %1840 = vmatprep.subr.mxu0 0.0
        %1841 = vmatpush1.msra.mxu0 0.0
        %1842 = vmatprep.subr.mxu0 0.0
        %1843 = vmatpush1.msra.mxu0 0.0
        %1844 = vmatprep.subr.mxu0 0.0
        %1845 = vmatpush1.msra.mxu0 0.0
        %1846 = vmatprep.subr.mxu0 0.0
        %1847 = vmatpush1.msra.mxu0 0.0
        %1848 = vmatprep.subr.mxu0 0.0
        %1849 = vmatpush1.msra.mxu0 0.0
        %1850 = vmatprep.subr.mxu0 0.0
        %1851 = vmatpush1.msra.mxu0 0.0
        %1852 = vmatprep.subr.mxu0 0.0
        %1853 = vmatpush1.msra.mxu0 0.0
        %1854 = vmatprep.subr.mxu0 0.0
        %1855 = vmatpush1.msra.mxu0 0.0
        %1856 = vmatprep.subr.mxu0 0.0
        %1857 = vmatpush1.msra.mxu0 0.0
        %1858 = vmatprep.subr.mxu0 0.0
        %1859 = vmatpush1.msra.mxu0 0.0
        %1860 = vmatprep.subr.mxu0 0.0
        %1861 = vmatpush1.msra.mxu0 0.0
        %1862 = vmatprep.subr.mxu0 0.0
        %v1863 = vand.u32 %v1755, 4294901760
        %v1864 = vsub.f32 %v1755, %v1863
        %v1865 = vand.u32 %v1864, 4294901760
        %v1866 = vsub.f32 %v1864, %v1865
        %v1867 = vand.u32 %v1866, 4294901760
        %1868 = vmatpush1.msra.mxu0 %v1867
        %1869 = vmatprep.subr.mxu0 0.0
        %v1870 = vand.u32 %v1754, 4294901760
        %v1871 = vsub.f32 %v1754, %v1870
        %v1872 = vand.u32 %v1871, 4294901760
        %v1873 = vsub.f32 %v1871, %v1872
        %v1874 = vand.u32 %v1873, 4294901760
        %1875 = vmatpush1.msra.mxu0 %v1874
        %1876 = vmatprep.subr.mxu0 0.0
        %v1877 = vand.u32 %v1753, 4294901760
        %v1878 = vsub.f32 %v1753, %v1877
        %v1879 = vand.u32 %v1878, 4294901760
        %v1880 = vsub.f32 %v1878, %v1879
        %v1881 = vand.u32 %v1880, 4294901760
        %1882 = vmatpush1.msra.mxu0 %v1881
        %1883 = vmatprep.subr.mxu0 0.0
        %v1884 = vand.u32 %v1752, 4294901760
        %v1885 = vsub.f32 %v1752, %v1884
        %v1886 = vand.u32 %v1885, 4294901760
        %v1887 = vsub.f32 %v1885, %v1886
        %v1888 = vand.u32 %v1887, 4294901760
        %1889 = vmatpush1.msra.mxu0 %v1888
        %1890 = vmatprep.subr.mxu0 0.0
        %1891 = vmatpush2.msra.mxu0 0.0
        %1892 = vmatprep.subr.mxu0 0.0
        %1893 = vmatpush2.msra.mxu0 0.0
        %1894 = vmatprep.subr.mxu0 0.0
        %1895 = vmatpush2.msra.mxu0 0.0
        %1896 = vmatprep.subr.mxu0 0.0
        %1897 = vmatpush2.msra.mxu0 0.0
        %1898 = vmatprep.subr.mxu0 0.0
        %1899 = vmatpush2.msra.mxu0 0.0
        %1900 = vmatprep.subr.mxu0 0.0
        %1901 = vmatpush2.msra.mxu0 0.0
        %1902 = vmatprep.subr.mxu0 0.0
        %1903 = vmatpush2.msra.mxu0 0.0
        %1904 = vmatprep.subr.mxu0 0.0
        %1905 = vmatpush2.msra.mxu0 0.0
        %1906 = vmatprep.subr.mxu0 0.0
        %1907 = vmatpush2.msra.mxu0 0.0
        %1908 = vmatprep.subr.mxu0 0.0
        %1909 = vmatpush2.msra.mxu0 0.0
        %1910 = vmatprep.subr.mxu0 0.0
        %1911 = vmatpush2.msra.mxu0 0.0
        %1912 = vmatprep.subr.mxu0 0.0
        %1913 = vmatpush2.msra.mxu0 0.0
        %1914 = vmatprep.subr.mxu0 0.0
        %1915 = vmatpush2.msra.mxu0 0.0
        %1916 = vmatprep.subr.mxu0 0.0
        %1917 = vmatpush2.msra.mxu0 0.0
        %1918 = vmatprep.subr.mxu0 0.0
        %1919 = vmatpush2.msra.mxu0 0.0
        %1920 = vmatprep.subr.mxu0 0.0
        %1921 = vmatpush2.msra.mxu0 0.0
        %1922 = vmatprep.mubr.f32.mxu0 0.0
        %v1923 = vand.u32 %v1757, 4294901760
        %1924 = vmatmul.mubr.f32.gmra.mxu0 %v1923
        %v1925 = vpop.f32.mrf.mxu0
        %v1926 = vadd.f32 %v1835, %v1925
        %v1927 = vpop.f32.mrf.mxu0
        %1928 = vdwg.mxu0
        %1929 = vmatprep.subr.mxu0 0.0
        %1930 = vmatpush1.msra.mxu0 0.0
        %1931 = vmatprep.subr.mxu0 0.0
        %1932 = vmatpush1.msra.mxu0 0.0
        %1933 = vmatprep.subr.mxu0 0.0
        %1934 = vmatpush1.msra.mxu0 0.0
        %1935 = vmatprep.subr.mxu0 0.0
        %1936 = vmatpush1.msra.mxu0 0.0
        %1937 = vmatprep.subr.mxu0 0.0
        %1938 = vmatpush1.msra.mxu0 0.0
        %1939 = vmatprep.subr.mxu0 0.0
        %1940 = vmatpush1.msra.mxu0 0.0
        %1941 = vmatprep.subr.mxu0 0.0
        %1942 = vmatpush1.msra.mxu0 0.0
        %1943 = vmatprep.subr.mxu0 0.0
        %1944 = vmatpush1.msra.mxu0 0.0
        %1945 = vmatprep.subr.mxu0 0.0
        %1946 = vmatpush1.msra.mxu0 0.0
        %1947 = vmatprep.subr.mxu0 0.0
        %1948 = vmatpush1.msra.mxu0 0.0
        %1949 = vmatprep.subr.mxu0 0.0
        %1950 = vmatpush1.msra.mxu0 0.0
        %1951 = vmatprep.subr.mxu0 0.0
        %1952 = vmatpush1.msra.mxu0 0.0
        %1953 = vmatprep.subr.mxu0 0.0
        %v1954 = vand.u32 %v1755, 4294901760
        %v1955 = vsub.f32 %v1755, %v1954
        %1956 = vmatpush1.msra.mxu0 %v1955
        %1957 = vmatprep.subr.mxu0 0.0
        %v1958 = vand.u32 %v1754, 4294901760
        %v1959 = vsub.f32 %v1754, %v1958
        %1960 = vmatpush1.msra.mxu0 %v1959
        %1961 = vmatprep.subr.mxu0 0.0
        %v1962 = vand.u32 %v1753, 4294901760
        %v1963 = vsub.f32 %v1753, %v1962
        %1964 = vmatpush1.msra.mxu0 %v1963
        %1965 = vmatprep.subr.mxu0 0.0
        %v1966 = vand.u32 %v1752, 4294901760
        %v1967 = vsub.f32 %v1752, %v1966
        %1968 = vmatpush1.msra.mxu0 %v1967
        %1969 = vmatprep.subr.mxu0 0.0
        %1970 = vmatpush2.msra.mxu0 0.0
        %1971 = vmatprep.subr.mxu0 0.0
        %1972 = vmatpush2.msra.mxu0 0.0
        %1973 = vmatprep.subr.mxu0 0.0
        %1974 = vmatpush2.msra.mxu0 0.0
        %1975 = vmatprep.subr.mxu0 0.0
        %1976 = vmatpush2.msra.mxu0 0.0
        %1977 = vmatprep.subr.mxu0 0.0
        %1978 = vmatpush2.msra.mxu0 0.0
        %1979 = vmatprep.subr.mxu0 0.0
        %1980 = vmatpush2.msra.mxu0 0.0
        %1981 = vmatprep.subr.mxu0 0.0
        %1982 = vmatpush2.msra.mxu0 0.0
        %1983 = vmatprep.subr.mxu0 0.0
        %1984 = vmatpush2.msra.mxu0 0.0
        %1985 = vmatprep.subr.mxu0 0.0
        %1986 = vmatpush2.msra.mxu0 0.0
        %1987 = vmatprep.subr.mxu0 0.0
        %1988 = vmatpush2.msra.mxu0 0.0
        %1989 = vmatprep.subr.mxu0 0.0
        %1990 = vmatpush2.msra.mxu0 0.0
        %1991 = vmatprep.subr.mxu0 0.0
        %1992 = vmatpush2.msra.mxu0 0.0
        %1993 = vmatprep.subr.mxu0 0.0
        %1994 = vmatpush2.msra.mxu0 0.0
        %1995 = vmatprep.subr.mxu0 0.0
        %1996 = vmatpush2.msra.mxu0 0.0
        %1997 = vmatprep.subr.mxu0 0.0
        %1998 = vmatpush2.msra.mxu0 0.0
        %1999 = vmatprep.subr.mxu0 0.0
        %2000 = vmatpush2.msra.mxu0 0.0
        %2001 = vmatprep.mubr.f32.mxu0 0.0
        %v2002 = vand.u32 %v1757, 4294901760
        %v2003 = vsub.f32 %v1757, %v2002
        %2004 = vmatmul.mubr.f32.gmra.mxu0 %v2003
        %v2005 = vpop.f32.mrf.mxu0
        %v2006 = vadd.f32 %v1926, %v2005
        %v2007 = vpop.f32.mrf.mxu0
        %2008 = vdwg.mxu0
        %2009 = vmatprep.subr.mxu0 0.0
        %2010 = vmatpush1.msra.mxu0 0.0
        %2011 = vmatprep.subr.mxu0 0.0
        %2012 = vmatpush1.msra.mxu0 0.0
        %2013 = vmatprep.subr.mxu0 0.0
        %2014 = vmatpush1.msra.mxu0 0.0
        %2015 = vmatprep.subr.mxu0 0.0
        %2016 = vmatpush1.msra.mxu0 0.0
        %2017 = vmatprep.subr.mxu0 0.0
        %2018 = vmatpush1.msra.mxu0 0.0
        %2019 = vmatprep.subr.mxu0 0.0
        %2020 = vmatpush1.msra.mxu0 0.0
        %2021 = vmatprep.subr.mxu0 0.0
        %2022 = vmatpush1.msra.mxu0 0.0
        %2023 = vmatprep.subr.mxu0 0.0
        %2024 = vmatpush1.msra.mxu0 0.0
        %2025 = vmatprep.subr.mxu0 0.0
        %2026 = vmatpush1.msra.mxu0 0.0
        %2027 = vmatprep.subr.mxu0 0.0
        %2028 = vmatpush1.msra.mxu0 0.0
        %2029 = vmatprep.subr.mxu0 0.0
        %2030 = vmatpush1.msra.mxu0 0.0
        %2031 = vmatprep.subr.mxu0 0.0
        %2032 = vmatpush1.msra.mxu0 0.0
        %2033 = vmatprep.subr.mxu0 0.0
        %v2034 = vand.u32 %v1755, 4294901760
        %2035 = vmatpush1.msra.mxu0 %v2034
        %2036 = vmatprep.subr.mxu0 0.0
        %v2037 = vand.u32 %v1754, 4294901760
        %2038 = vmatpush1.msra.mxu0 %v2037
        %2039 = vmatprep.subr.mxu0 0.0
        %v2040 = vand.u32 %v1753, 4294901760
        %2041 = vmatpush1.msra.mxu0 %v2040
        %2042 = vmatprep.subr.mxu0 0.0
        %v2043 = vand.u32 %v1752, 4294901760
        %2044 = vmatpush1.msra.mxu0 %v2043
        %2045 = vmatprep.subr.mxu0 0.0
        %2046 = vmatpush2.msra.mxu0 0.0
        %2047 = vmatprep.subr.mxu0 0.0
        %2048 = vmatpush2.msra.mxu0 0.0
        %2049 = vmatprep.subr.mxu0 0.0
        %2050 = vmatpush2.msra.mxu0 0.0
        %2051 = vmatprep.subr.mxu0 0.0
        %2052 = vmatpush2.msra.mxu0 0.0
        %2053 = vmatprep.subr.mxu0 0.0
        %2054 = vmatpush2.msra.mxu0 0.0
        %2055 = vmatprep.subr.mxu0 0.0
        %2056 = vmatpush2.msra.mxu0 0.0
        %2057 = vmatprep.subr.mxu0 0.0
        %2058 = vmatpush2.msra.mxu0 0.0
        %2059 = vmatprep.subr.mxu0 0.0
        %2060 = vmatpush2.msra.mxu0 0.0
        %2061 = vmatprep.subr.mxu0 0.0
        %2062 = vmatpush2.msra.mxu0 0.0
        %2063 = vmatprep.subr.mxu0 0.0
        %2064 = vmatpush2.msra.mxu0 0.0
        %2065 = vmatprep.subr.mxu0 0.0
        %2066 = vmatpush2.msra.mxu0 0.0
        %2067 = vmatprep.subr.mxu0 0.0
        %2068 = vmatpush2.msra.mxu0 0.0
        %2069 = vmatprep.subr.mxu0 0.0
        %2070 = vmatpush2.msra.mxu0 0.0
        %2071 = vmatprep.subr.mxu0 0.0
        %2072 = vmatpush2.msra.mxu0 0.0
        %2073 = vmatprep.subr.mxu0 0.0
        %2074 = vmatpush2.msra.mxu0 0.0
        %2075 = vmatprep.subr.mxu0 0.0
        %2076 = vmatpush2.msra.mxu0 0.0
        %2077 = vmatprep.mubr.f32.mxu0 0.0
        %v2078 = vand.u32 %v1757, 4294901760
        %v2079 = vsub.f32 %v1757, %v2078
        %v2080 = vand.u32 %v2079, 4294901760
        %2081 = vmatmul.mubr.f32.gmra.mxu0 %v2080
        %v2082 = vpop.f32.mrf.mxu0
        %v2083 = vadd.f32 %v2006, %v2082
        %v2084 = vpop.f32.mrf.mxu0
        %2085 = vdwg.mxu0
        %2086 = vmatprep.subr.mxu0 0.0
        %2087 = vmatpush1.msra.mxu0 0.0
        %2088 = vmatprep.subr.mxu0 0.0
        %2089 = vmatpush1.msra.mxu0 0.0
        %2090 = vmatprep.subr.mxu0 0.0
        %2091 = vmatpush1.msra.mxu0 0.0
        %2092 = vmatprep.subr.mxu0 0.0
        %2093 = vmatpush1.msra.mxu0 0.0
        %2094 = vmatprep.subr.mxu0 0.0
        %2095 = vmatpush1.msra.mxu0 0.0
        %2096 = vmatprep.subr.mxu0 0.0
        %2097 = vmatpush1.msra.mxu0 0.0
        %2098 = vmatprep.subr.mxu0 0.0
        %2099 = vmatpush1.msra.mxu0 0.0
        %2100 = vmatprep.subr.mxu0 0.0
        %2101 = vmatpush1.msra.mxu0 0.0
        %2102 = vmatprep.subr.mxu0 0.0
        %2103 = vmatpush1.msra.mxu0 0.0
        %2104 = vmatprep.subr.mxu0 0.0
        %2105 = vmatpush1.msra.mxu0 0.0
        %2106 = vmatprep.subr.mxu0 0.0
        %2107 = vmatpush1.msra.mxu0 0.0
        %2108 = vmatprep.subr.mxu0 0.0
        %2109 = vmatpush1.msra.mxu0 0.0
        %2110 = vmatprep.subr.mxu0 0.0
        %v2111 = vand.u32 %v1755, 4294901760
        %v2112 = vsub.f32 %v1755, %v2111
        %v2113 = vand.u32 %v2112, 4294901760
        %2114 = vmatpush1.msra.mxu0 %v2113
        %2115 = vmatprep.subr.mxu0 0.0
        %v2116 = vand.u32 %v1754, 4294901760
        %v2117 = vsub.f32 %v1754, %v2116
        %v2118 = vand.u32 %v2117, 4294901760
        %2119 = vmatpush1.msra.mxu0 %v2118
        %2120 = vmatprep.subr.mxu0 0.0
        %v2121 = vand.u32 %v1753, 4294901760
        %v2122 = vsub.f32 %v1753, %v2121
        %v2123 = vand.u32 %v2122, 4294901760
        %2124 = vmatpush1.msra.mxu0 %v2123
        %2125 = vmatprep.subr.mxu0 0.0
        %v2126 = vand.u32 %v1752, 4294901760
        %v2127 = vsub.f32 %v1752, %v2126
        %v2128 = vand.u32 %v2127, 4294901760
        %2129 = vmatpush1.msra.mxu0 %v2128
        %2130 = vmatprep.subr.mxu0 0.0
        %2131 = vmatpush2.msra.mxu0 0.0
        %2132 = vmatprep.subr.mxu0 0.0
        %2133 = vmatpush2.msra.mxu0 0.0
        %2134 = vmatprep.subr.mxu0 0.0
        %2135 = vmatpush2.msra.mxu0 0.0
        %2136 = vmatprep.subr.mxu0 0.0
        %2137 = vmatpush2.msra.mxu0 0.0
        %2138 = vmatprep.subr.mxu0 0.0
        %2139 = vmatpush2.msra.mxu0 0.0
        %2140 = vmatprep.subr.mxu0 0.0
        %2141 = vmatpush2.msra.mxu0 0.0
        %2142 = vmatprep.subr.mxu0 0.0
        %2143 = vmatpush2.msra.mxu0 0.0
        %2144 = vmatprep.subr.mxu0 0.0
        %2145 = vmatpush2.msra.mxu0 0.0
        %2146 = vmatprep.subr.mxu0 0.0
        %2147 = vmatpush2.msra.mxu0 0.0
        %2148 = vmatprep.subr.mxu0 0.0
        %2149 = vmatpush2.msra.mxu0 0.0
        %2150 = vmatprep.subr.mxu0 0.0
        %2151 = vmatpush2.msra.mxu0 0.0
        %2152 = vmatprep.subr.mxu0 0.0
        %2153 = vmatpush2.msra.mxu0 0.0
        %2154 = vmatprep.subr.mxu0 0.0
        %2155 = vmatpush2.msra.mxu0 0.0
        %2156 = vmatprep.subr.mxu0 0.0
        %2157 = vmatpush2.msra.mxu0 0.0
        %2158 = vmatprep.subr.mxu0 0.0
        %2159 = vmatpush2.msra.mxu0 0.0
        %2160 = vmatprep.subr.mxu0 0.0
        %2161 = vmatpush2.msra.mxu0 0.0
        %2162 = vmatprep.mubr.f32.mxu0 0.0
        %v2163 = vand.u32 %v1757, 4294901760
        %2164 = vmatmul.mubr.f32.gmra.mxu0 %v2163
        %v2165 = vpop.f32.mrf.mxu0
        %v2166 = vadd.f32 %v2083, %v2165
        %v2167 = vpop.f32.mrf.mxu0
        %2168 = vdwg.mxu0
        %2169 = vmatprep.subr.mxu0 0.0
        %2170 = vmatpush1.msra.mxu0 0.0
        %2171 = vmatprep.subr.mxu0 0.0
        %2172 = vmatpush1.msra.mxu0 0.0
        %2173 = vmatprep.subr.mxu0 0.0
        %2174 = vmatpush1.msra.mxu0 0.0
        %2175 = vmatprep.subr.mxu0 0.0
        %2176 = vmatpush1.msra.mxu0 0.0
        %2177 = vmatprep.subr.mxu0 0.0
        %2178 = vmatpush1.msra.mxu0 0.0
        %2179 = vmatprep.subr.mxu0 0.0
        %2180 = vmatpush1.msra.mxu0 0.0
        %2181 = vmatprep.subr.mxu0 0.0
        %2182 = vmatpush1.msra.mxu0 0.0
        %2183 = vmatprep.subr.mxu0 0.0
        %2184 = vmatpush1.msra.mxu0 0.0
        %2185 = vmatprep.subr.mxu0 0.0
        %2186 = vmatpush1.msra.mxu0 0.0
        %2187 = vmatprep.subr.mxu0 0.0
        %2188 = vmatpush1.msra.mxu0 0.0
        %2189 = vmatprep.subr.mxu0 0.0
        %2190 = vmatpush1.msra.mxu0 0.0
        %2191 = vmatprep.subr.mxu0 0.0
        %2192 = vmatpush1.msra.mxu0 0.0
        %2193 = vmatprep.subr.mxu0 0.0
        %v2194 = vand.u32 %v1755, 4294901760
        %2195 = vmatpush1.msra.mxu0 %v2194
        %2196 = vmatprep.subr.mxu0 0.0
        %v2197 = vand.u32 %v1754, 4294901760
        %2198 = vmatpush1.msra.mxu0 %v2197
        %2199 = vmatprep.subr.mxu0 0.0
        %v2200 = vand.u32 %v1753, 4294901760
        %2201 = vmatpush1.msra.mxu0 %v2200
        %2202 = vmatprep.subr.mxu0 0.0
        %v2203 = vand.u32 %v1752, 4294901760
        %2204 = vmatpush1.msra.mxu0 %v2203
        %2205 = vmatprep.subr.mxu0 0.0
        %2206 = vmatpush2.msra.mxu0 0.0
        %2207 = vmatprep.subr.mxu0 0.0
        %2208 = vmatpush2.msra.mxu0 0.0
        %2209 = vmatprep.subr.mxu0 0.0
        %2210 = vmatpush2.msra.mxu0 0.0
        %2211 = vmatprep.subr.mxu0 0.0
        %2212 = vmatpush2.msra.mxu0 0.0
        %2213 = vmatprep.subr.mxu0 0.0
        %2214 = vmatpush2.msra.mxu0 0.0
        %2215 = vmatprep.subr.mxu0 0.0
        %2216 = vmatpush2.msra.mxu0 0.0
        %2217 = vmatprep.subr.mxu0 0.0
        %2218 = vmatpush2.msra.mxu0 0.0
        %2219 = vmatprep.subr.mxu0 0.0
        %2220 = vmatpush2.msra.mxu0 0.0
        %2221 = vmatprep.subr.mxu0 0.0
        %2222 = vmatpush2.msra.mxu0 0.0
        %2223 = vmatprep.subr.mxu0 0.0
        %2224 = vmatpush2.msra.mxu0 0.0
        %2225 = vmatprep.subr.mxu0 0.0
        %2226 = vmatpush2.msra.mxu0 0.0
        %2227 = vmatprep.subr.mxu0 0.0
        %2228 = vmatpush2.msra.mxu0 0.0
        %2229 = vmatprep.subr.mxu0 0.0
        %2230 = vmatpush2.msra.mxu0 0.0
        %2231 = vmatprep.subr.mxu0 0.0
        %2232 = vmatpush2.msra.mxu0 0.0
        %2233 = vmatprep.subr.mxu0 0.0
        %2234 = vmatpush2.msra.mxu0 0.0
        %2235 = vmatprep.subr.mxu0 0.0
        %2236 = vmatpush2.msra.mxu0 0.0
        %2237 = vmatprep.mubr.f32.mxu0 0.0
        %v2238 = vand.u32 %v1757, 4294901760
        %2239 = vmatmul.mubr.f32.gmra.mxu0 %v2238
        %v2240 = vpop.f32.mrf.mxu0
        %v2241 = vadd.f32 %v2166, %v2240
        %v2242 = vpop.f32.mrf.mxu0
        %2243 = vdwg.mxu0
        %v2244 = vadd.f32 %v312, %v2241
        %v2245 = vsel %vm313, %v2244, 0.0
        %2246 = vadd.xlane.f32.xlu0 %v2245
        %v2247 = vpop.xlane.xlu0 %2246
        %v2248 = vmul.f32 %v2247, %v317
        %v2249 = vsub.f32 %v2244, %v2248
        %v2250 = vmul.f32 %v2249, %v2249
        %v2251 = vsel %vm313, %v2250, 0.0
        %2252 = vadd.xlane.f32.xlu0 %v2251
        %v2253 = vpop.xlane.xlu0 %2252
        %v2254 = vmul.f32 %v2253, %v317
        %v2255 = vadd.f32 %v2254, 1e-05
        %v2256 = vrsqrt.pop %v2255
        %v2257 = vmul.f32 %v2249, %v2256
        %v2258 = vld [vmem:[%s4] sm:$0xff]
        %v2259 = vld [vmem:[%s4 + $0x8] sm:$0xff]
        %v2260 = vld [vmem:[%s4 + $0x10] sm:$0xff]
        %v2261 = vld [vmem:[%s4 + $0x18] sm:$0xff]
        %v2262 = vld [vmem:[%s5] sm:$0x1]
        %v2264 = vlaneseq
        %v2265 = vshrl.u32 %v2264, 7
        %v2266 = vsub.s32 0, %v2265
        %v2267 = vrot.slane %v2262, %v2266
        %v2270 = vsel %vm313, %v2257, 0
        %2272 = vmatprep.subr.mxu0 0.0
        %2273 = vmatpush1.msra.mxu0 0.0
        %2274 = vmatprep.subr.mxu0 0.0
        %2275 = vmatpush1.msra.mxu0 0.0
        %2276 = vmatprep.subr.mxu0 0.0
        %2277 = vmatpush1.msra.mxu0 0.0
        %2278 = vmatprep.subr.mxu0 0.0
        %2279 = vmatpush1.msra.mxu0 0.0
        %2280 = vmatprep.subr.mxu0 0.0
        %2281 = vmatpush1.msra.mxu0 0.0
        %2282 = vmatprep.subr.mxu0 0.0
        %2283 = vmatpush1.msra.mxu0 0.0
        %2284 = vmatprep.subr.mxu0 0.0
        %2285 = vmatpush1.msra.mxu0 0.0
        %2286 = vmatprep.subr.mxu0 0.0
        %2287 = vmatpush1.msra.mxu0 0.0
        %2288 = vmatprep.subr.mxu0 0.0
        %2289 = vmatpush1.msra.mxu0 0.0
        %2290 = vmatprep.subr.mxu0 0.0
        %2291 = vmatpush1.msra.mxu0 0.0
        %2292 = vmatprep.subr.mxu0 0.0
        %2293 = vmatpush1.msra.mxu0 0.0
        %2294 = vmatprep.subr.mxu0 0.0
        %2295 = vmatpush1.msra.mxu0 0.0
        %2296 = vmatprep.subr.mxu0 0.0
        %v2297 = vand.u32 %v2261, 4294901760
        %2298 = vmatpush1.msra.mxu0 %v2297
        %2299 = vmatprep.subr.mxu0 0.0
        %v2300 = vand.u32 %v2260, 4294901760
        %2301 = vmatpush1.msra.mxu0 %v2300
        %2302 = vmatprep.subr.mxu0 0.0
        %v2303 = vand.u32 %v2259, 4294901760
        %2304 = vmatpush1.msra.mxu0 %v2303
        %2305 = vmatprep.subr.mxu0 0.0
        %v2306 = vand.u32 %v2258, 4294901760
        %2307 = vmatpush1.msra.mxu0 %v2306
        %2308 = vmatprep.subr.mxu0 0.0
        %2309 = vmatpush2.msra.mxu0 0.0
        %2310 = vmatprep.subr.mxu0 0.0
        %2311 = vmatpush2.msra.mxu0 0.0
        %2312 = vmatprep.subr.mxu0 0.0
        %2313 = vmatpush2.msra.mxu0 0.0
        %2314 = vmatprep.subr.mxu0 0.0
        %2315 = vmatpush2.msra.mxu0 0.0
        %2316 = vmatprep.subr.mxu0 0.0
        %2317 = vmatpush2.msra.mxu0 0.0
        %2318 = vmatprep.subr.mxu0 0.0
        %2319 = vmatpush2.msra.mxu0 0.0
        %2320 = vmatprep.subr.mxu0 0.0
        %2321 = vmatpush2.msra.mxu0 0.0
        %2322 = vmatprep.subr.mxu0 0.0
        %2323 = vmatpush2.msra.mxu0 0.0
        %2324 = vmatprep.subr.mxu0 0.0
        %2325 = vmatpush2.msra.mxu0 0.0
        %2326 = vmatprep.subr.mxu0 0.0
        %2327 = vmatpush2.msra.mxu0 0.0
        %2328 = vmatprep.subr.mxu0 0.0
        %2329 = vmatpush2.msra.mxu0 0.0
        %2330 = vmatprep.subr.mxu0 0.0
        %2331 = vmatpush2.msra.mxu0 0.0
        %2332 = vmatprep.subr.mxu0 0.0
        %2333 = vmatpush2.msra.mxu0 0.0
        %2334 = vmatprep.subr.mxu0 0.0
        %2335 = vmatpush2.msra.mxu0 0.0
        %2336 = vmatprep.subr.mxu0 0.0
        %2337 = vmatpush2.msra.mxu0 0.0
        %2338 = vmatprep.subr.mxu0 0.0
        %2339 = vmatpush2.msra.mxu0 0.0
        %2340 = vmatprep.mubr.f32.mxu0 0.0
        %v2341 = vand.u32 %v2270, 4294901760
        %v2342 = vsub.f32 %v2270, %v2341
        %v2343 = vand.u32 %v2342, 4294901760
        %v2344 = vsub.f32 %v2342, %v2343
        %v2345 = vand.u32 %v2344, 4294901760
        %2346 = vmatmul.mubr.f32.gmra.mxu0 %v2345
        %v2347 = vpop.f32.mrf.mxu0
        %v2348 = vadd.f32 %v2267, %v2347
        %v2349 = vpop.f32.mrf.mxu0
        %2350 = vdwg.mxu0
        %2351 = vmatprep.subr.mxu0 0.0
        %2352 = vmatpush1.msra.mxu0 0.0
        %2353 = vmatprep.subr.mxu0 0.0
        %2354 = vmatpush1.msra.mxu0 0.0
        %2355 = vmatprep.subr.mxu0 0.0
        %2356 = vmatpush1.msra.mxu0 0.0
        %2357 = vmatprep.subr.mxu0 0.0
        %2358 = vmatpush1.msra.mxu0 0.0
        %2359 = vmatprep.subr.mxu0 0.0
        %2360 = vmatpush1.msra.mxu0 0.0
        %2361 = vmatprep.subr.mxu0 0.0
        %2362 = vmatpush1.msra.mxu0 0.0
        %2363 = vmatprep.subr.mxu0 0.0
        %2364 = vmatpush1.msra.mxu0 0.0
        %2365 = vmatprep.subr.mxu0 0.0
        %2366 = vmatpush1.msra.mxu0 0.0
        %2367 = vmatprep.subr.mxu0 0.0
        %2368 = vmatpush1.msra.mxu0 0.0
        %2369 = vmatprep.subr.mxu0 0.0
        %2370 = vmatpush1.msra.mxu0 0.0
        %2371 = vmatprep.subr.mxu0 0.0
        %2372 = vmatpush1.msra.mxu0 0.0
        %2373 = vmatprep.subr.mxu0 0.0
        %2374 = vmatpush1.msra.mxu0 0.0
        %2375 = vmatprep.subr.mxu0 0.0
        %v2376 = vand.u32 %v2261, 4294901760
        %v2377 = vsub.f32 %v2261, %v2376
        %v2378 = vand.u32 %v2377, 4294901760
        %v2379 = vsub.f32 %v2377, %v2378
        %v2380 = vand.u32 %v2379, 4294901760
        %2381 = vmatpush1.msra.mxu0 %v2380
        %2382 = vmatprep.subr.mxu0 0.0
        %v2383 = vand.u32 %v2260, 4294901760
        %v2384 = vsub.f32 %v2260, %v2383
        %v2385 = vand.u32 %v2384, 4294901760
        %v2386 = vsub.f32 %v2384, %v2385
        %v2387 = vand.u32 %v2386, 4294901760
        %2388 = vmatpush1.msra.mxu0 %v2387
        %2389 = vmatprep.subr.mxu0 0.0
        %v2390 = vand.u32 %v2259, 4294901760
        %v2391 = vsub.f32 %v2259, %v2390
        %v2392 = vand.u32 %v2391, 4294901760
        %v2393 = vsub.f32 %v2391, %v2392
        %v2394 = vand.u32 %v2393, 4294901760
        %2395 = vmatpush1.msra.mxu0 %v2394
        %2396 = vmatprep.subr.mxu0 0.0
        %v2397 = vand.u32 %v2258, 4294901760
        %v2398 = vsub.f32 %v2258, %v2397
        %v2399 = vand.u32 %v2398, 4294901760
        %v2400 = vsub.f32 %v2398, %v2399
        %v2401 = vand.u32 %v2400, 4294901760
        %2402 = vmatpush1.msra.mxu0 %v2401
        %2403 = vmatprep.subr.mxu0 0.0
        %2404 = vmatpush2.msra.mxu0 0.0
        %2405 = vmatprep.subr.mxu0 0.0
        %2406 = vmatpush2.msra.mxu0 0.0
        %2407 = vmatprep.subr.mxu0 0.0
        %2408 = vmatpush2.msra.mxu0 0.0
        %2409 = vmatprep.subr.mxu0 0.0
        %2410 = vmatpush2.msra.mxu0 0.0
        %2411 = vmatprep.subr.mxu0 0.0
        %2412 = vmatpush2.msra.mxu0 0.0
        %2413 = vmatprep.subr.mxu0 0.0
        %2414 = vmatpush2.msra.mxu0 0.0
        %2415 = vmatprep.subr.mxu0 0.0
        %2416 = vmatpush2.msra.mxu0 0.0
        %2417 = vmatprep.subr.mxu0 0.0
        %2418 = vmatpush2.msra.mxu0 0.0
        %2419 = vmatprep.subr.mxu0 0.0
        %2420 = vmatpush2.msra.mxu0 0.0
        %2421 = vmatprep.subr.mxu0 0.0
        %2422 = vmatpush2.msra.mxu0 0.0
        %2423 = vmatprep.subr.mxu0 0.0
        %2424 = vmatpush2.msra.mxu0 0.0
        %2425 = vmatprep.subr.mxu0 0.0
        %2426 = vmatpush2.msra.mxu0 0.0
        %2427 = vmatprep.subr.mxu0 0.0
        %2428 = vmatpush2.msra.mxu0 0.0
        %2429 = vmatprep.subr.mxu0 0.0
        %2430 = vmatpush2.msra.mxu0 0.0
        %2431 = vmatprep.subr.mxu0 0.0
        %2432 = vmatpush2.msra.mxu0 0.0
        %2433 = vmatprep.subr.mxu0 0.0
        %2434 = vmatpush2.msra.mxu0 0.0
        %2435 = vmatprep.mubr.f32.mxu0 0.0
        %v2436 = vand.u32 %v2270, 4294901760
        %2437 = vmatmul.mubr.f32.gmra.mxu0 %v2436
        %v2438 = vpop.f32.mrf.mxu0
        %v2439 = vadd.f32 %v2348, %v2438
        %v2440 = vpop.f32.mrf.mxu0
        %2441 = vdwg.mxu0
        %2442 = vmatprep.subr.mxu0 0.0
        %2443 = vmatpush1.msra.mxu0 0.0
        %2444 = vmatprep.subr.mxu0 0.0
        %2445 = vmatpush1.msra.mxu0 0.0
        %2446 = vmatprep.subr.mxu0 0.0
        %2447 = vmatpush1.msra.mxu0 0.0
        %2448 = vmatprep.subr.mxu0 0.0
        %2449 = vmatpush1.msra.mxu0 0.0
        %2450 = vmatprep.subr.mxu0 0.0
        %2451 = vmatpush1.msra.mxu0 0.0
        %2452 = vmatprep.subr.mxu0 0.0
        %2453 = vmatpush1.msra.mxu0 0.0
        %2454 = vmatprep.subr.mxu0 0.0
        %2455 = vmatpush1.msra.mxu0 0.0
        %2456 = vmatprep.subr.mxu0 0.0
        %2457 = vmatpush1.msra.mxu0 0.0
        %2458 = vmatprep.subr.mxu0 0.0
        %2459 = vmatpush1.msra.mxu0 0.0
        %2460 = vmatprep.subr.mxu0 0.0
        %2461 = vmatpush1.msra.mxu0 0.0
        %2462 = vmatprep.subr.mxu0 0.0
        %2463 = vmatpush1.msra.mxu0 0.0
        %2464 = vmatprep.subr.mxu0 0.0
        %2465 = vmatpush1.msra.mxu0 0.0
        %2466 = vmatprep.subr.mxu0 0.0
        %v2467 = vand.u32 %v2261, 4294901760
        %v2468 = vsub.f32 %v2261, %v2467
        %2469 = vmatpush1.msra.mxu0 %v2468
        %2470 = vmatprep.subr.mxu0 0.0
        %v2471 = vand.u32 %v2260, 4294901760
        %v2472 = vsub.f32 %v2260, %v2471
        %2473 = vmatpush1.msra.mxu0 %v2472
        %2474 = vmatprep.subr.mxu0 0.0
        %v2475 = vand.u32 %v2259, 4294901760
        %v2476 = vsub.f32 %v2259, %v2475
        %2477 = vmatpush1.msra.mxu0 %v2476
        %2478 = vmatprep.subr.mxu0 0.0
        %v2479 = vand.u32 %v2258, 4294901760
        %v2480 = vsub.f32 %v2258, %v2479
        %2481 = vmatpush1.msra.mxu0 %v2480
        %2482 = vmatprep.subr.mxu0 0.0
        %2483 = vmatpush2.msra.mxu0 0.0
        %2484 = vmatprep.subr.mxu0 0.0
        %2485 = vmatpush2.msra.mxu0 0.0
        %2486 = vmatprep.subr.mxu0 0.0
        %2487 = vmatpush2.msra.mxu0 0.0
        %2488 = vmatprep.subr.mxu0 0.0
        %2489 = vmatpush2.msra.mxu0 0.0
        %2490 = vmatprep.subr.mxu0 0.0
        %2491 = vmatpush2.msra.mxu0 0.0
        %2492 = vmatprep.subr.mxu0 0.0
        %2493 = vmatpush2.msra.mxu0 0.0
        %2494 = vmatprep.subr.mxu0 0.0
        %2495 = vmatpush2.msra.mxu0 0.0
        %2496 = vmatprep.subr.mxu0 0.0
        %2497 = vmatpush2.msra.mxu0 0.0
        %2498 = vmatprep.subr.mxu0 0.0
        %2499 = vmatpush2.msra.mxu0 0.0
        %2500 = vmatprep.subr.mxu0 0.0
        %2501 = vmatpush2.msra.mxu0 0.0
        %2502 = vmatprep.subr.mxu0 0.0
        %2503 = vmatpush2.msra.mxu0 0.0
        %2504 = vmatprep.subr.mxu0 0.0
        %2505 = vmatpush2.msra.mxu0 0.0
        %2506 = vmatprep.subr.mxu0 0.0
        %2507 = vmatpush2.msra.mxu0 0.0
        %2508 = vmatprep.subr.mxu0 0.0
        %2509 = vmatpush2.msra.mxu0 0.0
        %2510 = vmatprep.subr.mxu0 0.0
        %2511 = vmatpush2.msra.mxu0 0.0
        %2512 = vmatprep.subr.mxu0 0.0
        %2513 = vmatpush2.msra.mxu0 0.0
        %2514 = vmatprep.mubr.f32.mxu0 0.0
        %v2515 = vand.u32 %v2270, 4294901760
        %v2516 = vsub.f32 %v2270, %v2515
        %2517 = vmatmul.mubr.f32.gmra.mxu0 %v2516
        %v2518 = vpop.f32.mrf.mxu0
        %v2519 = vadd.f32 %v2439, %v2518
        %v2520 = vpop.f32.mrf.mxu0
        %2521 = vdwg.mxu0
        %2522 = vmatprep.subr.mxu0 0.0
        %2523 = vmatpush1.msra.mxu0 0.0
        %2524 = vmatprep.subr.mxu0 0.0
        %2525 = vmatpush1.msra.mxu0 0.0
        %2526 = vmatprep.subr.mxu0 0.0
        %2527 = vmatpush1.msra.mxu0 0.0
        %2528 = vmatprep.subr.mxu0 0.0
        %2529 = vmatpush1.msra.mxu0 0.0
        %2530 = vmatprep.subr.mxu0 0.0
        %2531 = vmatpush1.msra.mxu0 0.0
        %2532 = vmatprep.subr.mxu0 0.0
        %2533 = vmatpush1.msra.mxu0 0.0
        %2534 = vmatprep.subr.mxu0 0.0
        %2535 = vmatpush1.msra.mxu0 0.0
        %2536 = vmatprep.subr.mxu0 0.0
        %2537 = vmatpush1.msra.mxu0 0.0
        %2538 = vmatprep.subr.mxu0 0.0
        %2539 = vmatpush1.msra.mxu0 0.0
        %2540 = vmatprep.subr.mxu0 0.0
        %2541 = vmatpush1.msra.mxu0 0.0
        %2542 = vmatprep.subr.mxu0 0.0
        %2543 = vmatpush1.msra.mxu0 0.0
        %2544 = vmatprep.subr.mxu0 0.0
        %2545 = vmatpush1.msra.mxu0 0.0
        %2546 = vmatprep.subr.mxu0 0.0
        %v2547 = vand.u32 %v2261, 4294901760
        %2548 = vmatpush1.msra.mxu0 %v2547
        %2549 = vmatprep.subr.mxu0 0.0
        %v2550 = vand.u32 %v2260, 4294901760
        %2551 = vmatpush1.msra.mxu0 %v2550
        %2552 = vmatprep.subr.mxu0 0.0
        %v2553 = vand.u32 %v2259, 4294901760
        %2554 = vmatpush1.msra.mxu0 %v2553
        %2555 = vmatprep.subr.mxu0 0.0
        %v2556 = vand.u32 %v2258, 4294901760
        %2557 = vmatpush1.msra.mxu0 %v2556
        %2558 = vmatprep.subr.mxu0 0.0
        %2559 = vmatpush2.msra.mxu0 0.0
        %2560 = vmatprep.subr.mxu0 0.0
        %2561 = vmatpush2.msra.mxu0 0.0
        %2562 = vmatprep.subr.mxu0 0.0
        %2563 = vmatpush2.msra.mxu0 0.0
        %2564 = vmatprep.subr.mxu0 0.0
        %2565 = vmatpush2.msra.mxu0 0.0
        %2566 = vmatprep.subr.mxu0 0.0
        %2567 = vmatpush2.msra.mxu0 0.0
        %2568 = vmatprep.subr.mxu0 0.0
        %2569 = vmatpush2.msra.mxu0 0.0
        %2570 = vmatprep.subr.mxu0 0.0
        %2571 = vmatpush2.msra.mxu0 0.0
        %2572 = vmatprep.subr.mxu0 0.0
        %2573 = vmatpush2.msra.mxu0 0.0
        %2574 = vmatprep.subr.mxu0 0.0
        %2575 = vmatpush2.msra.mxu0 0.0
        %2576 = vmatprep.subr.mxu0 0.0
        %2577 = vmatpush2.msra.mxu0 0.0
        %2578 = vmatprep.subr.mxu0 0.0
        %2579 = vmatpush2.msra.mxu0 0.0
        %2580 = vmatprep.subr.mxu0 0.0
        %2581 = vmatpush2.msra.mxu0 0.0
        %2582 = vmatprep.subr.mxu0 0.0
        %2583 = vmatpush2.msra.mxu0 0.0
        %2584 = vmatprep.subr.mxu0 0.0
        %2585 = vmatpush2.msra.mxu0 0.0
        %2586 = vmatprep.subr.mxu0 0.0
        %2587 = vmatpush2.msra.mxu0 0.0
        %2588 = vmatprep.subr.mxu0 0.0
        %2589 = vmatpush2.msra.mxu0 0.0
        %2590 = vmatprep.mubr.f32.mxu0 0.0
        %v2591 = vand.u32 %v2270, 4294901760
        %v2592 = vsub.f32 %v2270, %v2591
        %v2593 = vand.u32 %v2592, 4294901760
        %2594 = vmatmul.mubr.f32.gmra.mxu0 %v2593
        %v2595 = vpop.f32.mrf.mxu0
        %v2596 = vadd.f32 %v2519, %v2595
        %v2597 = vpop.f32.mrf.mxu0
        %2598 = vdwg.mxu0
        %2599 = vmatprep.subr.mxu0 0.0
        %2600 = vmatpush1.msra.mxu0 0.0
        %2601 = vmatprep.subr.mxu0 0.0
        %2602 = vmatpush1.msra.mxu0 0.0
        %2603 = vmatprep.subr.mxu0 0.0
        %2604 = vmatpush1.msra.mxu0 0.0
        %2605 = vmatprep.subr.mxu0 0.0
        %2606 = vmatpush1.msra.mxu0 0.0
        %2607 = vmatprep.subr.mxu0 0.0
        %2608 = vmatpush1.msra.mxu0 0.0
        %2609 = vmatprep.subr.mxu0 0.0
        %2610 = vmatpush1.msra.mxu0 0.0
        %2611 = vmatprep.subr.mxu0 0.0
        %2612 = vmatpush1.msra.mxu0 0.0
        %2613 = vmatprep.subr.mxu0 0.0
        %2614 = vmatpush1.msra.mxu0 0.0
        %2615 = vmatprep.subr.mxu0 0.0
        %2616 = vmatpush1.msra.mxu0 0.0
        %2617 = vmatprep.subr.mxu0 0.0
        %2618 = vmatpush1.msra.mxu0 0.0
        %2619 = vmatprep.subr.mxu0 0.0
        %2620 = vmatpush1.msra.mxu0 0.0
        %2621 = vmatprep.subr.mxu0 0.0
        %2622 = vmatpush1.msra.mxu0 0.0
        %2623 = vmatprep.subr.mxu0 0.0
        %v2624 = vand.u32 %v2261, 4294901760
        %v2625 = vsub.f32 %v2261, %v2624
        %v2626 = vand.u32 %v2625, 4294901760
        %2627 = vmatpush1.msra.mxu0 %v2626
        %2628 = vmatprep.subr.mxu0 0.0
        %v2629 = vand.u32 %v2260, 4294901760
        %v2630 = vsub.f32 %v2260, %v2629
        %v2631 = vand.u32 %v2630, 4294901760
        %2632 = vmatpush1.msra.mxu0 %v2631
        %2633 = vmatprep.subr.mxu0 0.0
        %v2634 = vand.u32 %v2259, 4294901760
        %v2635 = vsub.f32 %v2259, %v2634
        %v2636 = vand.u32 %v2635, 4294901760
        %2637 = vmatpush1.msra.mxu0 %v2636
        %2638 = vmatprep.subr.mxu0 0.0
        %v2639 = vand.u32 %v2258, 4294901760
        %v2640 = vsub.f32 %v2258, %v2639
        %v2641 = vand.u32 %v2640, 4294901760
        %2642 = vmatpush1.msra.mxu0 %v2641
        %2643 = vmatprep.subr.mxu0 0.0
        %2644 = vmatpush2.msra.mxu0 0.0
        %2645 = vmatprep.subr.mxu0 0.0
        %2646 = vmatpush2.msra.mxu0 0.0
        %2647 = vmatprep.subr.mxu0 0.0
        %2648 = vmatpush2.msra.mxu0 0.0
        %2649 = vmatprep.subr.mxu0 0.0
        %2650 = vmatpush2.msra.mxu0 0.0
        %2651 = vmatprep.subr.mxu0 0.0
        %2652 = vmatpush2.msra.mxu0 0.0
        %2653 = vmatprep.subr.mxu0 0.0
        %2654 = vmatpush2.msra.mxu0 0.0
        %2655 = vmatprep.subr.mxu0 0.0
        %2656 = vmatpush2.msra.mxu0 0.0
        %2657 = vmatprep.subr.mxu0 0.0
        %2658 = vmatpush2.msra.mxu0 0.0
        %2659 = vmatprep.subr.mxu0 0.0
        %2660 = vmatpush2.msra.mxu0 0.0
        %2661 = vmatprep.subr.mxu0 0.0
        %2662 = vmatpush2.msra.mxu0 0.0
        %2663 = vmatprep.subr.mxu0 0.0
        %2664 = vmatpush2.msra.mxu0 0.0
        %2665 = vmatprep.subr.mxu0 0.0
        %2666 = vmatpush2.msra.mxu0 0.0
        %2667 = vmatprep.subr.mxu0 0.0
        %2668 = vmatpush2.msra.mxu0 0.0
        %2669 = vmatprep.subr.mxu0 0.0
        %2670 = vmatpush2.msra.mxu0 0.0
        %2671 = vmatprep.subr.mxu0 0.0
        %2672 = vmatpush2.msra.mxu0 0.0
        %2673 = vmatprep.subr.mxu0 0.0
        %2674 = vmatpush2.msra.mxu0 0.0
        %2675 = vmatprep.mubr.f32.mxu0 0.0
        %v2676 = vand.u32 %v2270, 4294901760
        %2677 = vmatmul.mubr.f32.gmra.mxu0 %v2676
        %v2678 = vpop.f32.mrf.mxu0
        %v2679 = vadd.f32 %v2596, %v2678
        %v2680 = vpop.f32.mrf.mxu0
        %2681 = vdwg.mxu0
        %2682 = vmatprep.subr.mxu0 0.0
        %2683 = vmatpush1.msra.mxu0 0.0
        %2684 = vmatprep.subr.mxu0 0.0
        %2685 = vmatpush1.msra.mxu0 0.0
        %2686 = vmatprep.subr.mxu0 0.0
        %2687 = vmatpush1.msra.mxu0 0.0
        %2688 = vmatprep.subr.mxu0 0.0
        %2689 = vmatpush1.msra.mxu0 0.0
        %2690 = vmatprep.subr.mxu0 0.0
        %2691 = vmatpush1.msra.mxu0 0.0
        %2692 = vmatprep.subr.mxu0 0.0
        %2693 = vmatpush1.msra.mxu0 0.0
        %2694 = vmatprep.subr.mxu0 0.0
        %2695 = vmatpush1.msra.mxu0 0.0
        %2696 = vmatprep.subr.mxu0 0.0
        %2697 = vmatpush1.msra.mxu0 0.0
        %2698 = vmatprep.subr.mxu0 0.0
        %2699 = vmatpush1.msra.mxu0 0.0
        %2700 = vmatprep.subr.mxu0 0.0
        %2701 = vmatpush1.msra.mxu0 0.0
        %2702 = vmatprep.subr.mxu0 0.0
        %2703 = vmatpush1.msra.mxu0 0.0
        %2704 = vmatprep.subr.mxu0 0.0
        %2705 = vmatpush1.msra.mxu0 0.0
        %2706 = vmatprep.subr.mxu0 0.0
        %v2707 = vand.u32 %v2261, 4294901760
        %2708 = vmatpush1.msra.mxu0 %v2707
        %2709 = vmatprep.subr.mxu0 0.0
        %v2710 = vand.u32 %v2260, 4294901760
        %2711 = vmatpush1.msra.mxu0 %v2710
        %2712 = vmatprep.subr.mxu0 0.0
        %v2713 = vand.u32 %v2259, 4294901760
        %2714 = vmatpush1.msra.mxu0 %v2713
        %2715 = vmatprep.subr.mxu0 0.0
        %v2716 = vand.u32 %v2258, 4294901760
        %2717 = vmatpush1.msra.mxu0 %v2716
        %2718 = vmatprep.subr.mxu0 0.0
        %2719 = vmatpush2.msra.mxu0 0.0
        %2720 = vmatprep.subr.mxu0 0.0
        %2721 = vmatpush2.msra.mxu0 0.0
        %2722 = vmatprep.subr.mxu0 0.0
        %2723 = vmatpush2.msra.mxu0 0.0
        %2724 = vmatprep.subr.mxu0 0.0
        %2725 = vmatpush2.msra.mxu0 0.0
        %2726 = vmatprep.subr.mxu0 0.0
        %2727 = vmatpush2.msra.mxu0 0.0
        %2728 = vmatprep.subr.mxu0 0.0
        %2729 = vmatpush2.msra.mxu0 0.0
        %2730 = vmatprep.subr.mxu0 0.0
        %2731 = vmatpush2.msra.mxu0 0.0
        %2732 = vmatprep.subr.mxu0 0.0
        %2733 = vmatpush2.msra.mxu0 0.0
        %2734 = vmatprep.subr.mxu0 0.0
        %2735 = vmatpush2.msra.mxu0 0.0
        %2736 = vmatprep.subr.mxu0 0.0
        %2737 = vmatpush2.msra.mxu0 0.0
        %2738 = vmatprep.subr.mxu0 0.0
        %2739 = vmatpush2.msra.mxu0 0.0
        %2740 = vmatprep.subr.mxu0 0.0
        %2741 = vmatpush2.msra.mxu0 0.0
        %2742 = vmatprep.subr.mxu0 0.0
        %2743 = vmatpush2.msra.mxu0 0.0
        %2744 = vmatprep.subr.mxu0 0.0
        %2745 = vmatpush2.msra.mxu0 0.0
        %2746 = vmatprep.subr.mxu0 0.0
        %2747 = vmatpush2.msra.mxu0 0.0
        %2748 = vmatprep.subr.mxu0 0.0
        %2749 = vmatpush2.msra.mxu0 0.0
        %2750 = vmatprep.mubr.f32.mxu0 0.0
        %v2751 = vand.u32 %v2270, 4294901760
        %2752 = vmatmul.mubr.f32.gmra.mxu0 %v2751
        %v2753 = vpop.f32.mrf.mxu0
        %v2754 = vadd.f32 %v2679, %v2753
        %v2755 = vpop.f32.mrf.mxu0
        %2756 = vdwg.mxu0
        %v2757 = vsel %vm1288, %v2754, -inf
        %2758 = vmax.xlane.f32.xlu0 %v2757
        %v2759 = vpop.xlane.xlu0 %2758
        %v2760 = vsub.f32 %v2754, %v2759
        %v2761 = vmul.f32 %v2760, 1.442695
        %v2762 = vpow.pop %v2761
        %v2763 = vsel %vm1288, %v2762, 0.0
        %2764 = vadd.xlane.f32.xlu0 %v2763
        %v2765 = vpop.xlane.xlu0 %2764
        %v2766 = vrcp.pop %v2765
        %v2767 = vmul.f32 %v2762, %v2766
        %v2768 = vsel %vm1288, %v2767, -inf
        %2769 = vmax.xlane.f32.xlu0 %v2768
        %v2770 = vpop.xlane.xlu0 %2769
        %vm2771 = vcmp.lt.f32.partialorder %v2767, %v2770
        %v2772 = vsel %vm2771, %v2767, -1.0
        %v2773 = vsel %vm1288, %v2772, -inf
        %2774 = vmax.xlane.f32.xlu0 %v2773
        %v2775 = vpop.xlane.xlu0 %2774
        %vm2776 = vcmp.ge.f32.partialorder %v2767, %v2775
        %v2777 = vsel %vm2776, 1, 0
        %v2778 = vcvt.s32.f32 %v2777
        %v2779 = vadd.f32 %v2770, %v2775
        %v2780 = vmul.f32 %v2754, 0.5
        %v2781 = vmul.f32 %v2754, 0.70710677
        %v2782 = vand.u32 2147483647, %v2781
        %v2783 = vmul.f32 %v2782, 0.3275911
        %v2784 = vadd.f32 %v2783, 1.0
        %v2785 = vrcp.pop %v2784
        %v2786 = vmul.f32 1.0, %v2785
        %v2787 = vmul.f32 %v2786, 1.0614054
        %v2788 = vadd.f32 %v2787, -1.4531521
        %v2789 = vmul.f32 %v2788, %v2786
        %v2790 = vadd.f32 %v2789, 1.4214138
        %v2791 = vmul.f32 %v2790, %v2786
        %v2792 = vadd.f32 %v2791, -0.28449672
        %v2793 = vmul.f32 %v2792, %v2786
        %v2794 = vadd.f32 %v2793, 0.2548296
        %v2795 = vmul.f32 %v2794, %v2786
        %v2796 = vsub.f32 0.0, %v2782
        %v2797 = vmul.f32 %v2796, %v2782
        %v2798 = vmul.f32 %v2797, 1.442695
        %v2799 = vpow.pop %v2798
        %v2800 = vmul.f32 %v2795, %v2799
        %v2801 = vsub.f32 1.0, %v2800
        %vm2802 = vcmp.ge.f32.partialorder %v2781, 0.0
        %v2803 = vsub.f32 0.0, %v2801
        %v2804 = vsel %vm2802, %v2801, %v2803
        %v2805 = vadd.f32 %v2804, 1.0
        %v2806 = vmul.f32 %v2780, %v2805
        %v2807 = vmul.u32 %v1282, 8
        %vm2808 = vcmp.ge.s32.totalorder %v1284, %v2807
        %v2809 = vadd.s32 %v2807, 8
        %vm2810 = vcmp.lt.s32.totalorder %v1284, %v2809
        %vm2811 = vmand %vm2808, %vm2810
        %v2812 = vsel %vm2811, 1, 0
        %v2813 = vcvt.s32.f32 %v2812
        %v2815 = vsel %vm1288, %v2778, 0
        %2817 = vmatprep.subr.mxu0 0.0
        %2818 = vmatpush1.msra.mxu0 0.0
        %2819 = vmatprep.subr.mxu0 0.0
        %2820 = vmatpush1.msra.mxu0 0.0
        %2821 = vmatprep.subr.mxu0 0.0
        %2822 = vmatpush1.msra.mxu0 0.0
        %2823 = vmatprep.subr.mxu0 0.0
        %2824 = vmatpush1.msra.mxu0 0.0
        %2825 = vmatprep.subr.mxu0 0.0
        %2826 = vmatpush1.msra.mxu0 0.0
        %2827 = vmatprep.subr.mxu0 0.0
        %2828 = vmatpush1.msra.mxu0 0.0
        %2829 = vmatprep.subr.mxu0 0.0
        %2830 = vmatpush1.msra.mxu0 0.0
        %2831 = vmatprep.subr.mxu0 0.0
        %2832 = vmatpush1.msra.mxu0 0.0
        %2833 = vmatprep.subr.mxu0 0.0
        %2834 = vmatpush1.msra.mxu0 0.0
        %2835 = vmatprep.subr.mxu0 0.0
        %2836 = vmatpush1.msra.mxu0 0.0
        %2837 = vmatprep.subr.mxu0 0.0
        %2838 = vmatpush1.msra.mxu0 0.0
        %2839 = vmatprep.subr.mxu0 0.0
        %2840 = vmatpush1.msra.mxu0 0.0
        %2841 = vmatprep.subr.mxu0 0.0
        %2842 = vmatpush1.msra.mxu0 0.0
        %2843 = vmatprep.subr.mxu0 0.0
        %2844 = vmatpush1.msra.mxu0 0.0
        %2845 = vmatprep.subr.mxu0 0.0
        %2846 = vmatpush1.msra.mxu0 0.0
        %2847 = vmatprep.subr.mxu0 0.0
        %v2848 = vand.u32 %v2813, 4294901760
        %2849 = vmatpush1.msra.mxu0 %v2848
        %2850 = vmatprep.subr.mxu0 0.0
        %2851 = vmatpush2.msra.mxu0 0.0
        %2852 = vmatprep.subr.mxu0 0.0
        %2853 = vmatpush2.msra.mxu0 0.0
        %2854 = vmatprep.subr.mxu0 0.0
        %2855 = vmatpush2.msra.mxu0 0.0
        %2856 = vmatprep.subr.mxu0 0.0
        %2857 = vmatpush2.msra.mxu0 0.0
        %2858 = vmatprep.subr.mxu0 0.0
        %2859 = vmatpush2.msra.mxu0 0.0
        %2860 = vmatprep.subr.mxu0 0.0
        %2861 = vmatpush2.msra.mxu0 0.0
        %2862 = vmatprep.subr.mxu0 0.0
        %2863 = vmatpush2.msra.mxu0 0.0
        %2864 = vmatprep.subr.mxu0 0.0
        %2865 = vmatpush2.msra.mxu0 0.0
        %2866 = vmatprep.subr.mxu0 0.0
        %2867 = vmatpush2.msra.mxu0 0.0
        %2868 = vmatprep.subr.mxu0 0.0
        %2869 = vmatpush2.msra.mxu0 0.0
        %2870 = vmatprep.subr.mxu0 0.0
        %2871 = vmatpush2.msra.mxu0 0.0
        %2872 = vmatprep.subr.mxu0 0.0
        %2873 = vmatpush2.msra.mxu0 0.0
        %2874 = vmatprep.subr.mxu0 0.0
        %2875 = vmatpush2.msra.mxu0 0.0
        %2876 = vmatprep.subr.mxu0 0.0
        %2877 = vmatpush2.msra.mxu0 0.0
        %2878 = vmatprep.subr.mxu0 0.0
        %2879 = vmatpush2.msra.mxu0 0.0
        %2880 = vmatprep.subr.mxu0 0.0
        %2881 = vmatpush2.msra.mxu0 0.0
        %2882 = vmatprep.mubr.f32.mxu0 0.0
        %v2883 = vand.u32 %v2815, 4294901760
        %v2884 = vsub.f32 %v2815, %v2883
        %v2885 = vand.u32 %v2884, 4294901760
        %v2886 = vsub.f32 %v2884, %v2885
        %v2887 = vand.u32 %v2886, 4294901760
        %2888 = vmatmul.mubr.f32.gmra.mxu0 %v2887
        %v2889 = vpop.f32.mrf.mxu0
        %v2890 = vadd.f32 0.0, %v2889
        %v2891 = vpop.f32.mrf.mxu0
        %2892 = vdwg.mxu0
        %2893 = vmatprep.subr.mxu0 0.0
        %2894 = vmatpush1.msra.mxu0 0.0
        %2895 = vmatprep.subr.mxu0 0.0
        %2896 = vmatpush1.msra.mxu0 0.0
        %2897 = vmatprep.subr.mxu0 0.0
        %2898 = vmatpush1.msra.mxu0 0.0
        %2899 = vmatprep.subr.mxu0 0.0
        %2900 = vmatpush1.msra.mxu0 0.0
        %2901 = vmatprep.subr.mxu0 0.0
        %2902 = vmatpush1.msra.mxu0 0.0
        %2903 = vmatprep.subr.mxu0 0.0
        %2904 = vmatpush1.msra.mxu0 0.0
        %2905 = vmatprep.subr.mxu0 0.0
        %2906 = vmatpush1.msra.mxu0 0.0
        %2907 = vmatprep.subr.mxu0 0.0
        %2908 = vmatpush1.msra.mxu0 0.0
        %2909 = vmatprep.subr.mxu0 0.0
        %2910 = vmatpush1.msra.mxu0 0.0
        %2911 = vmatprep.subr.mxu0 0.0
        %2912 = vmatpush1.msra.mxu0 0.0
        %2913 = vmatprep.subr.mxu0 0.0
        %2914 = vmatpush1.msra.mxu0 0.0
        %2915 = vmatprep.subr.mxu0 0.0
        %2916 = vmatpush1.msra.mxu0 0.0
        %2917 = vmatprep.subr.mxu0 0.0
        %2918 = vmatpush1.msra.mxu0 0.0
        %2919 = vmatprep.subr.mxu0 0.0
        %2920 = vmatpush1.msra.mxu0 0.0
        %2921 = vmatprep.subr.mxu0 0.0
        %2922 = vmatpush1.msra.mxu0 0.0
        %2923 = vmatprep.subr.mxu0 0.0
        %v2924 = vand.u32 %v2813, 4294901760
        %v2925 = vsub.f32 %v2813, %v2924
        %v2926 = vand.u32 %v2925, 4294901760
        %v2927 = vsub.f32 %v2925, %v2926
        %v2928 = vand.u32 %v2927, 4294901760
        %2929 = vmatpush1.msra.mxu0 %v2928
        %2930 = vmatprep.subr.mxu0 0.0
        %2931 = vmatpush2.msra.mxu0 0.0
        %2932 = vmatprep.subr.mxu0 0.0
        %2933 = vmatpush2.msra.mxu0 0.0
        %2934 = vmatprep.subr.mxu0 0.0
        %2935 = vmatpush2.msra.mxu0 0.0
        %2936 = vmatprep.subr.mxu0 0.0
        %2937 = vmatpush2.msra.mxu0 0.0
        %2938 = vmatprep.subr.mxu0 0.0
        %2939 = vmatpush2.msra.mxu0 0.0
        %2940 = vmatprep.subr.mxu0 0.0
        %2941 = vmatpush2.msra.mxu0 0.0
        %2942 = vmatprep.subr.mxu0 0.0
        %2943 = vmatpush2.msra.mxu0 0.0
        %2944 = vmatprep.subr.mxu0 0.0
        %2945 = vmatpush2.msra.mxu0 0.0
        %2946 = vmatprep.subr.mxu0 0.0
        %2947 = vmatpush2.msra.mxu0 0.0
        %2948 = vmatprep.subr.mxu0 0.0
        %2949 = vmatpush2.msra.mxu0 0.0
        %2950 = vmatprep.subr.mxu0 0.0
        %2951 = vmatpush2.msra.mxu0 0.0
        %2952 = vmatprep.subr.mxu0 0.0
        %2953 = vmatpush2.msra.mxu0 0.0
        %2954 = vmatprep.subr.mxu0 0.0
        %2955 = vmatpush2.msra.mxu0 0.0
        %2956 = vmatprep.subr.mxu0 0.0
        %2957 = vmatpush2.msra.mxu0 0.0
        %2958 = vmatprep.subr.mxu0 0.0
        %2959 = vmatpush2.msra.mxu0 0.0
        %2960 = vmatprep.subr.mxu0 0.0
        %2961 = vmatpush2.msra.mxu0 0.0
        %2962 = vmatprep.mubr.f32.mxu0 0.0
        %v2963 = vand.u32 %v2815, 4294901760
        %2964 = vmatmul.mubr.f32.gmra.mxu0 %v2963
        %v2965 = vpop.f32.mrf.mxu0
        %v2966 = vadd.f32 %v2890, %v2965
        %v2967 = vpop.f32.mrf.mxu0
        %2968 = vdwg.mxu0
        %2969 = vmatprep.subr.mxu0 0.0
        %2970 = vmatpush1.msra.mxu0 0.0
        %2971 = vmatprep.subr.mxu0 0.0
        %2972 = vmatpush1.msra.mxu0 0.0
        %2973 = vmatprep.subr.mxu0 0.0
        %2974 = vmatpush1.msra.mxu0 0.0
        %2975 = vmatprep.subr.mxu0 0.0
        %2976 = vmatpush1.msra.mxu0 0.0
        %2977 = vmatprep.subr.mxu0 0.0
        %2978 = vmatpush1.msra.mxu0 0.0
        %2979 = vmatprep.subr.mxu0 0.0
        %2980 = vmatpush1.msra.mxu0 0.0
        %2981 = vmatprep.subr.mxu0 0.0
        %2982 = vmatpush1.msra.mxu0 0.0
        %2983 = vmatprep.subr.mxu0 0.0
        %2984 = vmatpush1.msra.mxu0 0.0
        %2985 = vmatprep.subr.mxu0 0.0
        %2986 = vmatpush1.msra.mxu0 0.0
        %2987 = vmatprep.subr.mxu0 0.0
        %2988 = vmatpush1.msra.mxu0 0.0
        %2989 = vmatprep.subr.mxu0 0.0
        %2990 = vmatpush1.msra.mxu0 0.0
        %2991 = vmatprep.subr.mxu0 0.0
        %2992 = vmatpush1.msra.mxu0 0.0
        %2993 = vmatprep.subr.mxu0 0.0
        %2994 = vmatpush1.msra.mxu0 0.0
        %2995 = vmatprep.subr.mxu0 0.0
        %2996 = vmatpush1.msra.mxu0 0.0
        %2997 = vmatprep.subr.mxu0 0.0
        %2998 = vmatpush1.msra.mxu0 0.0
        %2999 = vmatprep.subr.mxu0 0.0
        %v3000 = vand.u32 %v2813, 4294901760
        %v3001 = vsub.f32 %v2813, %v3000
        %3002 = vmatpush1.msra.mxu0 %v3001
        %3003 = vmatprep.subr.mxu0 0.0
        %3004 = vmatpush2.msra.mxu0 0.0
        %3005 = vmatprep.subr.mxu0 0.0
        %3006 = vmatpush2.msra.mxu0 0.0
        %3007 = vmatprep.subr.mxu0 0.0
        %3008 = vmatpush2.msra.mxu0 0.0
        %3009 = vmatprep.subr.mxu0 0.0
        %3010 = vmatpush2.msra.mxu0 0.0
        %3011 = vmatprep.subr.mxu0 0.0
        %3012 = vmatpush2.msra.mxu0 0.0
        %3013 = vmatprep.subr.mxu0 0.0
        %3014 = vmatpush2.msra.mxu0 0.0
        %3015 = vmatprep.subr.mxu0 0.0
        %3016 = vmatpush2.msra.mxu0 0.0
        %3017 = vmatprep.subr.mxu0 0.0
        %3018 = vmatpush2.msra.mxu0 0.0
        %3019 = vmatprep.subr.mxu0 0.0
        %3020 = vmatpush2.msra.mxu0 0.0
        %3021 = vmatprep.subr.mxu0 0.0
        %3022 = vmatpush2.msra.mxu0 0.0
        %3023 = vmatprep.subr.mxu0 0.0
        %3024 = vmatpush2.msra.mxu0 0.0
        %3025 = vmatprep.subr.mxu0 0.0
        %3026 = vmatpush2.msra.mxu0 0.0
        %3027 = vmatprep.subr.mxu0 0.0
        %3028 = vmatpush2.msra.mxu0 0.0
        %3029 = vmatprep.subr.mxu0 0.0
        %3030 = vmatpush2.msra.mxu0 0.0
        %3031 = vmatprep.subr.mxu0 0.0
        %3032 = vmatpush2.msra.mxu0 0.0
        %3033 = vmatprep.subr.mxu0 0.0
        %3034 = vmatpush2.msra.mxu0 0.0
        %3035 = vmatprep.mubr.f32.mxu0 0.0
        %v3036 = vand.u32 %v2815, 4294901760
        %v3037 = vsub.f32 %v2815, %v3036
        %3038 = vmatmul.mubr.f32.gmra.mxu0 %v3037
        %v3039 = vpop.f32.mrf.mxu0
        %v3040 = vadd.f32 %v2966, %v3039
        %v3041 = vpop.f32.mrf.mxu0
        %3042 = vdwg.mxu0
        %3043 = vmatprep.subr.mxu0 0.0
        %3044 = vmatpush1.msra.mxu0 0.0
        %3045 = vmatprep.subr.mxu0 0.0
        %3046 = vmatpush1.msra.mxu0 0.0
        %3047 = vmatprep.subr.mxu0 0.0
        %3048 = vmatpush1.msra.mxu0 0.0
        %3049 = vmatprep.subr.mxu0 0.0
        %3050 = vmatpush1.msra.mxu0 0.0
        %3051 = vmatprep.subr.mxu0 0.0
        %3052 = vmatpush1.msra.mxu0 0.0
        %3053 = vmatprep.subr.mxu0 0.0
        %3054 = vmatpush1.msra.mxu0 0.0
        %3055 = vmatprep.subr.mxu0 0.0
        %3056 = vmatpush1.msra.mxu0 0.0
        %3057 = vmatprep.subr.mxu0 0.0
        %3058 = vmatpush1.msra.mxu0 0.0
        %3059 = vmatprep.subr.mxu0 0.0
        %3060 = vmatpush1.msra.mxu0 0.0
        %3061 = vmatprep.subr.mxu0 0.0
        %3062 = vmatpush1.msra.mxu0 0.0
        %3063 = vmatprep.subr.mxu0 0.0
        %3064 = vmatpush1.msra.mxu0 0.0
        %3065 = vmatprep.subr.mxu0 0.0
        %3066 = vmatpush1.msra.mxu0 0.0
        %3067 = vmatprep.subr.mxu0 0.0
        %3068 = vmatpush1.msra.mxu0 0.0
        %3069 = vmatprep.subr.mxu0 0.0
        %3070 = vmatpush1.msra.mxu0 0.0
        %3071 = vmatprep.subr.mxu0 0.0
        %3072 = vmatpush1.msra.mxu0 0.0
        %3073 = vmatprep.subr.mxu0 0.0
        %v3074 = vand.u32 %v2813, 4294901760
        %3075 = vmatpush1.msra.mxu0 %v3074
        %3076 = vmatprep.subr.mxu0 0.0
        %3077 = vmatpush2.msra.mxu0 0.0
        %3078 = vmatprep.subr.mxu0 0.0
        %3079 = vmatpush2.msra.mxu0 0.0
        %3080 = vmatprep.subr.mxu0 0.0
        %3081 = vmatpush2.msra.mxu0 0.0
        %3082 = vmatprep.subr.mxu0 0.0
        %3083 = vmatpush2.msra.mxu0 0.0
        %3084 = vmatprep.subr.mxu0 0.0
        %3085 = vmatpush2.msra.mxu0 0.0
        %3086 = vmatprep.subr.mxu0 0.0
        %3087 = vmatpush2.msra.mxu0 0.0
        %3088 = vmatprep.subr.mxu0 0.0
        %3089 = vmatpush2.msra.mxu0 0.0
        %3090 = vmatprep.subr.mxu0 0.0
        %3091 = vmatpush2.msra.mxu0 0.0
        %3092 = vmatprep.subr.mxu0 0.0
        %3093 = vmatpush2.msra.mxu0 0.0
        %3094 = vmatprep.subr.mxu0 0.0
        %3095 = vmatpush2.msra.mxu0 0.0
        %3096 = vmatprep.subr.mxu0 0.0
        %3097 = vmatpush2.msra.mxu0 0.0
        %3098 = vmatprep.subr.mxu0 0.0
        %3099 = vmatpush2.msra.mxu0 0.0
        %3100 = vmatprep.subr.mxu0 0.0
        %3101 = vmatpush2.msra.mxu0 0.0
        %3102 = vmatprep.subr.mxu0 0.0
        %3103 = vmatpush2.msra.mxu0 0.0
        %3104 = vmatprep.subr.mxu0 0.0
        %3105 = vmatpush2.msra.mxu0 0.0
        %3106 = vmatprep.subr.mxu0 0.0
        %3107 = vmatpush2.msra.mxu0 0.0
        %3108 = vmatprep.mubr.f32.mxu0 0.0
        %v3109 = vand.u32 %v2815, 4294901760
        %v3110 = vsub.f32 %v2815, %v3109
        %v3111 = vand.u32 %v3110, 4294901760
        %3112 = vmatmul.mubr.f32.gmra.mxu0 %v3111
        %v3113 = vpop.f32.mrf.mxu0
        %v3114 = vadd.f32 %v3040, %v3113
        %v3115 = vpop.f32.mrf.mxu0
        %3116 = vdwg.mxu0
        %3117 = vmatprep.subr.mxu0 0.0
        %3118 = vmatpush1.msra.mxu0 0.0
        %3119 = vmatprep.subr.mxu0 0.0
        %3120 = vmatpush1.msra.mxu0 0.0
        %3121 = vmatprep.subr.mxu0 0.0
        %3122 = vmatpush1.msra.mxu0 0.0
        %3123 = vmatprep.subr.mxu0 0.0
        %3124 = vmatpush1.msra.mxu0 0.0
        %3125 = vmatprep.subr.mxu0 0.0
        %3126 = vmatpush1.msra.mxu0 0.0
        %3127 = vmatprep.subr.mxu0 0.0
        %3128 = vmatpush1.msra.mxu0 0.0
        %3129 = vmatprep.subr.mxu0 0.0
        %3130 = vmatpush1.msra.mxu0 0.0
        %3131 = vmatprep.subr.mxu0 0.0
        %3132 = vmatpush1.msra.mxu0 0.0
        %3133 = vmatprep.subr.mxu0 0.0
        %3134 = vmatpush1.msra.mxu0 0.0
        %3135 = vmatprep.subr.mxu0 0.0
        %3136 = vmatpush1.msra.mxu0 0.0
        %3137 = vmatprep.subr.mxu0 0.0
        %3138 = vmatpush1.msra.mxu0 0.0
        %3139 = vmatprep.subr.mxu0 0.0
        %3140 = vmatpush1.msra.mxu0 0.0
        %3141 = vmatprep.subr.mxu0 0.0
        %3142 = vmatpush1.msra.mxu0 0.0
        %3143 = vmatprep.subr.mxu0 0.0
        %3144 = vmatpush1.msra.mxu0 0.0
        %3145 = vmatprep.subr.mxu0 0.0
        %3146 = vmatpush1.msra.mxu0 0.0
        %3147 = vmatprep.subr.mxu0 0.0
        %v3148 = vand.u32 %v2813, 4294901760
        %v3149 = vsub.f32 %v2813, %v3148
        %v3150 = vand.u32 %v3149, 4294901760
        %3151 = vmatpush1.msra.mxu0 %v3150
        %3152 = vmatprep.subr.mxu0 0.0
        %3153 = vmatpush2.msra.mxu0 0.0
        %3154 = vmatprep.subr.mxu0 0.0
        %3155 = vmatpush2.msra.mxu0 0.0
        %3156 = vmatprep.subr.mxu0 0.0
        %3157 = vmatpush2.msra.mxu0 0.0
        %3158 = vmatprep.subr.mxu0 0.0
        %3159 = vmatpush2.msra.mxu0 0.0
        %3160 = vmatprep.subr.mxu0 0.0
        %3161 = vmatpush2.msra.mxu0 0.0
        %3162 = vmatprep.subr.mxu0 0.0
        %3163 = vmatpush2.msra.mxu0 0.0
        %3164 = vmatprep.subr.mxu0 0.0
        %3165 = vmatpush2.msra.mxu0 0.0
        %3166 = vmatprep.subr.mxu0 0.0
        %3167 = vmatpush2.msra.mxu0 0.0
        %3168 = vmatprep.subr.mxu0 0.0
        %3169 = vmatpush2.msra.mxu0 0.0
        %3170 = vmatprep.subr.mxu0 0.0
        %3171 = vmatpush2.msra.mxu0 0.0
        %3172 = vmatprep.subr.mxu0 0.0
        %3173 = vmatpush2.msra.mxu0 0.0
        %3174 = vmatprep.subr.mxu0 0.0
        %3175 = vmatpush2.msra.mxu0 0.0
        %3176 = vmatprep.subr.mxu0 0.0
        %3177 = vmatpush2.msra.mxu0 0.0
        %3178 = vmatprep.subr.mxu0 0.0
        %3179 = vmatpush2.msra.mxu0 0.0
        %3180 = vmatprep.subr.mxu0 0.0
        %3181 = vmatpush2.msra.mxu0 0.0
        %3182 = vmatprep.subr.mxu0 0.0
        %3183 = vmatpush2.msra.mxu0 0.0
        %3184 = vmatprep.mubr.f32.mxu0 0.0
        %v3185 = vand.u32 %v2815, 4294901760
        %3186 = vmatmul.mubr.f32.gmra.mxu0 %v3185
        %v3187 = vpop.f32.mrf.mxu0
        %v3188 = vadd.f32 %v3114, %v3187
        %v3189 = vpop.f32.mrf.mxu0
        %3190 = vdwg.mxu0
        %3191 = vmatprep.subr.mxu0 0.0
        %3192 = vmatpush1.msra.mxu0 0.0
        %3193 = vmatprep.subr.mxu0 0.0
        %3194 = vmatpush1.msra.mxu0 0.0
        %3195 = vmatprep.subr.mxu0 0.0
        %3196 = vmatpush1.msra.mxu0 0.0
        %3197 = vmatprep.subr.mxu0 0.0
        %3198 = vmatpush1.msra.mxu0 0.0
        %3199 = vmatprep.subr.mxu0 0.0
        %3200 = vmatpush1.msra.mxu0 0.0
        %3201 = vmatprep.subr.mxu0 0.0
        %3202 = vmatpush1.msra.mxu0 0.0
        %3203 = vmatprep.subr.mxu0 0.0
        %3204 = vmatpush1.msra.mxu0 0.0
        %3205 = vmatprep.subr.mxu0 0.0
        %3206 = vmatpush1.msra.mxu0 0.0
        %3207 = vmatprep.subr.mxu0 0.0
        %3208 = vmatpush1.msra.mxu0 0.0
        %3209 = vmatprep.subr.mxu0 0.0
        %3210 = vmatpush1.msra.mxu0 0.0
        %3211 = vmatprep.subr.mxu0 0.0
        %3212 = vmatpush1.msra.mxu0 0.0
        %3213 = vmatprep.subr.mxu0 0.0
        %3214 = vmatpush1.msra.mxu0 0.0
        %3215 = vmatprep.subr.mxu0 0.0
        %3216 = vmatpush1.msra.mxu0 0.0
        %3217 = vmatprep.subr.mxu0 0.0
        %3218 = vmatpush1.msra.mxu0 0.0
        %3219 = vmatprep.subr.mxu0 0.0
        %3220 = vmatpush1.msra.mxu0 0.0
        %3221 = vmatprep.subr.mxu0 0.0
        %v3222 = vand.u32 %v2813, 4294901760
        %3223 = vmatpush1.msra.mxu0 %v3222
        %3224 = vmatprep.subr.mxu0 0.0
        %3225 = vmatpush2.msra.mxu0 0.0
        %3226 = vmatprep.subr.mxu0 0.0
        %3227 = vmatpush2.msra.mxu0 0.0
        %3228 = vmatprep.subr.mxu0 0.0
        %3229 = vmatpush2.msra.mxu0 0.0
        %3230 = vmatprep.subr.mxu0 0.0
        %3231 = vmatpush2.msra.mxu0 0.0
        %3232 = vmatprep.subr.mxu0 0.0
        %3233 = vmatpush2.msra.mxu0 0.0
        %3234 = vmatprep.subr.mxu0 0.0
        %3235 = vmatpush2.msra.mxu0 0.0
        %3236 = vmatprep.subr.mxu0 0.0
        %3237 = vmatpush2.msra.mxu0 0.0
        %3238 = vmatprep.subr.mxu0 0.0
        %3239 = vmatpush2.msra.mxu0 0.0
        %3240 = vmatprep.subr.mxu0 0.0
        %3241 = vmatpush2.msra.mxu0 0.0
        %3242 = vmatprep.subr.mxu0 0.0
        %3243 = vmatpush2.msra.mxu0 0.0
        %3244 = vmatprep.subr.mxu0 0.0
        %3245 = vmatpush2.msra.mxu0 0.0
        %3246 = vmatprep.subr.mxu0 0.0
        %3247 = vmatpush2.msra.mxu0 0.0
        %3248 = vmatprep.subr.mxu0 0.0
        %3249 = vmatpush2.msra.mxu0 0.0
        %3250 = vmatprep.subr.mxu0 0.0
        %3251 = vmatpush2.msra.mxu0 0.0
        %3252 = vmatprep.subr.mxu0 0.0
        %3253 = vmatpush2.msra.mxu0 0.0
        %3254 = vmatprep.subr.mxu0 0.0
        %3255 = vmatpush2.msra.mxu0 0.0
        %3256 = vmatprep.mubr.f32.mxu0 0.0
        %v3257 = vand.u32 %v2815, 4294901760
        %3258 = vmatmul.mubr.f32.gmra.mxu0 %v3257
        %v3259 = vpop.f32.mrf.mxu0
        %v3260 = vadd.f32 %v3188, %v3259
        %v3261 = vpop.f32.mrf.mxu0
        %3262 = vdwg.mxu0
        %3264 = vrot.lane.b32.xlu0 %v3260, 8
        %v3265 = vpop.permute.xlu0 %3264
        %v3267 = vmul.f32 %v2806, %v3265
        %3269 = vrot.lane.b32.xlu0 %v3267, 120
        %v3270 = vpop.permute.xlu0 %3269
        %3272 = vrot.lane.b32.xlu0 %v2778, 64
        %v3273 = vpop.permute.xlu0 %3272
        %vm3275 = vcmask 523264
        %v3276 = vsel %vm3275, %v3270, %v3273
        %v3277 = vld [vmem:[%s6] sm:$0xff]
        %v3278 = vld [vmem:[%s6 + $0x8] sm:$0xff]
        %v3279 = vld [vmem:[%s6 + $0x10] sm:$0xff]
        %v3280 = vld [vmem:[%s6 + $0x18] sm:$0xff]
        %v3281 = vld [vmem:[%s6 + $0x20] sm:$0xff]
        %v3282 = vld [vmem:[%s6 + $0x28] sm:$0xff]
        %v3283 = vld [vmem:[%s6 + $0x30] sm:$0xff]
        %v3284 = vld [vmem:[%s6 + $0x38] sm:$0xff]
        %v3285 = vld [vmem:[%s6 + $0x40] sm:$0xff]
        %vm3286 = vcmask 588800
        %v3288 = vsel %vm3286, %v3276, 0
        %3290 = vmatprep.subr.mxu0 0.0
        %3291 = vmatpush1.msra.mxu0 0.0
        %3292 = vmatprep.subr.mxu0 0.0
        %3293 = vmatpush1.msra.mxu0 0.0
        %3294 = vmatprep.subr.mxu0 0.0
        %3295 = vmatpush1.msra.mxu0 0.0
        %3296 = vmatprep.subr.mxu0 0.0
        %3297 = vmatpush1.msra.mxu0 0.0
        %3298 = vmatprep.subr.mxu0 0.0
        %3299 = vmatpush1.msra.mxu0 0.0
        %3300 = vmatprep.subr.mxu0 0.0
        %3301 = vmatpush1.msra.mxu0 0.0
        %3302 = vmatprep.subr.mxu0 0.0
        %3303 = vmatpush1.msra.mxu0 0.0
        %3304 = vmatprep.subr.mxu0 0.0
        %v3305 = vand.u32 %v3285, 4294901760
        %3306 = vmatpush1.msra.mxu0 %v3305
        %3307 = vmatprep.subr.mxu0 0.0
        %v3308 = vand.u32 %v3284, 4294901760
        %3309 = vmatpush1.msra.mxu0 %v3308
        %3310 = vmatprep.subr.mxu0 0.0
        %v3311 = vand.u32 %v3283, 4294901760
        %3312 = vmatpush1.msra.mxu0 %v3311
        %3313 = vmatprep.subr.mxu0 0.0
        %v3314 = vand.u32 %v3282, 4294901760
        %3315 = vmatpush1.msra.mxu0 %v3314
        %3316 = vmatprep.subr.mxu0 0.0
        %v3317 = vand.u32 %v3281, 4294901760
        %3318 = vmatpush1.msra.mxu0 %v3317
        %3319 = vmatprep.subr.mxu0 0.0
        %v3320 = vand.u32 %v3280, 4294901760
        %3321 = vmatpush1.msra.mxu0 %v3320
        %3322 = vmatprep.subr.mxu0 0.0
        %v3323 = vand.u32 %v3279, 4294901760
        %3324 = vmatpush1.msra.mxu0 %v3323
        %3325 = vmatprep.subr.mxu0 0.0
        %v3326 = vand.u32 %v3278, 4294901760
        %3327 = vmatpush1.msra.mxu0 %v3326
        %3328 = vmatprep.subr.mxu0 0.0
        %v3329 = vand.u32 %v3277, 4294901760
        %3330 = vmatpush1.msra.mxu0 %v3329
        %3331 = vmatprep.subr.mxu0 0.0
        %3332 = vmatpush2.msra.mxu0 0.0
        %3333 = vmatprep.subr.mxu0 0.0
        %3334 = vmatpush2.msra.mxu0 0.0
        %3335 = vmatprep.subr.mxu0 0.0
        %3336 = vmatpush2.msra.mxu0 0.0
        %3337 = vmatprep.subr.mxu0 0.0
        %3338 = vmatpush2.msra.mxu0 0.0
        %3339 = vmatprep.subr.mxu0 0.0
        %3340 = vmatpush2.msra.mxu0 0.0
        %3341 = vmatprep.subr.mxu0 0.0
        %3342 = vmatpush2.msra.mxu0 0.0
        %3343 = vmatprep.subr.mxu0 0.0
        %3344 = vmatpush2.msra.mxu0 0.0
        %3345 = vmatprep.subr.mxu0 0.0
        %3346 = vmatpush2.msra.mxu0 0.0
        %3347 = vmatprep.subr.mxu0 0.0
        %3348 = vmatpush2.msra.mxu0 0.0
        %3349 = vmatprep.subr.mxu0 0.0
        %3350 = vmatpush2.msra.mxu0 0.0
        %3351 = vmatprep.subr.mxu0 0.0
        %3352 = vmatpush2.msra.mxu0 0.0
        %3353 = vmatprep.subr.mxu0 0.0
        %3354 = vmatpush2.msra.mxu0 0.0
        %3355 = vmatprep.subr.mxu0 0.0
        %3356 = vmatpush2.msra.mxu0 0.0
        %3357 = vmatprep.subr.mxu0 0.0
        %3358 = vmatpush2.msra.mxu0 0.0
        %3359 = vmatprep.subr.mxu0 0.0
        %3360 = vmatpush2.msra.mxu0 0.0
        %3361 = vmatprep.subr.mxu0 0.0
        %3362 = vmatpush2.msra.mxu0 0.0
        %3363 = vmatprep.mubr.f32.mxu0 0.0
        %v3364 = vand.u32 %v3288, 4294901760
        %v3365 = vsub.f32 %v3288, %v3364
        %v3366 = vand.u32 %v3365, 4294901760
        %v3367 = vsub.f32 %v3365, %v3366
        %v3368 = vand.u32 %v3367, 4294901760
        %3369 = vmatmul.mubr.f32.gmra.mxu0 %v3368
        %v3370 = vpop.f32.mrf.mxu0
        %v3371 = vadd.f32 0.0, %v3370
        %v3372 = vpop.f32.mrf.mxu0
        %3373 = vdwg.mxu0
        %3374 = vmatprep.subr.mxu0 0.0
        %3375 = vmatpush1.msra.mxu0 0.0
        %3376 = vmatprep.subr.mxu0 0.0
        %3377 = vmatpush1.msra.mxu0 0.0
        %3378 = vmatprep.subr.mxu0 0.0
        %3379 = vmatpush1.msra.mxu0 0.0
        %3380 = vmatprep.subr.mxu0 0.0
        %3381 = vmatpush1.msra.mxu0 0.0
        %3382 = vmatprep.subr.mxu0 0.0
        %3383 = vmatpush1.msra.mxu0 0.0
        %3384 = vmatprep.subr.mxu0 0.0
        %3385 = vmatpush1.msra.mxu0 0.0
        %3386 = vmatprep.subr.mxu0 0.0
        %3387 = vmatpush1.msra.mxu0 0.0
        %3388 = vmatprep.subr.mxu0 0.0
        %v3389 = vand.u32 %v3285, 4294901760
        %v3390 = vsub.f32 %v3285, %v3389
        %v3391 = vand.u32 %v3390, 4294901760
        %v3392 = vsub.f32 %v3390, %v3391
        %v3393 = vand.u32 %v3392, 4294901760
        %3394 = vmatpush1.msra.mxu0 %v3393
        %3395 = vmatprep.subr.mxu0 0.0
        %v3396 = vand.u32 %v3284, 4294901760
        %v3397 = vsub.f32 %v3284, %v3396
        %v3398 = vand.u32 %v3397, 4294901760
        %v3399 = vsub.f32 %v3397, %v3398
        %v3400 = vand.u32 %v3399, 4294901760
        %3401 = vmatpush1.msra.mxu0 %v3400
        %3402 = vmatprep.subr.mxu0 0.0
        %v3403 = vand.u32 %v3283, 4294901760
        %v3404 = vsub.f32 %v3283, %v3403
        %v3405 = vand.u32 %v3404, 4294901760
        %v3406 = vsub.f32 %v3404, %v3405
        %v3407 = vand.u32 %v3406, 4294901760
        %3408 = vmatpush1.msra.mxu0 %v3407
        %3409 = vmatprep.subr.mxu0 0.0
        %v3410 = vand.u32 %v3282, 4294901760
        %v3411 = vsub.f32 %v3282, %v3410
        %v3412 = vand.u32 %v3411, 4294901760
        %v3413 = vsub.f32 %v3411, %v3412
        %v3414 = vand.u32 %v3413, 4294901760
        %3415 = vmatpush1.msra.mxu0 %v3414
        %3416 = vmatprep.subr.mxu0 0.0
        %v3417 = vand.u32 %v3281, 4294901760
        %v3418 = vsub.f32 %v3281, %v3417
        %v3419 = vand.u32 %v3418, 4294901760
        %v3420 = vsub.f32 %v3418, %v3419
        %v3421 = vand.u32 %v3420, 4294901760
        %3422 = vmatpush1.msra.mxu0 %v3421
        %3423 = vmatprep.subr.mxu0 0.0
        %v3424 = vand.u32 %v3280, 4294901760
        %v3425 = vsub.f32 %v3280, %v3424
        %v3426 = vand.u32 %v3425, 4294901760
        %v3427 = vsub.f32 %v3425, %v3426
        %v3428 = vand.u32 %v3427, 4294901760
        %3429 = vmatpush1.msra.mxu0 %v3428
        %3430 = vmatprep.subr.mxu0 0.0
        %v3431 = vand.u32 %v3279, 4294901760
        %v3432 = vsub.f32 %v3279, %v3431
        %v3433 = vand.u32 %v3432, 4294901760
        %v3434 = vsub.f32 %v3432, %v3433
        %v3435 = vand.u32 %v3434, 4294901760
        %3436 = vmatpush1.msra.mxu0 %v3435
        %3437 = vmatprep.subr.mxu0 0.0
        %v3438 = vand.u32 %v3278, 4294901760
        %v3439 = vsub.f32 %v3278, %v3438
        %v3440 = vand.u32 %v3439, 4294901760
        %v3441 = vsub.f32 %v3439, %v3440
        %v3442 = vand.u32 %v3441, 4294901760
        %3443 = vmatpush1.msra.mxu0 %v3442
        %3444 = vmatprep.subr.mxu0 0.0
        %v3445 = vand.u32 %v3277, 4294901760
        %v3446 = vsub.f32 %v3277, %v3445
        %v3447 = vand.u32 %v3446, 4294901760
        %v3448 = vsub.f32 %v3446, %v3447
        %v3449 = vand.u32 %v3448, 4294901760
        %3450 = vmatpush1.msra.mxu0 %v3449
        %3451 = vmatprep.subr.mxu0 0.0
        %3452 = vmatpush2.msra.mxu0 0.0
        %3453 = vmatprep.subr.mxu0 0.0
        %3454 = vmatpush2.msra.mxu0 0.0
        %3455 = vmatprep.subr.mxu0 0.0
        %3456 = vmatpush2.msra.mxu0 0.0
        %3457 = vmatprep.subr.mxu0 0.0
        %3458 = vmatpush2.msra.mxu0 0.0
        %3459 = vmatprep.subr.mxu0 0.0
        %3460 = vmatpush2.msra.mxu0 0.0
        %3461 = vmatprep.subr.mxu0 0.0
        %3462 = vmatpush2.msra.mxu0 0.0
        %3463 = vmatprep.subr.mxu0 0.0
        %3464 = vmatpush2.msra.mxu0 0.0
        %3465 = vmatprep.subr.mxu0 0.0
        %3466 = vmatpush2.msra.mxu0 0.0
        %3467 = vmatprep.subr.mxu0 0.0
        %3468 = vmatpush2.msra.mxu0 0.0
        %3469 = vmatprep.subr.mxu0 0.0
        %3470 = vmatpush2.msra.mxu0 0.0
        %3471 = vmatprep.subr.mxu0 0.0
        %3472 = vmatpush2.msra.mxu0 0.0
        %3473 = vmatprep.subr.mxu0 0.0
        %3474 = vmatpush2.msra.mxu0 0.0
        %3475 = vmatprep.subr.mxu0 0.0
        %3476 = vmatpush2.msra.mxu0 0.0
        %3477 = vmatprep.subr.mxu0 0.0
        %3478 = vmatpush2.msra.mxu0 0.0
        %3479 = vmatprep.subr.mxu0 0.0
        %3480 = vmatpush2.msra.mxu0 0.0
        %3481 = vmatprep.subr.mxu0 0.0
        %3482 = vmatpush2.msra.mxu0 0.0
        %3483 = vmatprep.mubr.f32.mxu0 0.0
        %v3484 = vand.u32 %v3288, 4294901760
        %3485 = vmatmul.mubr.f32.gmra.mxu0 %v3484
        %v3486 = vpop.f32.mrf.mxu0
        %v3487 = vadd.f32 %v3371, %v3486
        %v3488 = vpop.f32.mrf.mxu0
        %3489 = vdwg.mxu0
        %3490 = vmatprep.subr.mxu0 0.0
        %3491 = vmatpush1.msra.mxu0 0.0
        %3492 = vmatprep.subr.mxu0 0.0
        %3493 = vmatpush1.msra.mxu0 0.0
        %3494 = vmatprep.subr.mxu0 0.0
        %3495 = vmatpush1.msra.mxu0 0.0
        %3496 = vmatprep.subr.mxu0 0.0
        %3497 = vmatpush1.msra.mxu0 0.0
        %3498 = vmatprep.subr.mxu0 0.0
        %3499 = vmatpush1.msra.mxu0 0.0
        %3500 = vmatprep.subr.mxu0 0.0
        %3501 = vmatpush1.msra.mxu0 0.0
        %3502 = vmatprep.subr.mxu0 0.0
        %3503 = vmatpush1.msra.mxu0 0.0
        %3504 = vmatprep.subr.mxu0 0.0
        %v3505 = vand.u32 %v3285, 4294901760
        %v3506 = vsub.f32 %v3285, %v3505
        %3507 = vmatpush1.msra.mxu0 %v3506
        %3508 = vmatprep.subr.mxu0 0.0
        %v3509 = vand.u32 %v3284, 4294901760
        %v3510 = vsub.f32 %v3284, %v3509
        %3511 = vmatpush1.msra.mxu0 %v3510
        %3512 = vmatprep.subr.mxu0 0.0
        %v3513 = vand.u32 %v3283, 4294901760
        %v3514 = vsub.f32 %v3283, %v3513
        %3515 = vmatpush1.msra.mxu0 %v3514
        %3516 = vmatprep.subr.mxu0 0.0
        %v3517 = vand.u32 %v3282, 4294901760
        %v3518 = vsub.f32 %v3282, %v3517
        %3519 = vmatpush1.msra.mxu0 %v3518
        %3520 = vmatprep.subr.mxu0 0.0
        %v3521 = vand.u32 %v3281, 4294901760
        %v3522 = vsub.f32 %v3281, %v3521
        %3523 = vmatpush1.msra.mxu0 %v3522
        %3524 = vmatprep.subr.mxu0 0.0
        %v3525 = vand.u32 %v3280, 4294901760
        %v3526 = vsub.f32 %v3280, %v3525
        %3527 = vmatpush1.msra.mxu0 %v3526
        %3528 = vmatprep.subr.mxu0 0.0
        %v3529 = vand.u32 %v3279, 4294901760
        %v3530 = vsub.f32 %v3279, %v3529
        %3531 = vmatpush1.msra.mxu0 %v3530
        %3532 = vmatprep.subr.mxu0 0.0
        %v3533 = vand.u32 %v3278, 4294901760
        %v3534 = vsub.f32 %v3278, %v3533
        %3535 = vmatpush1.msra.mxu0 %v3534
        %3536 = vmatprep.subr.mxu0 0.0
        %v3537 = vand.u32 %v3277, 4294901760
        %v3538 = vsub.f32 %v3277, %v3537
        %3539 = vmatpush1.msra.mxu0 %v3538
        %3540 = vmatprep.subr.mxu0 0.0
        %3541 = vmatpush2.msra.mxu0 0.0
        %3542 = vmatprep.subr.mxu0 0.0
        %3543 = vmatpush2.msra.mxu0 0.0
        %3544 = vmatprep.subr.mxu0 0.0
        %3545 = vmatpush2.msra.mxu0 0.0
        %3546 = vmatprep.subr.mxu0 0.0
        %3547 = vmatpush2.msra.mxu0 0.0
        %3548 = vmatprep.subr.mxu0 0.0
        %3549 = vmatpush2.msra.mxu0 0.0
        %3550 = vmatprep.subr.mxu0 0.0
        %3551 = vmatpush2.msra.mxu0 0.0
        %3552 = vmatprep.subr.mxu0 0.0
        %3553 = vmatpush2.msra.mxu0 0.0
        %3554 = vmatprep.subr.mxu0 0.0
        %3555 = vmatpush2.msra.mxu0 0.0
        %3556 = vmatprep.subr.mxu0 0.0
        %3557 = vmatpush2.msra.mxu0 0.0
        %3558 = vmatprep.subr.mxu0 0.0
        %3559 = vmatpush2.msra.mxu0 0.0
        %3560 = vmatprep.subr.mxu0 0.0
        %3561 = vmatpush2.msra.mxu0 0.0
        %3562 = vmatprep.subr.mxu0 0.0
        %3563 = vmatpush2.msra.mxu0 0.0
        %3564 = vmatprep.subr.mxu0 0.0
        %3565 = vmatpush2.msra.mxu0 0.0
        %3566 = vmatprep.subr.mxu0 0.0
        %3567 = vmatpush2.msra.mxu0 0.0
        %3568 = vmatprep.subr.mxu0 0.0
        %3569 = vmatpush2.msra.mxu0 0.0
        %3570 = vmatprep.subr.mxu0 0.0
        %3571 = vmatpush2.msra.mxu0 0.0
        %3572 = vmatprep.mubr.f32.mxu0 0.0
        %v3573 = vand.u32 %v3288, 4294901760
        %v3574 = vsub.f32 %v3288, %v3573
        %3575 = vmatmul.mubr.f32.gmra.mxu0 %v3574
        %v3576 = vpop.f32.mrf.mxu0
        %v3577 = vadd.f32 %v3487, %v3576
        %v3578 = vpop.f32.mrf.mxu0
        %3579 = vdwg.mxu0
        %3580 = vmatprep.subr.mxu0 0.0
        %3581 = vmatpush1.msra.mxu0 0.0
        %3582 = vmatprep.subr.mxu0 0.0
        %3583 = vmatpush1.msra.mxu0 0.0
        %3584 = vmatprep.subr.mxu0 0.0
        %3585 = vmatpush1.msra.mxu0 0.0
        %3586 = vmatprep.subr.mxu0 0.0
        %3587 = vmatpush1.msra.mxu0 0.0
        %3588 = vmatprep.subr.mxu0 0.0
        %3589 = vmatpush1.msra.mxu0 0.0
        %3590 = vmatprep.subr.mxu0 0.0
        %3591 = vmatpush1.msra.mxu0 0.0
        %3592 = vmatprep.subr.mxu0 0.0
        %3593 = vmatpush1.msra.mxu0 0.0
        %3594 = vmatprep.subr.mxu0 0.0
        %v3595 = vand.u32 %v3285, 4294901760
        %3596 = vmatpush1.msra.mxu0 %v3595
        %3597 = vmatprep.subr.mxu0 0.0
        %v3598 = vand.u32 %v3284, 4294901760
        %3599 = vmatpush1.msra.mxu0 %v3598
        %3600 = vmatprep.subr.mxu0 0.0
        %v3601 = vand.u32 %v3283, 4294901760
        %3602 = vmatpush1.msra.mxu0 %v3601
        %3603 = vmatprep.subr.mxu0 0.0
        %v3604 = vand.u32 %v3282, 4294901760
        %3605 = vmatpush1.msra.mxu0 %v3604
        %3606 = vmatprep.subr.mxu0 0.0
        %v3607 = vand.u32 %v3281, 4294901760
        %3608 = vmatpush1.msra.mxu0 %v3607
        %3609 = vmatprep.subr.mxu0 0.0
        %v3610 = vand.u32 %v3280, 4294901760
        %3611 = vmatpush1.msra.mxu0 %v3610
        %3612 = vmatprep.subr.mxu0 0.0
        %v3613 = vand.u32 %v3279, 4294901760
        %3614 = vmatpush1.msra.mxu0 %v3613
        %3615 = vmatprep.subr.mxu0 0.0
        %v3616 = vand.u32 %v3278, 4294901760
        %3617 = vmatpush1.msra.mxu0 %v3616
        %3618 = vmatprep.subr.mxu0 0.0
        %v3619 = vand.u32 %v3277, 4294901760
        %3620 = vmatpush1.msra.mxu0 %v3619
        %3621 = vmatprep.subr.mxu0 0.0
        %3622 = vmatpush2.msra.mxu0 0.0
        %3623 = vmatprep.subr.mxu0 0.0
        %3624 = vmatpush2.msra.mxu0 0.0
        %3625 = vmatprep.subr.mxu0 0.0
        %3626 = vmatpush2.msra.mxu0 0.0
        %3627 = vmatprep.subr.mxu0 0.0
        %3628 = vmatpush2.msra.mxu0 0.0
        %3629 = vmatprep.subr.mxu0 0.0
        %3630 = vmatpush2.msra.mxu0 0.0
        %3631 = vmatprep.subr.mxu0 0.0
        %3632 = vmatpush2.msra.mxu0 0.0
        %3633 = vmatprep.subr.mxu0 0.0
        %3634 = vmatpush2.msra.mxu0 0.0
        %3635 = vmatprep.subr.mxu0 0.0
        %3636 = vmatpush2.msra.mxu0 0.0
        %3637 = vmatprep.subr.mxu0 0.0
        %3638 = vmatpush2.msra.mxu0 0.0
        %3639 = vmatprep.subr.mxu0 0.0
        %3640 = vmatpush2.msra.mxu0 0.0
        %3641 = vmatprep.subr.mxu0 0.0
        %3642 = vmatpush2.msra.mxu0 0.0
        %3643 = vmatprep.subr.mxu0 0.0
        %3644 = vmatpush2.msra.mxu0 0.0
        %3645 = vmatprep.subr.mxu0 0.0
        %3646 = vmatpush2.msra.mxu0 0.0
        %3647 = vmatprep.subr.mxu0 0.0
        %3648 = vmatpush2.msra.mxu0 0.0
        %3649 = vmatprep.subr.mxu0 0.0
        %3650 = vmatpush2.msra.mxu0 0.0
        %3651 = vmatprep.subr.mxu0 0.0
        %3652 = vmatpush2.msra.mxu0 0.0
        %3653 = vmatprep.mubr.f32.mxu0 0.0
        %v3654 = vand.u32 %v3288, 4294901760
        %v3655 = vsub.f32 %v3288, %v3654
        %v3656 = vand.u32 %v3655, 4294901760
        %3657 = vmatmul.mubr.f32.gmra.mxu0 %v3656
        %v3658 = vpop.f32.mrf.mxu0
        %v3659 = vadd.f32 %v3577, %v3658
        %v3660 = vpop.f32.mrf.mxu0
        %3661 = vdwg.mxu0
        %3662 = vmatprep.subr.mxu0 0.0
        %3663 = vmatpush1.msra.mxu0 0.0
        %3664 = vmatprep.subr.mxu0 0.0
        %3665 = vmatpush1.msra.mxu0 0.0
        %3666 = vmatprep.subr.mxu0 0.0
        %3667 = vmatpush1.msra.mxu0 0.0
        %3668 = vmatprep.subr.mxu0 0.0
        %3669 = vmatpush1.msra.mxu0 0.0
        %3670 = vmatprep.subr.mxu0 0.0
        %3671 = vmatpush1.msra.mxu0 0.0
        %3672 = vmatprep.subr.mxu0 0.0
        %3673 = vmatpush1.msra.mxu0 0.0
        %3674 = vmatprep.subr.mxu0 0.0
        %3675 = vmatpush1.msra.mxu0 0.0
        %3676 = vmatprep.subr.mxu0 0.0
        %v3677 = vand.u32 %v3285, 4294901760
        %v3678 = vsub.f32 %v3285, %v3677
        %v3679 = vand.u32 %v3678, 4294901760
        %3680 = vmatpush1.msra.mxu0 %v3679
        %3681 = vmatprep.subr.mxu0 0.0
        %v3682 = vand.u32 %v3284, 4294901760
        %v3683 = vsub.f32 %v3284, %v3682
        %v3684 = vand.u32 %v3683, 4294901760
        %3685 = vmatpush1.msra.mxu0 %v3684
        %3686 = vmatprep.subr.mxu0 0.0
        %v3687 = vand.u32 %v3283, 4294901760
        %v3688 = vsub.f32 %v3283, %v3687
        %v3689 = vand.u32 %v3688, 4294901760
        %3690 = vmatpush1.msra.mxu0 %v3689
        %3691 = vmatprep.subr.mxu0 0.0
        %v3692 = vand.u32 %v3282, 4294901760
        %v3693 = vsub.f32 %v3282, %v3692
        %v3694 = vand.u32 %v3693, 4294901760
        %3695 = vmatpush1.msra.mxu0 %v3694
        %3696 = vmatprep.subr.mxu0 0.0
        %v3697 = vand.u32 %v3281, 4294901760
        %v3698 = vsub.f32 %v3281, %v3697
        %v3699 = vand.u32 %v3698, 4294901760
        %3700 = vmatpush1.msra.mxu0 %v3699
        %3701 = vmatprep.subr.mxu0 0.0
        %v3702 = vand.u32 %v3280, 4294901760
        %v3703 = vsub.f32 %v3280, %v3702
        %v3704 = vand.u32 %v3703, 4294901760
        %3705 = vmatpush1.msra.mxu0 %v3704
        %3706 = vmatprep.subr.mxu0 0.0
        %v3707 = vand.u32 %v3279, 4294901760
        %v3708 = vsub.f32 %v3279, %v3707
        %v3709 = vand.u32 %v3708, 4294901760
        %3710 = vmatpush1.msra.mxu0 %v3709
        %3711 = vmatprep.subr.mxu0 0.0
        %v3712 = vand.u32 %v3278, 4294901760
        %v3713 = vsub.f32 %v3278, %v3712
        %v3714 = vand.u32 %v3713, 4294901760
        %3715 = vmatpush1.msra.mxu0 %v3714
        %3716 = vmatprep.subr.mxu0 0.0
        %v3717 = vand.u32 %v3277, 4294901760
        %v3718 = vsub.f32 %v3277, %v3717
        %v3719 = vand.u32 %v3718, 4294901760
        %3720 = vmatpush1.msra.mxu0 %v3719
        %3721 = vmatprep.subr.mxu0 0.0
        %3722 = vmatpush2.msra.mxu0 0.0
        %3723 = vmatprep.subr.mxu0 0.0
        %3724 = vmatpush2.msra.mxu0 0.0
        %3725 = vmatprep.subr.mxu0 0.0
        %3726 = vmatpush2.msra.mxu0 0.0
        %3727 = vmatprep.subr.mxu0 0.0
        %3728 = vmatpush2.msra.mxu0 0.0
        %3729 = vmatprep.subr.mxu0 0.0
        %3730 = vmatpush2.msra.mxu0 0.0
        %3731 = vmatprep.subr.mxu0 0.0
        %3732 = vmatpush2.msra.mxu0 0.0
        %3733 = vmatprep.subr.mxu0 0.0
        %3734 = vmatpush2.msra.mxu0 0.0
        %3735 = vmatprep.subr.mxu0 0.0
        %3736 = vmatpush2.msra.mxu0 0.0
        %3737 = vmatprep.subr.mxu0 0.0
        %3738 = vmatpush2.msra.mxu0 0.0
        %3739 = vmatprep.subr.mxu0 0.0
        %3740 = vmatpush2.msra.mxu0 0.0
        %3741 = vmatprep.subr.mxu0 0.0
        %3742 = vmatpush2.msra.mxu0 0.0
        %3743 = vmatprep.subr.mxu0 0.0
        %3744 = vmatpush2.msra.mxu0 0.0
        %3745 = vmatprep.subr.mxu0 0.0
        %3746 = vmatpush2.msra.mxu0 0.0
        %3747 = vmatprep.subr.mxu0 0.0
        %3748 = vmatpush2.msra.mxu0 0.0
        %3749 = vmatprep.subr.mxu0 0.0
        %3750 = vmatpush2.msra.mxu0 0.0
        %3751 = vmatprep.subr.mxu0 0.0
        %3752 = vmatpush2.msra.mxu0 0.0
        %3753 = vmatprep.mubr.f32.mxu0 0.0
        %v3754 = vand.u32 %v3288, 4294901760
        %3755 = vmatmul.mubr.f32.gmra.mxu0 %v3754
        %v3756 = vpop.f32.mrf.mxu0
        %v3757 = vadd.f32 %v3659, %v3756
        %v3758 = vpop.f32.mrf.mxu0
        %3759 = vdwg.mxu0
        %3760 = vmatprep.subr.mxu0 0.0
        %3761 = vmatpush1.msra.mxu0 0.0
        %3762 = vmatprep.subr.mxu0 0.0
        %3763 = vmatpush1.msra.mxu0 0.0
        %3764 = vmatprep.subr.mxu0 0.0
        %3765 = vmatpush1.msra.mxu0 0.0
        %3766 = vmatprep.subr.mxu0 0.0
        %3767 = vmatpush1.msra.mxu0 0.0
        %3768 = vmatprep.subr.mxu0 0.0
        %3769 = vmatpush1.msra.mxu0 0.0
        %3770 = vmatprep.subr.mxu0 0.0
        %3771 = vmatpush1.msra.mxu0 0.0
        %3772 = vmatprep.subr.mxu0 0.0
        %3773 = vmatpush1.msra.mxu0 0.0
        %3774 = vmatprep.subr.mxu0 0.0
        %v3775 = vand.u32 %v3285, 4294901760
        %3776 = vmatpush1.msra.mxu0 %v3775
        %3777 = vmatprep.subr.mxu0 0.0
        %v3778 = vand.u32 %v3284, 4294901760
        %3779 = vmatpush1.msra.mxu0 %v3778
        %3780 = vmatprep.subr.mxu0 0.0
        %v3781 = vand.u32 %v3283, 4294901760
        %3782 = vmatpush1.msra.mxu0 %v3781
        %3783 = vmatprep.subr.mxu0 0.0
        %v3784 = vand.u32 %v3282, 4294901760
        %3785 = vmatpush1.msra.mxu0 %v3784
        %3786 = vmatprep.subr.mxu0 0.0
        %v3787 = vand.u32 %v3281, 4294901760
        %3788 = vmatpush1.msra.mxu0 %v3787
        %3789 = vmatprep.subr.mxu0 0.0
        %v3790 = vand.u32 %v3280, 4294901760
        %3791 = vmatpush1.msra.mxu0 %v3790
        %3792 = vmatprep.subr.mxu0 0.0
        %v3793 = vand.u32 %v3279, 4294901760
        %3794 = vmatpush1.msra.mxu0 %v3793
        %3795 = vmatprep.subr.mxu0 0.0
        %v3796 = vand.u32 %v3278, 4294901760
        %3797 = vmatpush1.msra.mxu0 %v3796
        %3798 = vmatprep.subr.mxu0 0.0
        %v3799 = vand.u32 %v3277, 4294901760
        %3800 = vmatpush1.msra.mxu0 %v3799
        %3801 = vmatprep.subr.mxu0 0.0
        %3802 = vmatpush2.msra.mxu0 0.0
        %3803 = vmatprep.subr.mxu0 0.0
        %3804 = vmatpush2.msra.mxu0 0.0
        %3805 = vmatprep.subr.mxu0 0.0
        %3806 = vmatpush2.msra.mxu0 0.0
        %3807 = vmatprep.subr.mxu0 0.0
        %3808 = vmatpush2.msra.mxu0 0.0
        %3809 = vmatprep.subr.mxu0 0.0
        %3810 = vmatpush2.msra.mxu0 0.0
        %3811 = vmatprep.subr.mxu0 0.0
        %3812 = vmatpush2.msra.mxu0 0.0
        %3813 = vmatprep.subr.mxu0 0.0
        %3814 = vmatpush2.msra.mxu0 0.0
        %3815 = vmatprep.subr.mxu0 0.0
        %3816 = vmatpush2.msra.mxu0 0.0
        %3817 = vmatprep.subr.mxu0 0.0
        %3818 = vmatpush2.msra.mxu0 0.0
        %3819 = vmatprep.subr.mxu0 0.0
        %3820 = vmatpush2.msra.mxu0 0.0
        %3821 = vmatprep.subr.mxu0 0.0
        %3822 = vmatpush2.msra.mxu0 0.0
        %3823 = vmatprep.subr.mxu0 0.0
        %3824 = vmatpush2.msra.mxu0 0.0
        %3825 = vmatprep.subr.mxu0 0.0
        %3826 = vmatpush2.msra.mxu0 0.0
        %3827 = vmatprep.subr.mxu0 0.0
        %3828 = vmatpush2.msra.mxu0 0.0
        %3829 = vmatprep.subr.mxu0 0.0
        %3830 = vmatpush2.msra.mxu0 0.0
        %3831 = vmatprep.subr.mxu0 0.0
        %3832 = vmatpush2.msra.mxu0 0.0
        %3833 = vmatprep.mubr.f32.mxu0 0.0
        %v3834 = vand.u32 %v3288, 4294901760
        %3835 = vmatmul.mubr.f32.gmra.mxu0 %v3834
        %v3836 = vpop.f32.mrf.mxu0
        %v3837 = vadd.f32 %v3757, %v3836
        %v3838 = vpop.f32.mrf.mxu0
        %3839 = vdwg.mxu0
        %v3840 = vmul.f32 %v2779, %v3837
        %v3841 = vadd.f32 %v2244, %v3840
        %3842 = vst.msk [vmem:[%s297] sm:$0xff] %vm313, %v3841
        %3844 = vst.msk [vmem:[%s311] sm:$0xff] %vm3275, %v829
        %s3845 = sand.u32 %s183, 1
        %s3846 = scalar_lea.sflag [#allocation3], %s3845
        %s3847 = sand.u32 %s183, 1
        %s3848 = smul.addr %s3847, 8
        %s3849 = scalar_lea.vmem [#allocation2], %s3848
        %p3850 = scmp.lt.s32.totalorder %s23, 1
        %s3851 = scalar_select %p3850, %s23, 1
        %s3852 = smul.addr %s3851, 8
        %s3853 = scalar_lea.vmem %s8, %s3852
        // Predicated region
        $region49: #{enterprise_transformer_layer.1} parent=47 // pred_check
          %p3854 = pneg %p193
        $region50: #{enterprise_transformer_layer.1} parent=47 // pred_check_branch
          %3856 = sbr.rel (%p3854) target = $region52
        $region51: #{enterprise_transformer_layer.1} parent=47 // pred_region
          %s3858 = ssub.s32 128, 128
          %3859 = vsyncadd %s3846, %s3858
          %s3860 = smul.addr %s23, 128
          %s3861 = scalar_lea.hbm %s7, %s3860
          %s3863 = sshll.u32 %s3849, 4
          %s3864 = int_to_ptr.vmem [resolvable:$true] %s3863
          %3866 = dma.vmem_to_hbm [thread:$0]  %s3864, 128, %s3861, %s3846
        $region52: #{enterprise_transformer_layer.1} parent=47 // pred_fallthru
          _
        // Predicated region
        $region53: #{enterprise_transformer_layer.1} parent=47 // pred_check
          %p3867 = pneg %p219
        $region54: #{enterprise_transformer_layer.1} parent=47 // pred_check_branch
          %3869 = sbr.rel (%p3867) target = $region56
        $region55: #{enterprise_transformer_layer.1} parent=47 // pred_region
          _
        $region56: #{enterprise_transformer_layer.1} parent=47 // pred_fallthru
          _
      $region48: #{enterprise_transformer_layer.1} parent=5 // pred_fallthru
        _
      %p3870 = scmp.le.s32.totalorder 2, %s18
      // Predicated region
      $region57: #{enterprise_transformer_layer.1} parent=5 // pred_check
        %p3871 = pneg %p3870
      $region58: #{enterprise_transformer_layer.1} parent=5 // pred_check_branch
        %3873 = sbr.rel (%p3871) target = $region60
      $region59: #{enterprise_transformer_layer.1} parent=5 // pred_region
        %s3874 = ssub.s32 %s18, 2
        // Predicated region
        $region61: #{enterprise_transformer_layer.1} parent=59 // pred_check
          %p3875 = pneg %p199
        $region62: #{enterprise_transformer_layer.1} parent=59 // pred_check_branch
          %3877 = sbr.rel (%p3875) target = $region64
        $region63: #{enterprise_transformer_layer.1} parent=59 // pred_region
          %s3878 = sand.u32 %s184, 1
          %s3879 = scalar_lea.sflag [#allocation3], %s3878
          %s3880 = sand.u32 %s184, 1
          %s3881 = smul.addr %s3880, 8
          %s3882 = scalar_lea.vmem [#allocation2], %s3881
          %3883 = dma.done %s3879, 128
        $region64: #{enterprise_transformer_layer.1} parent=59 // pred_fallthru
          _
        // Predicated region
        $region65: #{enterprise_transformer_layer.1} parent=59 // pred_check
          %p3884 = pneg %p225
        $region66: #{enterprise_transformer_layer.1} parent=59 // pred_check_branch
          %3886 = sbr.rel (%p3884) target = $region68
        $region67: #{enterprise_transformer_layer.1} parent=59 // pred_region
          %p3887 = scmp.lt.s32.totalorder %s24, 1
          %s3888 = scalar_select %p3887, %s24, 1
          %s3889 = smul.addr %s3888, 8
          %s3890 = scalar_lea.vmem %s8, %s3889
        $region68: #{enterprise_transformer_layer.1} parent=59 // pred_fallthru
          _
      $region60: #{enterprise_transformer_layer.1} parent=5 // pred_fallthru
        _
    $region6: #{enterprise_transformer_layer.1} parent=1 // loop_footer
      %s22 = sadd.s32 1, %s18
    $region7: #{enterprise_transformer_layer.1} parent=1 // loop_footer_branch
      %17 = sbr.rel target = $region3
    $region8: #{enterprise_transformer_layer.1} parent=1 // loop_exit
      _
    %3891 = vsyncpa [#allocation3], 1
    %s3892 = scalar_lea.sflag [#allocation3], 1
    %3893 = vsyncpa %s3892, 1

</llo_original>
